<compile_context>
chip_gen: v6e
topology: v6e:2x2x1
jax: 0.10.0
libtpu: 0.0.40
codegen_flags: <defaults>
</compile_context>

<pallas_src>
import functools

import jax
import jax.numpy as jnp
from jax import lax
from jax.experimental import pallas as pl
from jax.experimental.pallas import tpu as pltpu


def _cdiv(a, b):
    return -(-a // b)


# ----------------------------- in-kernel math ------------------------------ #

def _erf_f32(x):
    """Single-precision erf (Eigen/XLA generic_fast_erf_float rational approx)."""
    x = jnp.clip(x, -4.0, 4.0)
    x2 = x * x
    # odd numerator polynomial
    p = x2 * (-2.72614225801306e-10) + (2.77068142495902e-08)
    p = x2 * p + (-2.10102402082508e-06)
    p = x2 * p + (-5.69250639462346e-05)
    p = x2 * p + (-7.34990630326855e-04)
    p = x2 * p + (-2.95459980854025e-03)
    p = x2 * p + (-1.60960333262415e-02)
    p = x * p
    # even denominator polynomial
    q = x2 * (-1.45660718464996e-05) + (-2.13374055278905e-04)
    q = x2 * q + (-1.68282697438203e-03)
    q = x2 * q + (-7.37332916720468e-03)
    q = x2 * q + (-1.42647390514189e-02)
    # p / q via the EUP reciprocal slot (co-issues with MXU/VPU work).
    return p * pl.reciprocal(q, approx=True)


def _gelu_exact(x):
    # PyTorch nn.GELU() (approximate='none'):  0.5 * x * (1 + erf(x / sqrt(2)))
    return 0.5 * x * (1.0 + _erf_f32(x * 0.7071067811865476))


# ------------------------------- the kernel -------------------------------- #

def _resmlp_kernel(x_ref, w_emb_ref, b_emb_ref,
                   pD_ref, b1_ref, w1_ref, w2_ref,
                   affa_ref, affb_ref, mean_ref, wc_ref, bc_ref,
                   out_ref, *, inv_s):
    depth = w1_ref.shape[0]

    # Embedding Linear(IN_pad, D); the zero-padded input columns contribute 0.
    y0 = jnp.dot(x_ref[0], w_emb_ref[...],
                 preferred_element_type=jnp.float32) + b_emb_ref[...]   # (M, D) f32

    # Residual channel-MLP blocks with VMEM-resident weights; the residual is a
    # plain f32 loop carry:   y = MLP(affine(y)) * scale + y
    def layer_body(l, y):
        pd = pD_ref[l]                                     # (4, D): alpha,beta,scale,b2
        a = (y * pd[0:1] + pd[1:2]).astype(jnp.bfloat16)   # pre-Affine -> bf16 for MXU
        h = jnp.dot(a, w1_ref[l], preferred_element_type=jnp.float32) + b1_ref[l]
        h = _gelu_exact(h).astype(jnp.bfloat16)            # (M, 4D)
        f = jnp.dot(h, w2_ref[l], preferred_element_type=jnp.float32) + pd[3:4]
        return f * pd[2:3] + y                             # LayerScale + residual

    y = lax.fori_loop(0, depth, layer_body, y0, unroll=True)

    # Final Affine -> per-batch token mean (exact 0/1 block-diagonal MXU matmul,
    # 1/S applied in f32) -> batched classifier, lane-dense padded output store.
    z = (y * affa_ref[...] + affb_ref[...]).astype(jnp.bfloat16)
    m = jnp.dot(mean_ref[...], z, preferred_element_type=jnp.float32) * inv_s   # (bpb, D)
    logits = jnp.dot(m.astype(jnp.bfloat16), wc_ref[...],
                     preferred_element_type=jnp.float32) + bc_ref[...]          # (bpb, Cp)
    out_ref[0] = logits


# ------------------------------- the wrapper -------------------------------- #

def resmlp_forward(x, p, *, m_target=512):
    B, S, IN = x.shape
    D = p["w_emb"].shape[1]
    H = p["w1"].shape[2]
    C = p["w_cls"].shape[1]
    depth = p["w1"].shape[0]

    # ---- M-tile selection: whole batches per tile, ~m_target rows.  Only split
    # into >=2 grid tiles (so v7x's second TensorCore gets work) when every shard
    # still has >= 256 MXU rows; otherwise one bigger tile beats the extra
    # per-grid-step overhead on 1-TC chips and avoids tiny-row MXU passes.
    bpb = max(1, min(B, m_target // max(S, 1)))
    n_blk = _cdiv(B, bpb)
    if n_blk == 1 and B > 1:
        half = _cdiv(B, 2)
        if half * S >= 256:
            bpb = half
            n_blk = _cdiv(B, bpb)
    B_pad = n_blk * bpb
    M = bpb * S                      # rows per M tile

    IN_pad = _cdiv(IN, 128) * 128    # full-K MXU pass for the embedding matmul
    C_pad = _cdiv(C, 128) * 128      # lane-dense classifier output

    # pad batch + input channels, pack rows as (n_blk, M, IN_pad); bf16 MXU inputs
    x_p = jnp.pad(x, ((0, B_pad - B), (0, 0), (0, IN_pad - IN)))
    x_blk = x_p.reshape(n_blk, M, IN_pad).astype(jnp.bfloat16)

    w_emb_p = jnp.pad(p["w_emb"], ((0, IN_pad - IN), (0, 0))).astype(jnp.bfloat16)

    # exact 0/1 block-diagonal per-batch token-SUM operand (1/S applied in f32 in-kernel)
    mean_mat = jnp.kron(jnp.eye(bpb, dtype=jnp.float32),
                        jnp.ones((1, S), jnp.float32)).astype(jnp.bfloat16)

    # pack the D-wide per-layer params into one resident block: rows = alpha, beta, scale, b2
    pD = jnp.concatenate([p["alpha"], p["beta"], p["scale"], p["b2"]], axis=1)   # (depth,4,D)

    w_cls_p = jnp.pad(p["w_cls"], ((0, 0), (0, C_pad - C))).astype(jnp.bfloat16)
    b_cls_p = jnp.pad(p["b_cls"], ((0, 0), (0, C_pad - C)))

    args = (x_blk, w_emb_p, p["b_emb"],
            pD, p["b1"],
            p["w1"].astype(jnp.bfloat16), p["w2"].astype(jnp.bfloat16),
            p["aff_alpha"], p["aff_beta"],
            mean_mat, w_cls_p, b_cls_p)

    in_specs = [
        pl.BlockSpec((1, M, IN_pad), lambda m: (m, 0, 0)),    # x tile (per grid step)
        pl.BlockSpec((IN_pad, D),    lambda m: (0, 0)),       # w_emb       (resident)
        pl.BlockSpec((1, D),         lambda m: (0, 0)),       # b_emb
        pl.BlockSpec((depth, 4, D),  lambda m: (0, 0, 0)),    # alpha/beta/scale/b2
        pl.BlockSpec((depth, 1, H),  lambda m: (0, 0, 0)),    # b1
        pl.BlockSpec((depth, D, H),  lambda m: (0, 0, 0)),    # w1 stack    (resident)
        pl.BlockSpec((depth, H, D),  lambda m: (0, 0, 0)),    # w2 stack    (resident)
        pl.BlockSpec((1, D),         lambda m: (0, 0)),       # aff_alpha
        pl.BlockSpec((1, D),         lambda m: (0, 0)),       # aff_beta
        pl.BlockSpec((bpb, M),       lambda m: (0, 0)),       # token-sum matrix
        pl.BlockSpec((D, C_pad),     lambda m: (0, 0)),       # w_cls (padded)
        pl.BlockSpec((1, C_pad),     lambda m: (0, 0)),       # b_cls (padded)
    ]
    out_spec = pl.BlockSpec((1, bpb, C_pad), lambda m: (m, 0, 0))

    kernel = functools.partial(_resmlp_kernel, inv_s=float(1.0 / S))

    out = pl.pallas_call(
        kernel,
        out_shape=jax.ShapeDtypeStruct((n_blk, bpb, C_pad), jnp.float32),
        grid_spec=pltpu.PrefetchScalarGridSpec(
            num_scalar_prefetch=0,
            grid=(n_blk,),
            in_specs=in_specs,
            out_specs=out_spec,
        ),
        compiler_params=pltpu.CompilerParams(
            dimension_semantics=("parallel",),
            vmem_limit_bytes=32 * 1024 * 1024,
        ),
    )(*args)

    return out.reshape(B_pad, C_pad)[:B, :C]


# --------------------------- parameters / reference ------------------------ #

def _init_eps(layer_depth):
    if layer_depth <= 18:
        return 0.1
    elif layer_depth <= 24:
        return 1e-5
    return 1e-6


def init_params(key, input_dim, dim, expansion_factor, depth, class_num):
    hidden = dim * expansion_factor
    ks = jax.random.split(key, 4)

    def linear(k, fan_in, fan_out):
        kw, kb = jax.random.split(k)
        lim = 1.0 / (fan_in ** 0.5)
        w = jax.random.uniform(kw, (fan_in, fan_out), jnp.float32, -lim, lim)
        b = jax.random.uniform(kb, (1, fan_out), jnp.float32, -lim, lim)
        return w, b

    w_emb, b_emb = linear(ks[0], input_dim, dim)

    w1s, b1s, w2s, b2s = [], [], [], []
    for i in range(depth):
        k1, k2 = jax.random.split(jax.random.fold_in(ks[1], i))
        w1, b1 = linear(k1, dim, hidden)
        w2, b2 = linear(k2, hidden, dim)
        w1s.append(w1); b1s.append(b1); w2s.append(w2); b2s.append(b2)

    w_cls, b_cls = linear(ks[2], dim, class_num)

    return {
        "w_emb": w_emb, "b_emb": b_emb,
        # PreAffinePostLayerScale params, exactly as in __init__:
        "alpha": jnp.ones((depth, 1, dim), jnp.float32),
        "beta": jnp.zeros((depth, 1, dim), jnp.float32),
        "scale": jnp.stack([jnp.full((1, dim), _init_eps(i + 1), jnp.float32)
                            for i in range(depth)]),
        "w1": jnp.stack(w1s), "b1": jnp.stack(b1s),
        "w2": jnp.stack(w2s), "b2": jnp.stack(b2s),
        "aff_alpha": jnp.ones((1, dim), jnp.float32),
        "aff_beta": jnp.zeros((1, dim), jnp.float32),
        "w_cls": w_cls, "b_cls": b_cls,
    }


def resmlp_reference(x, p):
    """Pure-JAX f32 reference with exact (erf) GELU, matching the PyTorch module."""
    y = x @ p["w_emb"] + p["b_emb"]
    for l in range(p["w1"].shape[0]):
        a = y * p["alpha"][l] + p["beta"][l]
        h = jax.nn.gelu(a @ p["w1"][l] + p["b1"][l], approximate=False)
        f = h @ p["w2"][l] + p["b2"][l]
        y = f * p["scale"][l] + y
    y = y * p["aff_alpha"] + p["aff_beta"]
    m = jnp.mean(y, axis=1)
    return m @ p["w_cls"] + p["b_cls"]


# ----------------------------------- main ----------------------------------- #

if __name__ == "__main__":
    B, S = 2, 8
    INPUT, DIM, EXPANSION, DEPTH, CLASS_NUM = 32, 128, 4, 3, 18

    key = jax.random.PRNGKey(0)
    kx, kp = jax.random.split(key)
    x = jax.random.normal(kx, (B, S, INPUT), jnp.float32)
    params = init_params(kp, INPUT, DIM, EXPANSION, DEPTH, CLASS_NUM)

    out = jax.block_until_ready(jax.jit(resmlp_forward)(x, params))
    ref = resmlp_reference(x, params)

    assert out.shape == (B, CLASS_NUM), out.shape
    # bf16 matmul inputs (f32 accumulation) vs. the f32 reference -> loosen tolerance.
    if not jnp.allclose(out, ref, atol=3e-2, rtol=3e-2):
        raise AssertionError(f"mismatch: max abs diff = {jnp.max(jnp.abs(out - ref))}")

    print("KERNEL_OK")
</pallas_src>

<mosaic_0001>
module attributes {stable_mosaic.version = 11 : i64} {
  func.func @_resmlp_kernel(%arg0: i32, %arg1: memref<1x16x128xbf16, #tpu.memory_space<vmem>>, %arg2: memref<128x128xbf16, #tpu.memory_space<vmem>>, %arg3: memref<1x128xf32, #tpu.memory_space<vmem>>, %arg4: memref<3x4x128xf32, #tpu.memory_space<vmem>>, %arg5: memref<3x1x512xf32, #tpu.memory_space<vmem>>, %arg6: memref<3x128x512xbf16, #tpu.memory_space<vmem>>, %arg7: memref<3x512x128xbf16, #tpu.memory_space<vmem>>, %arg8: memref<1x128xf32, #tpu.memory_space<vmem>>, %arg9: memref<1x128xf32, #tpu.memory_space<vmem>>, %arg10: memref<2x16xbf16, #tpu.memory_space<vmem>>, %arg11: memref<128x128xbf16, #tpu.memory_space<vmem>>, %arg12: memref<1x128xf32, #tpu.memory_space<vmem>>, %arg13: memref<1x2x128xf32, #tpu.memory_space<vmem>>) attributes {dimension_semantics = [#tpu.dimension_semantics<parallel>], iteration_bounds = array<i64: 1>, scalar_prefetch = 0 : i64, scratch_operands = 0 : i64, tpu.core_type = #tpu.core_type<tc>, window_params = [{transform_indices = @transform_0, window_bounds = array<i64: 1, 16, 128>}, {pipeline_mode = #tpu.pipeline_mode<synchronous>, transform_indices = @transform_1, window_bounds = array<i64: 128, 128>}, {pipeline_mode = #tpu.pipeline_mode<synchronous>, transform_indices = @transform_2, window_bounds = array<i64: 1, 128>}, {pipeline_mode = #tpu.pipeline_mode<synchronous>, transform_indices = @transform_3, window_bounds = array<i64: 3, 4, 128>}, {pipeline_mode = #tpu.pipeline_mode<synchronous>, transform_indices = @transform_4, window_bounds = array<i64: 3, 1, 512>}, {pipeline_mode = #tpu.pipeline_mode<synchronous>, transform_indices = @transform_5, window_bounds = array<i64: 3, 128, 512>}, {pipeline_mode = #tpu.pipeline_mode<synchronous>, transform_indices = @transform_6, window_bounds = array<i64: 3, 512, 128>}, {pipeline_mode = #tpu.pipeline_mode<synchronous>, transform_indices = @transform_7, window_bounds = array<i64: 1, 128>}, {pipeline_mode = #tpu.pipeline_mode<synchronous>, transform_indices = @transform_8, window_bounds = array<i64: 1, 128>}, {pipeline_mode = #tpu.pipeline_mode<synchronous>, transform_indices = @transform_9, window_bounds = array<i64: 2, 16>}, {pipeline_mode = #tpu.pipeline_mode<synchronous>, transform_indices = @transform_10, window_bounds = array<i64: 128, 128>}, {pipeline_mode = #tpu.pipeline_mode<synchronous>, transform_indices = @transform_11, window_bounds = array<i64: 1, 128>}, {transform_indices = @transform_12, window_bounds = array<i64: 1, 2, 128>}]} {
    %c0 = arith.constant 0 : index
    %c0_0 = arith.constant 0 : index
    %c0_1 = arith.constant 0 : index
    %0 = vector.load %arg1[%c0, %c0_0, %c0_1] : memref<1x16x128xbf16, #tpu.memory_space<vmem>>, vector<1x16x128xbf16>
    %1 = vector.shape_cast %0 : vector<1x16x128xbf16> to vector<16x128xbf16>
    %c0_2 = arith.constant 0 : index
    %c0_3 = arith.constant 0 : index
    %2 = vector.load %arg2[%c0_2, %c0_3] : memref<128x128xbf16, #tpu.memory_space<vmem>>, vector<128x128xbf16>
    %cst = arith.constant dense<0.000000e+00> : vector<16x128xf32>
    %3 = tpu.matmul %1, %2, %cst {dimension_numbers = #tpu.dot_dimension_numbers<[1], [0], [0], [1], [0, 0, 1, 1], [], []>} : vector<16x128xbf16>, vector<128x128xbf16>, vector<16x128xf32> -> vector<16x128xf32>
    %c0_4 = arith.constant 0 : index
    %c0_5 = arith.constant 0 : index
    %4 = vector.load %arg3[%c0_4, %c0_5] : memref<1x128xf32, #tpu.memory_space<vmem>>, vector<1x128xf32>
    %5 = vector.broadcast %4 : vector<1x128xf32> to vector<16x128xf32>
    %6 = arith.addf %3, %5 : vector<16x128xf32>
    %c0_i32 = arith.constant 0 : i32
    %7 = arith.index_cast %c0_i32 : i32 to index
    %c0_6 = arith.constant 0 : index
    %c0_7 = arith.constant 0 : index
    %8 = vector.load %arg4[%7, %c0_6, %c0_7] : memref<3x4x128xf32, #tpu.memory_space<vmem>>, vector<1x4x128xf32>
    %9 = vector.shape_cast %8 : vector<1x4x128xf32> to vector<4x128xf32>
    %10 = vector.extract_strided_slice %9 {offsets = [0, 0], sizes = [1, 128], strides = [1, 1]} : vector<4x128xf32> to vector<1x128xf32>
    %11 = vector.broadcast %10 : vector<1x128xf32> to vector<16x128xf32>
    %12 = arith.mulf %6, %11 : vector<16x128xf32>
    %13 = vector.extract_strided_slice %9 {offsets = [1, 0], sizes = [1, 128], strides = [1, 1]} : vector<4x128xf32> to vector<1x128xf32>
    %14 = vector.broadcast %13 : vector<1x128xf32> to vector<16x128xf32>
    %15 = arith.addf %12, %14 : vector<16x128xf32>
    %16 = arith.truncf %15 : vector<16x128xf32> to vector<16x128xbf16>
    %17 = arith.index_cast %c0_i32 : i32 to index
    %c0_8 = arith.constant 0 : index
    %c0_9 = arith.constant 0 : index
    %18 = vector.load %arg6[%17, %c0_8, %c0_9] : memref<3x128x512xbf16, #tpu.memory_space<vmem>>, vector<1x128x512xbf16>
    %19 = vector.shape_cast %18 : vector<1x128x512xbf16> to vector<128x512xbf16>
    %cst_10 = arith.constant dense<0.000000e+00> : vector<16x512xf32>
    %20 = tpu.matmul %16, %19, %cst_10 {dimension_numbers = #tpu.dot_dimension_numbers<[1], [0], [0], [1], [0, 0, 1, 1], [], []>} : vector<16x128xbf16>, vector<128x512xbf16>, vector<16x512xf32> -> vector<16x512xf32>
    %21 = arith.index_cast %c0_i32 : i32 to index
    %c0_11 = arith.constant 0 : index
    %c0_12 = arith.constant 0 : index
    %22 = vector.load %arg5[%21, %c0_11, %c0_12] : memref<3x1x512xf32, #tpu.memory_space<vmem>>, vector<1x1x512xf32>
    %23 = vector.shape_cast %22 : vector<1x1x512xf32> to vector<1x512xf32>
    %24 = vector.broadcast %23 : vector<1x512xf32> to vector<16x512xf32>
    %25 = arith.addf %20, %24 : vector<16x512xf32>
    %cst_13 = arith.constant 5.000000e-01 : f32
    %26 = vector.broadcast %cst_13 : f32 to vector<16x512xf32>
    %27 = arith.mulf %26, %25 : vector<16x512xf32>
    %cst_14 = arith.constant 0.707106769 : f32
    %28 = vector.broadcast %cst_14 : f32 to vector<16x512xf32>
    %29 = arith.mulf %25, %28 : vector<16x512xf32>
    %cst_15 = arith.constant -4.000000e+00 : f32
    %cst_16 = arith.constant 4.000000e+00 : f32
    %30 = vector.broadcast %cst_15 : f32 to vector<16x512xf32>
    %31 = arith.maximumf %30, %29 : vector<16x512xf32>
    %32 = vector.broadcast %cst_16 : f32 to vector<16x512xf32>
    %33 = arith.minimumf %32, %31 : vector<16x512xf32>
    %34 = arith.mulf %33, %33 : vector<16x512xf32>
    %cst_17 = arith.constant -2.72614237E-10 : f32
    %35 = vector.broadcast %cst_17 : f32 to vector<16x512xf32>
    %36 = arith.mulf %34, %35 : vector<16x512xf32>
    %cst_18 = arith.constant 2.77068146E-8 : f32
    %37 = vector.broadcast %cst_18 : f32 to vector<16x512xf32>
    %38 = arith.addf %36, %37 : vector<16x512xf32>
    %39 = arith.mulf %34, %38 : vector<16x512xf32>
    %cst_19 = arith.constant -2.10102394E-6 : f32
    %40 = vector.broadcast %cst_19 : f32 to vector<16x512xf32>
    %41 = arith.addf %39, %40 : vector<16x512xf32>
    %42 = arith.mulf %34, %41 : vector<16x512xf32>
    %cst_20 = arith.constant -5.69250624E-5 : f32
    %43 = vector.broadcast %cst_20 : f32 to vector<16x512xf32>
    %44 = arith.addf %42, %43 : vector<16x512xf32>
    %45 = arith.mulf %34, %44 : vector<16x512xf32>
    %cst_21 = arith.constant -7.34990637E-4 : f32
    %46 = vector.broadcast %cst_21 : f32 to vector<16x512xf32>
    %47 = arith.addf %45, %46 : vector<16x512xf32>
    %48 = arith.mulf %34, %47 : vector<16x512xf32>
    %cst_22 = arith.constant -2.954600e-03 : f32
    %49 = vector.broadcast %cst_22 : f32 to vector<16x512xf32>
    %50 = arith.addf %48, %49 : vector<16x512xf32>
    %51 = arith.mulf %34, %50 : vector<16x512xf32>
    %cst_23 = arith.constant -0.0160960332 : f32
    %52 = vector.broadcast %cst_23 : f32 to vector<16x512xf32>
    %53 = arith.addf %51, %52 : vector<16x512xf32>
    %54 = arith.mulf %33, %53 : vector<16x512xf32>
    %cst_24 = arith.constant -1.45660715E-5 : f32
    %55 = vector.broadcast %cst_24 : f32 to vector<16x512xf32>
    %56 = arith.mulf %34, %55 : vector<16x512xf32>
    %cst_25 = arith.constant -2.13374049E-4 : f32
    %57 = vector.broadcast %cst_25 : f32 to vector<16x512xf32>
    %58 = arith.addf %56, %57 : vector<16x512xf32>
    %59 = arith.mulf %34, %58 : vector<16x512xf32>
    %cst_26 = arith.constant -0.00168282702 : f32
    %60 = vector.broadcast %cst_26 : f32 to vector<16x512xf32>
    %61 = arith.addf %59, %60 : vector<16x512xf32>
    %62 = arith.mulf %34, %61 : vector<16x512xf32>
    %cst_27 = arith.constant -0.00737332925 : f32
    %63 = vector.broadcast %cst_27 : f32 to vector<16x512xf32>
    %64 = arith.addf %62, %63 : vector<16x512xf32>
    %65 = arith.mulf %34, %64 : vector<16x512xf32>
    %cst_28 = arith.constant -0.0142647391 : f32
    %66 = vector.broadcast %cst_28 : f32 to vector<16x512xf32>
    %67 = arith.addf %65, %66 : vector<16x512xf32>
    %68 = tpu.reciprocal %67 {approx = true} : vector<16x512xf32> -> vector<16x512xf32>
    %69 = arith.mulf %54, %68 : vector<16x512xf32>
    %cst_29 = arith.constant 1.000000e+00 : f32
    %70 = vector.broadcast %cst_29 : f32 to vector<16x512xf32>
    %71 = arith.addf %70, %69 : vector<16x512xf32>
    %72 = arith.mulf %27, %71 : vector<16x512xf32>
    %73 = arith.truncf %72 : vector<16x512xf32> to vector<16x512xbf16>
    %74 = arith.index_cast %c0_i32 : i32 to index
    %c0_30 = arith.constant 0 : index
    %c0_31 = arith.constant 0 : index
    %75 = vector.load %arg7[%74, %c0_30, %c0_31] : memref<3x512x128xbf16, #tpu.memory_space<vmem>>, vector<1x512x128xbf16>
    %76 = vector.shape_cast %75 : vector<1x512x128xbf16> to vector<512x128xbf16>
    %cst_32 = arith.constant dense<0.000000e+00> : vector<16x128xf32>
    %77 = tpu.matmul %73, %76, %cst_32 {dimension_numbers = #tpu.dot_dimension_numbers<[1], [0], [0], [1], [0, 0, 1, 1], [], []>} : vector<16x512xbf16>, vector<512x128xbf16>, vector<16x128xf32> -> vector<16x128xf32>
    %78 = vector.extract_strided_slice %9 {offsets = [3, 0], sizes = [1, 128], strides = [1, 1]} : vector<4x128xf32> to vector<1x128xf32>
    %79 = vector.broadcast %78 : vector<1x128xf32> to vector<16x128xf32>
    %80 = arith.addf %77, %79 : vector<16x128xf32>
    %81 = vector.extract_strided_slice %9 {offsets = [2, 0], sizes = [1, 128], strides = [1, 1]} : vector<4x128xf32> to vector<1x128xf32>
    %82 = vector.broadcast %81 : vector<1x128xf32> to vector<16x128xf32>
    %83 = arith.mulf %80, %82 : vector<16x128xf32>
    %84 = arith.addf %83, %6 : vector<16x128xf32>
    %c1_i32 = arith.constant 1 : i32
    %85 = arith.index_cast %c1_i32 : i32 to index
    %c0_33 = arith.constant 0 : index
    %c0_34 = arith.constant 0 : index
    %86 = vector.load %arg4[%85, %c0_33, %c0_34] : memref<3x4x128xf32, #tpu.memory_space<vmem>>, vector<1x4x128xf32>
    %87 = vector.shape_cast %86 : vector<1x4x128xf32> to vector<4x128xf32>
    %88 = vector.extract_strided_slice %87 {offsets = [0, 0], sizes = [1, 128], strides = [1, 1]} : vector<4x128xf32> to vector<1x128xf32>
    %89 = vector.broadcast %88 : vector<1x128xf32> to vector<16x128xf32>
    %90 = arith.mulf %84, %89 : vector<16x128xf32>
    %91 = vector.extract_strided_slice %87 {offsets = [1, 0], sizes = [1, 128], strides = [1, 1]} : vector<4x128xf32> to vector<1x128xf32>
    %92 = vector.broadcast %91 : vector<1x128xf32> to vector<16x128xf32>
    %93 = arith.addf %90, %92 : vector<16x128xf32>
    %94 = arith.truncf %93 : vector<16x128xf32> to vector<16x128xbf16>
    %95 = arith.index_cast %c1_i32 : i32 to index
    %c0_35 = arith.constant 0 : index
    %c0_36 = arith.constant 0 : index
    %96 = vector.load %arg6[%95, %c0_35, %c0_36] : memref<3x128x512xbf16, #tpu.memory_space<vmem>>, vector<1x128x512xbf16>
    %97 = vector.shape_cast %96 : vector<1x128x512xbf16> to vector<128x512xbf16>
    %cst_37 = arith.constant dense<0.000000e+00> : vector<16x512xf32>
    %98 = tpu.matmul %94, %97, %cst_37 {dimension_numbers = #tpu.dot_dimension_numbers<[1], [0], [0], [1], [0, 0, 1, 1], [], []>} : vector<16x128xbf16>, vector<128x512xbf16>, vector<16x512xf32> -> vector<16x512xf32>
    %99 = arith.index_cast %c1_i32 : i32 to index
    %c0_38 = arith.constant 0 : index
    %c0_39 = arith.constant 0 : index
    %100 = vector.load %arg5[%99, %c0_38, %c0_39] : memref<3x1x512xf32, #tpu.memory_space<vmem>>, vector<1x1x512xf32>
    %101 = vector.shape_cast %100 : vector<1x1x512xf32> to vector<1x512xf32>
    %102 = vector.broadcast %101 : vector<1x512xf32> to vector<16x512xf32>
    %103 = arith.addf %98, %102 : vector<16x512xf32>
    %cst_40 = arith.constant 5.000000e-01 : f32
    %104 = vector.broadcast %cst_40 : f32 to vector<16x512xf32>
    %105 = arith.mulf %104, %103 : vector<16x512xf32>
    %cst_41 = arith.constant 0.707106769 : f32
    %106 = vector.broadcast %cst_41 : f32 to vector<16x512xf32>
    %107 = arith.mulf %103, %106 : vector<16x512xf32>
    %cst_42 = arith.constant -4.000000e+00 : f32
    %cst_43 = arith.constant 4.000000e+00 : f32
    %108 = vector.broadcast %cst_42 : f32 to vector<16x512xf32>
    %109 = arith.maximumf %108, %107 : vector<16x512xf32>
    %110 = vector.broadcast %cst_43 : f32 to vector<16x512xf32>
    %111 = arith.minimumf %110, %109 : vector<16x512xf32>
    %112 = arith.mulf %111, %111 : vector<16x512xf32>
    %cst_44 = arith.constant -2.72614237E-10 : f32
    %113 = vector.broadcast %cst_44 : f32 to vector<16x512xf32>
    %114 = arith.mulf %112, %113 : vector<16x512xf32>
    %cst_45 = arith.constant 2.77068146E-8 : f32
    %115 = vector.broadcast %cst_45 : f32 to vector<16x512xf32>
    %116 = arith.addf %114, %115 : vector<16x512xf32>
    %117 = arith.mulf %112, %116 : vector<16x512xf32>
    %cst_46 = arith.constant -2.10102394E-6 : f32
    %118 = vector.broadcast %cst_46 : f32 to vector<16x512xf32>
    %119 = arith.addf %117, %118 : vector<16x512xf32>
    %120 = arith.mulf %112, %119 : vector<16x512xf32>
    %cst_47 = arith.constant -5.69250624E-5 : f32
    %121 = vector.broadcast %cst_47 : f32 to vector<16x512xf32>
    %122 = arith.addf %120, %121 : vector<16x512xf32>
    %123 = arith.mulf %112, %122 : vector<16x512xf32>
    %cst_48 = arith.constant -7.34990637E-4 : f32
    %124 = vector.broadcast %cst_48 : f32 to vector<16x512xf32>
    %125 = arith.addf %123, %124 : vector<16x512xf32>
    %126 = arith.mulf %112, %125 : vector<16x512xf32>
    %cst_49 = arith.constant -2.954600e-03 : f32
    %127 = vector.broadcast %cst_49 : f32 to vector<16x512xf32>
    %128 = arith.addf %126, %127 : vector<16x512xf32>
    %129 = arith.mulf %112, %128 : vector<16x512xf32>
    %cst_50 = arith.constant -0.0160960332 : f32
    %130 = vector.broadcast %cst_50 : f32 to vector<16x512xf32>
    %131 = arith.addf %129, %130 : vector<16x512xf32>
    %132 = arith.mulf %111, %131 : vector<16x512xf32>
    %cst_51 = arith.constant -1.45660715E-5 : f32
    %133 = vector.broadcast %cst_51 : f32 to vector<16x512xf32>
    %134 = arith.mulf %112, %133 : vector<16x512xf32>
    %cst_52 = arith.constant -2.13374049E-4 : f32
    %135 = vector.broadcast %cst_52 : f32 to vector<16x512xf32>
    %136 = arith.addf %134, %135 : vector<16x512xf32>
    %137 = arith.mulf %112, %136 : vector<16x512xf32>
    %cst_53 = arith.constant -0.00168282702 : f32
    %138 = vector.broadcast %cst_53 : f32 to vector<16x512xf32>
    %139 = arith.addf %137, %138 : vector<16x512xf32>
    %140 = arith.mulf %112, %139 : vector<16x512xf32>
    %cst_54 = arith.constant -0.00737332925 : f32
    %141 = vector.broadcast %cst_54 : f32 to vector<16x512xf32>
    %142 = arith.addf %140, %141 : vector<16x512xf32>
    %143 = arith.mulf %112, %142 : vector<16x512xf32>
    %cst_55 = arith.constant -0.0142647391 : f32
    %144 = vector.broadcast %cst_55 : f32 to vector<16x512xf32>
    %145 = arith.addf %143, %144 : vector<16x512xf32>
    %146 = tpu.reciprocal %145 {approx = true} : vector<16x512xf32> -> vector<16x512xf32>
    %147 = arith.mulf %132, %146 : vector<16x512xf32>
    %cst_56 = arith.constant 1.000000e+00 : f32
    %148 = vector.broadcast %cst_56 : f32 to vector<16x512xf32>
    %149 = arith.addf %148, %147 : vector<16x512xf32>
    %150 = arith.mulf %105, %149 : vector<16x512xf32>
    %151 = arith.truncf %150 : vector<16x512xf32> to vector<16x512xbf16>
    %152 = arith.index_cast %c1_i32 : i32 to index
    %c0_57 = arith.constant 0 : index
    %c0_58 = arith.constant 0 : index
    %153 = vector.load %arg7[%152, %c0_57, %c0_58] : memref<3x512x128xbf16, #tpu.memory_space<vmem>>, vector<1x512x128xbf16>
    %154 = vector.shape_cast %153 : vector<1x512x128xbf16> to vector<512x128xbf16>
    %cst_59 = arith.constant dense<0.000000e+00> : vector<16x128xf32>
    %155 = tpu.matmul %151, %154, %cst_59 {dimension_numbers = #tpu.dot_dimension_numbers<[1], [0], [0], [1], [0, 0, 1, 1], [], []>} : vector<16x512xbf16>, vector<512x128xbf16>, vector<16x128xf32> -> vector<16x128xf32>
    %156 = vector.extract_strided_slice %87 {offsets = [3, 0], sizes = [1, 128], strides = [1, 1]} : vector<4x128xf32> to vector<1x128xf32>
    %157 = vector.broadcast %156 : vector<1x128xf32> to vector<16x128xf32>
    %158 = arith.addf %155, %157 : vector<16x128xf32>
    %159 = vector.extract_strided_slice %87 {offsets = [2, 0], sizes = [1, 128], strides = [1, 1]} : vector<4x128xf32> to vector<1x128xf32>
    %160 = vector.broadcast %159 : vector<1x128xf32> to vector<16x128xf32>
    %161 = arith.mulf %158, %160 : vector<16x128xf32>
    %162 = arith.addf %161, %84 : vector<16x128xf32>
    %c2_i32 = arith.constant 2 : i32
    %163 = arith.index_cast %c2_i32 : i32 to index
    %c0_60 = arith.constant 0 : index
    %c0_61 = arith.constant 0 : index
    %164 = vector.load %arg4[%163, %c0_60, %c0_61] : memref<3x4x128xf32, #tpu.memory_space<vmem>>, vector<1x4x128xf32>
    %165 = vector.shape_cast %164 : vector<1x4x128xf32> to vector<4x128xf32>
    %166 = vector.extract_strided_slice %165 {offsets = [0, 0], sizes = [1, 128], strides = [1, 1]} : vector<4x128xf32> to vector<1x128xf32>
    %167 = vector.broadcast %166 : vector<1x128xf32> to vector<16x128xf32>
    %168 = arith.mulf %162, %167 : vector<16x128xf32>
    %169 = vector.extract_strided_slice %165 {offsets = [1, 0], sizes = [1, 128], strides = [1, 1]} : vector<4x128xf32> to vector<1x128xf32>
    %170 = vector.broadcast %169 : vector<1x128xf32> to vector<16x128xf32>
    %171 = arith.addf %168, %170 : vector<16x128xf32>
    %172 = arith.truncf %171 : vector<16x128xf32> to vector<16x128xbf16>
    %173 = arith.index_cast %c2_i32 : i32 to index
    %c0_62 = arith.constant 0 : index
    %c0_63 = arith.constant 0 : index
    %174 = vector.load %arg6[%173, %c0_62, %c0_63] : memref<3x128x512xbf16, #tpu.memory_space<vmem>>, vector<1x128x512xbf16>
    %175 = vector.shape_cast %174 : vector<1x128x512xbf16> to vector<128x512xbf16>
    %cst_64 = arith.constant dense<0.000000e+00> : vector<16x512xf32>
    %176 = tpu.matmul %172, %175, %cst_64 {dimension_numbers = #tpu.dot_dimension_numbers<[1], [0], [0], [1], [0, 0, 1, 1], [], []>} : vector<16x128xbf16>, vector<128x512xbf16>, vector<16x512xf32> -> vector<16x512xf32>
    %177 = arith.index_cast %c2_i32 : i32 to index
    %c0_65 = arith.constant 0 : index
    %c0_66 = arith.constant 0 : index
    %178 = vector.load %arg5[%177, %c0_65, %c0_66] : memref<3x1x512xf32, #tpu.memory_space<vmem>>, vector<1x1x512xf32>
    %179 = vector.shape_cast %178 : vector<1x1x512xf32> to vector<1x512xf32>
    %180 = vector.broadcast %179 : vector<1x512xf32> to vector<16x512xf32>
    %181 = arith.addf %176, %180 : vector<16x512xf32>
    %cst_67 = arith.constant 5.000000e-01 : f32
    %182 = vector.broadcast %cst_67 : f32 to vector<16x512xf32>
    %183 = arith.mulf %182, %181 : vector<16x512xf32>
    %cst_68 = arith.constant 0.707106769 : f32
    %184 = vector.broadcast %cst_68 : f32 to vector<16x512xf32>
    %185 = arith.mulf %181, %184 : vector<16x512xf32>
    %cst_69 = arith.constant -4.000000e+00 : f32
    %cst_70 = arith.constant 4.000000e+00 : f32
    %186 = vector.broadcast %cst_69 : f32 to vector<16x512xf32>
    %187 = arith.maximumf %186, %185 : vector<16x512xf32>
    %188 = vector.broadcast %cst_70 : f32 to vector<16x512xf32>
    %189 = arith.minimumf %188, %187 : vector<16x512xf32>
    %190 = arith.mulf %189, %189 : vector<16x512xf32>
    %cst_71 = arith.constant -2.72614237E-10 : f32
    %191 = vector.broadcast %cst_71 : f32 to vector<16x512xf32>
    %192 = arith.mulf %190, %191 : vector<16x512xf32>
    %cst_72 = arith.constant 2.77068146E-8 : f32
    %193 = vector.broadcast %cst_72 : f32 to vector<16x512xf32>
    %194 = arith.addf %192, %193 : vector<16x512xf32>
    %195 = arith.mulf %190, %194 : vector<16x512xf32>
    %cst_73 = arith.constant -2.10102394E-6 : f32
    %196 = vector.broadcast %cst_73 : f32 to vector<16x512xf32>
    %197 = arith.addf %195, %196 : vector<16x512xf32>
    %198 = arith.mulf %190, %197 : vector<16x512xf32>
    %cst_74 = arith.constant -5.69250624E-5 : f32
    %199 = vector.broadcast %cst_74 : f32 to vector<16x512xf32>
    %200 = arith.addf %198, %199 : vector<16x512xf32>
    %201 = arith.mulf %190, %200 : vector<16x512xf32>
    %cst_75 = arith.constant -7.34990637E-4 : f32
    %202 = vector.broadcast %cst_75 : f32 to vector<16x512xf32>
    %203 = arith.addf %201, %202 : vector<16x512xf32>
    %204 = arith.mulf %190, %203 : vector<16x512xf32>
    %cst_76 = arith.constant -2.954600e-03 : f32
    %205 = vector.broadcast %cst_76 : f32 to vector<16x512xf32>
    %206 = arith.addf %204, %205 : vector<16x512xf32>
    %207 = arith.mulf %190, %206 : vector<16x512xf32>
    %cst_77 = arith.constant -0.0160960332 : f32
    %208 = vector.broadcast %cst_77 : f32 to vector<16x512xf32>
    %209 = arith.addf %207, %208 : vector<16x512xf32>
    %210 = arith.mulf %189, %209 : vector<16x512xf32>
    %cst_78 = arith.constant -1.45660715E-5 : f32
    %211 = vector.broadcast %cst_78 : f32 to vector<16x512xf32>
    %212 = arith.mulf %190, %211 : vector<16x512xf32>
    %cst_79 = arith.constant -2.13374049E-4 : f32
    %213 = vector.broadcast %cst_79 : f32 to vector<16x512xf32>
    %214 = arith.addf %212, %213 : vector<16x512xf32>
    %215 = arith.mulf %190, %214 : vector<16x512xf32>
    %cst_80 = arith.constant -0.00168282702 : f32
    %216 = vector.broadcast %cst_80 : f32 to vector<16x512xf32>
    %217 = arith.addf %215, %216 : vector<16x512xf32>
    %218 = arith.mulf %190, %217 : vector<16x512xf32>
    %cst_81 = arith.constant -0.00737332925 : f32
    %219 = vector.broadcast %cst_81 : f32 to vector<16x512xf32>
    %220 = arith.addf %218, %219 : vector<16x512xf32>
    %221 = arith.mulf %190, %220 : vector<16x512xf32>
    %cst_82 = arith.constant -0.0142647391 : f32
    %222 = vector.broadcast %cst_82 : f32 to vector<16x512xf32>
    %223 = arith.addf %221, %222 : vector<16x512xf32>
    %224 = tpu.reciprocal %223 {approx = true} : vector<16x512xf32> -> vector<16x512xf32>
    %225 = arith.mulf %210, %224 : vector<16x512xf32>
    %cst_83 = arith.constant 1.000000e+00 : f32
    %226 = vector.broadcast %cst_83 : f32 to vector<16x512xf32>
    %227 = arith.addf %226, %225 : vector<16x512xf32>
    %228 = arith.mulf %183, %227 : vector<16x512xf32>
    %229 = arith.truncf %228 : vector<16x512xf32> to vector<16x512xbf16>
    %230 = arith.index_cast %c2_i32 : i32 to index
    %c0_84 = arith.constant 0 : index
    %c0_85 = arith.constant 0 : index
    %231 = vector.load %arg7[%230, %c0_84, %c0_85] : memref<3x512x128xbf16, #tpu.memory_space<vmem>>, vector<1x512x128xbf16>
    %232 = vector.shape_cast %231 : vector<1x512x128xbf16> to vector<512x128xbf16>
    %cst_86 = arith.constant dense<0.000000e+00> : vector<16x128xf32>
    %233 = tpu.matmul %229, %232, %cst_86 {dimension_numbers = #tpu.dot_dimension_numbers<[1], [0], [0], [1], [0, 0, 1, 1], [], []>} : vector<16x512xbf16>, vector<512x128xbf16>, vector<16x128xf32> -> vector<16x128xf32>
    %234 = vector.extract_strided_slice %165 {offsets = [3, 0], sizes = [1, 128], strides = [1, 1]} : vector<4x128xf32> to vector<1x128xf32>
    %235 = vector.broadcast %234 : vector<1x128xf32> to vector<16x128xf32>
    %236 = arith.addf %233, %235 : vector<16x128xf32>
    %237 = vector.extract_strided_slice %165 {offsets = [2, 0], sizes = [1, 128], strides = [1, 1]} : vector<4x128xf32> to vector<1x128xf32>
    %238 = vector.broadcast %237 : vector<1x128xf32> to vector<16x128xf32>
    %239 = arith.mulf %236, %238 : vector<16x128xf32>
    %240 = arith.addf %239, %162 : vector<16x128xf32>
    %c3_i32 = arith.constant 3 : i32
    %c0_87 = arith.constant 0 : index
    %c0_88 = arith.constant 0 : index
    %241 = vector.load %arg8[%c0_87, %c0_88] : memref<1x128xf32, #tpu.memory_space<vmem>>, vector<1x128xf32>
    %242 = vector.broadcast %241 : vector<1x128xf32> to vector<16x128xf32>
    %243 = arith.mulf %240, %242 : vector<16x128xf32>
    %c0_89 = arith.constant 0 : index
    %c0_90 = arith.constant 0 : index
    %244 = vector.load %arg9[%c0_89, %c0_90] : memref<1x128xf32, #tpu.memory_space<vmem>>, vector<1x128xf32>
    %245 = vector.broadcast %244 : vector<1x128xf32> to vector<16x128xf32>
    %246 = arith.addf %243, %245 : vector<16x128xf32>
    %247 = arith.truncf %246 : vector<16x128xf32> to vector<16x128xbf16>
    %c0_91 = arith.constant 0 : index
    %c0_92 = arith.constant 0 : index
    %248 = vector.load %arg10[%c0_91, %c0_92] : memref<2x16xbf16, #tpu.memory_space<vmem>>, vector<2x16xbf16>
    %cst_93 = arith.constant dense<0.000000e+00> : vector<2x128xf32>
    %249 = tpu.matmul %248, %247, %cst_93 {dimension_numbers = #tpu.dot_dimension_numbers<[1], [0], [0], [1], [0, 0, 1, 1], [], []>} : vector<2x16xbf16>, vector<16x128xbf16>, vector<2x128xf32> -> vector<2x128xf32>
    %cst_94 = arith.constant 1.250000e-01 : f32
    %250 = vector.broadcast %cst_94 : f32 to vector<2x128xf32>
    %251 = arith.mulf %249, %250 : vector<2x128xf32>
    %252 = arith.truncf %251 : vector<2x128xf32> to vector<2x128xbf16>
    %c0_95 = arith.constant 0 : index
    %c0_96 = arith.constant 0 : index
    %253 = vector.load %arg11[%c0_95, %c0_96] : memref<128x128xbf16, #tpu.memory_space<vmem>>, vector<128x128xbf16>
    %cst_97 = arith.constant dense<0.000000e+00> : vector<2x128xf32>
    %254 = tpu.matmul %252, %253, %cst_97 {dimension_numbers = #tpu.dot_dimension_numbers<[1], [0], [0], [1], [0, 0, 1, 1], [], []>} : vector<2x128xbf16>, vector<128x128xbf16>, vector<2x128xf32> -> vector<2x128xf32>
    %c0_98 = arith.constant 0 : index
    %c0_99 = arith.constant 0 : index
    %255 = vector.load %arg12[%c0_98, %c0_99] : memref<1x128xf32, #tpu.memory_space<vmem>>, vector<1x128xf32>
    %256 = vector.broadcast %255 : vector<1x128xf32> to vector<2x128xf32>
    %257 = arith.addf %254, %256 : vector<2x128xf32>
    %c0_100 = arith.constant 0 : index
    %c0_101 = arith.constant 0 : index
    %c0_102 = arith.constant 0 : index
    %258 = vector.load %arg13[%c0_100, %c0_101, %c0_102] : memref<1x2x128xf32, #tpu.memory_space<vmem>>, vector<1x2x128xf32>
    %259 = vector.shape_cast %258 : vector<1x2x128xf32> to vector<2x128xf32>
    %260 = vector.shape_cast %257 : vector<2x128xf32> to vector<1x2x128xf32>
    tpu.vector_store %arg13[%c0_100, %c0_101, %c0_102], %260 {strides = array<i32>} : memref<1x2x128xf32, #tpu.memory_space<vmem>>, vector<1x2x128xf32>,
    return
  }
  func.func @transform_0(%arg0: i32) -> (i32, i32, i32) {
    %c0_i32 = arith.constant 0 : i32
    %c0_i32_0 = arith.constant 0 : i32
    %c0_i32_1 = arith.constant 0 : i32
    return %arg0, %c0_i32, %c0_i32_0 : i32, i32, i32
  }
  func.func @transform_1(%arg0: i32) -> (i32, i32) {
    %c0_i32 = arith.constant 0 : i32
    %c0_i32_0 = arith.constant 0 : i32
    %c0_i32_1 = arith.constant 0 : i32
    return %c0_i32, %c0_i32_0 : i32, i32
  }
  func.func @transform_2(%arg0: i32) -> (i32, i32) {
    %c0_i32 = arith.constant 0 : i32
    %c0_i32_0 = arith.constant 0 : i32
    %c0_i32_1 = arith.constant 0 : i32
    return %c0_i32, %c0_i32_0 : i32, i32
  }
  func.func @transform_3(%arg0: i32) -> (i32, i32, i32) {
    %c0_i32 = arith.constant 0 : i32
    %c0_i32_0 = arith.constant 0 : i32
    %c0_i32_1 = arith.constant 0 : i32
    %c0_i32_2 = arith.constant 0 : i32
    return %c0_i32, %c0_i32_0, %c0_i32_1 : i32, i32, i32
  }
  func.func @transform_4(%arg0: i32) -> (i32, i32, i32) {
    %c0_i32 = arith.constant 0 : i32
    %c0_i32_0 = arith.constant 0 : i32
    %c0_i32_1 = arith.constant 0 : i32
    %c0_i32_2 = arith.constant 0 : i32
    return %c0_i32, %c0_i32_0, %c0_i32_1 : i32, i32, i32
  }
  func.func @transform_5(%arg0: i32) -> (i32, i32, i32) {
    %c0_i32 = arith.constant 0 : i32
    %c0_i32_0 = arith.constant 0 : i32
    %c0_i32_1 = arith.constant 0 : i32
    %c0_i32_2 = arith.constant 0 : i32
    return %c0_i32, %c0_i32_0, %c0_i32_1 : i32, i32, i32
  }
  func.func @transform_6(%arg0: i32) -> (i32, i32, i32) {
    %c0_i32 = arith.constant 0 : i32
    %c0_i32_0 = arith.constant 0 : i32
    %c0_i32_1 = arith.constant 0 : i32
    %c0_i32_2 = arith.constant 0 : i32
    return %c0_i32, %c0_i32_0, %c0_i32_1 : i32, i32, i32
  }
  func.func @transform_7(%arg0: i32) -> (i32, i32) {
    %c0_i32 = arith.constant 0 : i32
    %c0_i32_0 = arith.constant 0 : i32
    %c0_i32_1 = arith.constant 0 : i32
    return %c0_i32, %c0_i32_0 : i32, i32
  }
  func.func @transform_8(%arg0: i32) -> (i32, i32) {
    %c0_i32 = arith.constant 0 : i32
    %c0_i32_0 = arith.constant 0 : i32
    %c0_i32_1 = arith.constant 0 : i32
    return %c0_i32, %c0_i32_0 : i32, i32
  }
  func.func @transform_9(%arg0: i32) -> (i32, i32) {
    %c0_i32 = arith.constant 0 : i32
    %c0_i32_0 = arith.constant 0 : i32
    %c0_i32_1 = arith.constant 0 : i32
    return %c0_i32, %c0_i32_0 : i32, i32
  }
  func.func @transform_10(%arg0: i32) -> (i32, i32) {
    %c0_i32 = arith.constant 0 : i32
    %c0_i32_0 = arith.constant 0 : i32
    %c0_i32_1 = arith.constant 0 : i32
    return %c0_i32, %c0_i32_0 : i32, i32
  }
  func.func @transform_11(%arg0: i32) -> (i32, i32) {
    %c0_i32 = arith.constant 0 : i32
    %c0_i32_0 = arith.constant 0 : i32
    %c0_i32_1 = arith.constant 0 : i32
    return %c0_i32, %c0_i32_0 : i32, i32
  }
  func.func @transform_12(%arg0: i32) -> (i32, i32, i32) {
    %c0_i32 = arith.constant 0 : i32
    %c0_i32_0 = arith.constant 0 : i32
    %c0_i32_1 = arith.constant 0 : i32
    return %arg0, %c0_i32, %c0_i32_0 : i32, i32, i32
  }
}

</mosaic_0001>

<llo_original>
// kernel: resmlp_forward.1
$region0: #{resmlp_forward.1}
  #allocation0 [shape = 'u32[]', space=smem, size = 0x4, offset = 0x4, fixed_abs, tag = 'smem constant byte address 0x4 - core index']
  #allocation1 [shape = 'u32[144,128]{1,0:T(1,128)}', space=vmem, size = 0x12000, scoped, tag = 'internal scratch']
  %s0 = inlined_call_operand.vmem [shape: bf16[1,16,128], index: 0, kind: input, shape index: {}]
  %s1 = inlined_call_operand.vmem [shape: bf16[128,128], index: 1, kind: input, shape index: {}]
  %s2 = inlined_call_operand.vmem [shape: f32[1,128], index: 2, kind: input, shape index: {}]
  %s3 = inlined_call_operand.vmem [shape: f32[3,4,128], index: 3, kind: input, shape index: {}]
  %s4 = inlined_call_operand.vmem [shape: f32[3,1,512], index: 4, kind: input, shape index: {}]
  %s5 = inlined_call_operand.vmem [shape: bf16[3,128,512], index: 5, kind: input, shape index: {}]
  %s6 = inlined_call_operand.vmem [shape: bf16[3,512,128], index: 6, kind: input, shape index: {}]
  %s7 = inlined_call_operand.vmem [shape: f32[1,128], index: 7, kind: input, shape index: {}]
  %s8 = inlined_call_operand.vmem [shape: f32[1,128], index: 8, kind: input, shape index: {}]
  %s9 = inlined_call_operand.vmem [shape: bf16[2,16], index: 9, kind: input, shape index: {}]
  %s10 = inlined_call_operand.vmem [shape: bf16[128,128], index: 10, kind: input, shape index: {}]
  %s11 = inlined_call_operand.vmem [shape: f32[1,128], index: 11, kind: input, shape index: {}]
  %s12 = inlined_call_operand.hbm [shape: f32[1,2,128], index: 12, kind: output, shape index: {}]
  %s13 = sld [smem:[#allocation0]]
  $region58: #{resmlp_forward.1} parent=0
    _
  %s15 = ssub.s32 1, %s13
  %s16 = scalar_select 0, %s15, %s13
  $region1: #{resmlp_forward.1} parent=0
    #allocation2 [shape = 'u8[1024]{0}', space=vmem, size = 0x400, scoped, tag = 'output window, operand 0, single buffered']
    #allocation3 [shape = 's32[1]{0}', space=sflag, size = 0x4, scoped, tag = 'scoped memory for resmlp_forward.1']
    %17 = vsyncpa [#allocation3], 0
    // Predicated region
    $region2: #{resmlp_forward.1} parent=1 // pred_check
      _
    $region3: #{resmlp_forward.1} parent=1 // pred_check_branch
      %19 = sbr.rel (0) target = $region5
    $region4: #{resmlp_forward.1} parent=1 // pred_region
      _
    $region5: #{resmlp_forward.1} parent=1 // pred_fallthru
      _
    // Predicated region
    $region6: #{resmlp_forward.1} parent=1 // pred_check
      _
    $region7: #{resmlp_forward.1} parent=1 // pred_check_branch
      %21 = sbr.rel (0) target = $region9
    $region8: #{resmlp_forward.1} parent=1 // pred_region
      _
    $region9: #{resmlp_forward.1} parent=1 // pred_fallthru
      _
    // Predicated region
    $region10: #{resmlp_forward.1} parent=1 // pred_check
      _
    $region11: #{resmlp_forward.1} parent=1 // pred_check_branch
      %23 = sbr.rel (0) target = $region13
    $region12: #{resmlp_forward.1} parent=1 // pred_region
      _
    $region13: #{resmlp_forward.1} parent=1 // pred_fallthru
      _
    // Predicated region
    $region14: #{resmlp_forward.1} parent=1 // pred_check
      _
    $region15: #{resmlp_forward.1} parent=1 // pred_check_branch
      %25 = sbr.rel (0) target = $region17
    $region16: #{resmlp_forward.1} parent=1 // pred_region
      _
    $region17: #{resmlp_forward.1} parent=1 // pred_fallthru
      _
    // Predicated region
    $region18: #{resmlp_forward.1} parent=1 // pred_check
      _
    $region19: #{resmlp_forward.1} parent=1 // pred_check_branch
      %27 = sbr.rel (0) target = $region21
    $region20: #{resmlp_forward.1} parent=1 // pred_region
      _
    $region21: #{resmlp_forward.1} parent=1 // pred_fallthru
      _
    // Predicated region
    $region22: #{resmlp_forward.1} parent=1 // pred_check
      _
    $region23: #{resmlp_forward.1} parent=1 // pred_check_branch
      %29 = sbr.rel (0) target = $region25
    $region24: #{resmlp_forward.1} parent=1 // pred_region
      _
    $region25: #{resmlp_forward.1} parent=1 // pred_fallthru
      _
    // Predicated region
    $region26: #{resmlp_forward.1} parent=1 // pred_check
      _
    $region27: #{resmlp_forward.1} parent=1 // pred_check_branch
      %31 = sbr.rel (0) target = $region29
    $region28: #{resmlp_forward.1} parent=1 // pred_region
      _
    $region29: #{resmlp_forward.1} parent=1 // pred_fallthru
      _
    // Predicated region
    $region30: #{resmlp_forward.1} parent=1 // pred_check
      _
    $region31: #{resmlp_forward.1} parent=1 // pred_check_branch
      %33 = sbr.rel (0) target = $region33
    $region32: #{resmlp_forward.1} parent=1 // pred_region
      _
    $region33: #{resmlp_forward.1} parent=1 // pred_fallthru
      _
    // Predicated region
    $region34: #{resmlp_forward.1} parent=1 // pred_check
      _
    $region35: #{resmlp_forward.1} parent=1 // pred_check_branch
      %35 = sbr.rel (0) target = $region37
    $region36: #{resmlp_forward.1} parent=1 // pred_region
      _
    $region37: #{resmlp_forward.1} parent=1 // pred_fallthru
      _
    // Predicated region
    $region38: #{resmlp_forward.1} parent=1 // pred_check
      _
    $region39: #{resmlp_forward.1} parent=1 // pred_check_branch
      %37 = sbr.rel (0) target = $region41
    $region40: #{resmlp_forward.1} parent=1 // pred_region
      _
    $region41: #{resmlp_forward.1} parent=1 // pred_fallthru
      _
    // Predicated region
    $region42: #{resmlp_forward.1} parent=1 // pred_check
      _
    $region43: #{resmlp_forward.1} parent=1 // pred_check_branch
      %39 = sbr.rel (0) target = $region45
    $region44: #{resmlp_forward.1} parent=1 // pred_region
      _
    $region45: #{resmlp_forward.1} parent=1 // pred_fallthru
      _
    // Predicated region
    $region46: #{resmlp_forward.1} parent=1 // pred_check
      _
    $region47: #{resmlp_forward.1} parent=1 // pred_check_branch
      %41 = sbr.rel (0) target = $region49
    $region48: #{resmlp_forward.1} parent=1 // pred_region
      _
    $region49: #{resmlp_forward.1} parent=1 // pred_fallthru
      _
    %v43 = vld [vmem:[%s0] sm:$0xf]
    %v44 = vld [vmem:[%s0 + $0x4] sm:$0xf]
    %v45 = vld [vmem:[%s1] sm:$0xf]
    %v46 = vld [vmem:[%s1 + $0x4] sm:$0xf]
    %v47 = vld [vmem:[%s1 + $0x8] sm:$0xf]
    %v48 = vld [vmem:[%s1 + $0xc] sm:$0xf]
    %v49 = vld [vmem:[%s1 + $0x10] sm:$0xf]
    %v50 = vld [vmem:[%s1 + $0x14] sm:$0xf]
    %v51 = vld [vmem:[%s1 + $0x18] sm:$0xf]
    %v52 = vld [vmem:[%s1 + $0x1c] sm:$0xf]
    %v53 = vld [vmem:[%s1 + $0x20] sm:$0xf]
    %v54 = vld [vmem:[%s1 + $0x24] sm:$0xf]
    %v55 = vld [vmem:[%s1 + $0x28] sm:$0xf]
    %v56 = vld [vmem:[%s1 + $0x2c] sm:$0xf]
    %v57 = vld [vmem:[%s1 + $0x30] sm:$0xf]
    %v58 = vld [vmem:[%s1 + $0x34] sm:$0xf]
    %v59 = vld [vmem:[%s1 + $0x38] sm:$0xf]
    %v60 = vld [vmem:[%s1 + $0x3c] sm:$0xf]
    %v61 = vld [vmem:[%s2] sm:$0x1]
    %v63 = vlaneseq
    %v64 = vshrl.u32 %v63, 7
    %v65 = vsub.s32 0, %v64
    %v66 = vrot.slane %v61, %v65
    %v70 = vunpack.c.l.b16 %v43
    %v71 = vunpack.c.l.b16 %v44
    %v72 = vpack.c.b16 %v71, %v70
    %v90 = vunpack.c.l.b16 %v45
    %v91 = vunpack.c.l.b16 %v46
    %v92 = vunpack.c.l.b16 %v47
    %v93 = vunpack.c.l.b16 %v48
    %v94 = vunpack.c.l.b16 %v49
    %v95 = vunpack.c.l.b16 %v50
    %v96 = vunpack.c.l.b16 %v51
    %v97 = vunpack.c.l.b16 %v52
    %v98 = vunpack.c.l.b16 %v53
    %v99 = vunpack.c.l.b16 %v54
    %v100 = vunpack.c.l.b16 %v55
    %v101 = vunpack.c.l.b16 %v56
    %v102 = vunpack.c.l.b16 %v57
    %v103 = vunpack.c.l.b16 %v58
    %v104 = vunpack.c.l.b16 %v59
    %v105 = vunpack.c.l.b16 %v60
    %v106 = vpack.c.b16 %v91, %v90
    %v107 = vpack.c.b16 %v93, %v92
    %v108 = vpack.c.b16 %v95, %v94
    %v109 = vpack.c.b16 %v97, %v96
    %v110 = vpack.c.b16 %v99, %v98
    %v111 = vpack.c.b16 %v101, %v100
    %v112 = vpack.c.b16 %v103, %v102
    %v113 = vpack.c.b16 %v105, %v104
    %122 = vmatprep.subr.bf16.mxu0 0
    %123 = vmatpush1.bf16.msra.mxu0 %v113
    %124 = vmatprep.subr.bf16.mxu0 0
    %125 = vmatpush1.bf16.msra.mxu0 %v112
    %126 = vmatprep.subr.bf16.mxu0 0
    %127 = vmatpush1.bf16.msra.mxu0 %v111
    %128 = vmatprep.subr.bf16.mxu0 0
    %129 = vmatpush1.bf16.msra.mxu0 %v110
    %130 = vmatprep.subr.bf16.mxu0 0
    %131 = vmatpush1.bf16.msra.mxu0 %v109
    %132 = vmatprep.subr.bf16.mxu0 0
    %133 = vmatpush1.bf16.msra.mxu0 %v108
    %134 = vmatprep.subr.bf16.mxu0 0
    %135 = vmatpush1.bf16.msra.mxu0 %v107
    %136 = vmatprep.subr.bf16.mxu0 0
    %137 = vmatpush1.bf16.msra.mxu0 %v106
    %138 = vmatprep.subr.bf16.mxu0 0
    %139 = vmatpush2.bf16.msra.mxu0 0
    %140 = vmatprep.subr.bf16.mxu0 0
    %141 = vmatpush2.bf16.msra.mxu0 0
    %142 = vmatprep.subr.bf16.mxu0 0
    %143 = vmatpush2.bf16.msra.mxu0 0
    %144 = vmatprep.subr.bf16.mxu0 0
    %145 = vmatpush2.bf16.msra.mxu0 0
    %146 = vmatprep.subr.bf16.mxu0 0
    %147 = vmatpush2.bf16.msra.mxu0 0
    %148 = vmatprep.subr.bf16.mxu0 0
    %149 = vmatpush2.bf16.msra.mxu0 0
    %150 = vmatprep.subr.bf16.mxu0 0
    %151 = vmatpush2.bf16.msra.mxu0 0
    %152 = vmatprep.subr.bf16.mxu0 0
    %153 = vmatpush2.bf16.msra.mxu0 0
    %154 = vmatprep.mubr.bf16.mxu0 0
    %155 = vmatmul.mubr.bf16.gmra.mxu0 %v72
    %v156 = vpop.f32.mrf.mxu0
    %v157 = vadd.f32 %v66, %v156
    %v158 = vpop.f32.mrf.mxu0
    %v159 = vpop.f32.mrf.mxu0
    %v160 = vadd.f32 %v66, %v159
    %v161 = vpop.f32.mrf.mxu0
    %162 = vdwg.mxu0
    %v163 = vld [vmem:[%s3] sm:$0xf]
    %v164 = vlaneseq
    %v165 = vshrl.u32 %v164, 7
    %v166 = vsub.s32 0, %v165
    %v167 = vrot.slane %v163, %v166
    %v168 = vmul.f32 %v157, %v167
    %v169 = vmul.f32 %v160, %v167
    %v170 = vlaneseq
    %v171 = vshrl.u32 %v170, 7
    %v172 = vsub.s32 1, %v171
    %v173 = vrot.slane %v163, %v172
    %v174 = vadd.f32 %v168, %v173
    %v175 = vadd.f32 %v169, %v173
    %v176 = vpack.c.bf16 %v175, %v174
    %v177 = vld [vmem:[%s5] sm:$0xff]
    %v178 = vld [vmem:[%s5 + $0x8] sm:$0xff]
    %v179 = vld [vmem:[%s5 + $0x10] sm:$0xff]
    %v180 = vld [vmem:[%s5 + $0x18] sm:$0xff]
    %v181 = vld [vmem:[%s5 + $0x20] sm:$0xff]
    %v182 = vld [vmem:[%s5 + $0x28] sm:$0xff]
    %v183 = vld [vmem:[%s5 + $0x30] sm:$0xff]
    %v184 = vld [vmem:[%s5 + $0x38] sm:$0xff]
    %v185 = vld [vmem:[%s5 + $0x40] sm:$0xff]
    %v186 = vld [vmem:[%s5 + $0x48] sm:$0xff]
    %v187 = vld [vmem:[%s5 + $0x50] sm:$0xff]
    %v188 = vld [vmem:[%s5 + $0x58] sm:$0xff]
    %v189 = vld [vmem:[%s5 + $0x60] sm:$0xff]
    %v190 = vld [vmem:[%s5 + $0x68] sm:$0xff]
    %v191 = vld [vmem:[%s5 + $0x70] sm:$0xff]
    %v192 = vld [vmem:[%s5 + $0x78] sm:$0xff]
    %v193 = vld [vmem:[%s5 + $0x80] sm:$0xff]
    %v194 = vld [vmem:[%s5 + $0x88] sm:$0xff]
    %v195 = vld [vmem:[%s5 + $0x90] sm:$0xff]
    %v196 = vld [vmem:[%s5 + $0x98] sm:$0xff]
    %v197 = vld [vmem:[%s5 + $0xa0] sm:$0xff]
    %v198 = vld [vmem:[%s5 + $0xa8] sm:$0xff]
    %v199 = vld [vmem:[%s5 + $0xb0] sm:$0xff]
    %v200 = vld [vmem:[%s5 + $0xb8] sm:$0xff]
    %v201 = vld [vmem:[%s5 + $0xc0] sm:$0xff]
    %v202 = vld [vmem:[%s5 + $0xc8] sm:$0xff]
    %v203 = vld [vmem:[%s5 + $0xd0] sm:$0xff]
    %v204 = vld [vmem:[%s5 + $0xd8] sm:$0xff]
    %v205 = vld [vmem:[%s5 + $0xe0] sm:$0xff]
    %v206 = vld [vmem:[%s5 + $0xe8] sm:$0xff]
    %v207 = vld [vmem:[%s5 + $0xf0] sm:$0xff]
    %v208 = vld [vmem:[%s5 + $0xf8] sm:$0xff]
    %v209 = vld [vmem:[%s4] sm:$0xf]
    %v211 = vlaneseq
    %v212 = vshrl.u32 %v211, 7
    %v213 = vsub.s32 0, %v212
    %v214 = vrot.slane %v209, %v213
    %v215 = vlaneseq
    %v216 = vshrl.u32 %v215, 7
    %v217 = vsub.s32 1, %v216
    %v218 = vrot.slane %v209, %v217
    %v219 = vlaneseq
    %v220 = vshrl.u32 %v219, 7
    %v221 = vsub.s32 2, %v220
    %v222 = vrot.slane %v209, %v221
    %v223 = vlaneseq
    %v224 = vshrl.u32 %v223, 7
    %v225 = vsub.s32 3, %v224
    %v226 = vrot.slane %v209, %v225
    %v263 = vunpack.c.l.b16 %v177
    %v264 = vunpack.c.h.b16 %v177
    %v265 = vunpack.c.l.b16 %v178
    %v266 = vunpack.c.h.b16 %v178
    %v267 = vunpack.c.l.b16 %v179
    %v268 = vunpack.c.h.b16 %v179
    %v269 = vunpack.c.l.b16 %v180
    %v270 = vunpack.c.h.b16 %v180
    %v271 = vunpack.c.l.b16 %v181
    %v272 = vunpack.c.h.b16 %v181
    %v273 = vunpack.c.l.b16 %v182
    %v274 = vunpack.c.h.b16 %v182
    %v275 = vunpack.c.l.b16 %v183
    %v276 = vunpack.c.h.b16 %v183
    %v277 = vunpack.c.l.b16 %v184
    %v278 = vunpack.c.h.b16 %v184
    %v279 = vunpack.c.l.b16 %v185
    %v280 = vunpack.c.h.b16 %v185
    %v281 = vunpack.c.l.b16 %v186
    %v282 = vunpack.c.h.b16 %v186
    %v283 = vunpack.c.l.b16 %v187
    %v284 = vunpack.c.h.b16 %v187
    %v285 = vunpack.c.l.b16 %v188
    %v286 = vunpack.c.h.b16 %v188
    %v287 = vunpack.c.l.b16 %v189
    %v288 = vunpack.c.h.b16 %v189
    %v289 = vunpack.c.l.b16 %v190
    %v290 = vunpack.c.h.b16 %v190
    %v291 = vunpack.c.l.b16 %v191
    %v292 = vunpack.c.h.b16 %v191
    %v293 = vunpack.c.l.b16 %v192
    %v294 = vunpack.c.h.b16 %v192
    %v295 = vunpack.c.l.b16 %v193
    %v296 = vunpack.c.h.b16 %v193
    %v297 = vunpack.c.l.b16 %v194
    %v298 = vunpack.c.h.b16 %v194
    %v299 = vunpack.c.l.b16 %v195
    %v300 = vunpack.c.h.b16 %v195
    %v301 = vunpack.c.l.b16 %v196
    %v302 = vunpack.c.h.b16 %v196
    %v303 = vunpack.c.l.b16 %v197
    %v304 = vunpack.c.h.b16 %v197
    %v305 = vunpack.c.l.b16 %v198
    %v306 = vunpack.c.h.b16 %v198
    %v307 = vunpack.c.l.b16 %v199
    %v308 = vunpack.c.h.b16 %v199
    %v309 = vunpack.c.l.b16 %v200
    %v310 = vunpack.c.h.b16 %v200
    %v311 = vunpack.c.l.b16 %v201
    %v312 = vunpack.c.h.b16 %v201
    %v313 = vunpack.c.l.b16 %v202
    %v314 = vunpack.c.h.b16 %v202
    %v315 = vunpack.c.l.b16 %v203
    %v316 = vunpack.c.h.b16 %v203
    %v317 = vunpack.c.l.b16 %v204
    %v318 = vunpack.c.h.b16 %v204
    %v319 = vunpack.c.l.b16 %v205
    %v320 = vunpack.c.h.b16 %v205
    %v321 = vunpack.c.l.b16 %v206
    %v322 = vunpack.c.h.b16 %v206
    %v323 = vunpack.c.l.b16 %v207
    %v324 = vunpack.c.h.b16 %v207
    %v325 = vunpack.c.l.b16 %v208
    %v326 = vunpack.c.h.b16 %v208
    %v327 = vpack.c.b16 %v267, %v263
    %v328 = vpack.c.b16 %v268, %v264
    %v329 = vpack.c.b16 %v269, %v265
    %v330 = vpack.c.b16 %v270, %v266
    %v331 = vpack.c.b16 %v275, %v271
    %v332 = vpack.c.b16 %v276, %v272
    %v333 = vpack.c.b16 %v277, %v273
    %v334 = vpack.c.b16 %v278, %v274
    %v335 = vpack.c.b16 %v283, %v279
    %v336 = vpack.c.b16 %v284, %v280
    %v337 = vpack.c.b16 %v285, %v281
    %v338 = vpack.c.b16 %v286, %v282
    %v339 = vpack.c.b16 %v291, %v287
    %v340 = vpack.c.b16 %v292, %v288
    %v341 = vpack.c.b16 %v293, %v289
    %v342 = vpack.c.b16 %v294, %v290
    %v343 = vpack.c.b16 %v299, %v295
    %v344 = vpack.c.b16 %v300, %v296
    %v345 = vpack.c.b16 %v301, %v297
    %v346 = vpack.c.b16 %v302, %v298
    %v347 = vpack.c.b16 %v307, %v303
    %v348 = vpack.c.b16 %v308, %v304
    %v349 = vpack.c.b16 %v309, %v305
    %v350 = vpack.c.b16 %v310, %v306
    %v351 = vpack.c.b16 %v315, %v311
    %v352 = vpack.c.b16 %v316, %v312
    %v353 = vpack.c.b16 %v317, %v313
    %v354 = vpack.c.b16 %v318, %v314
    %v355 = vpack.c.b16 %v323, %v319
    %v356 = vpack.c.b16 %v324, %v320
    %v357 = vpack.c.b16 %v325, %v321
    %v358 = vpack.c.b16 %v326, %v322
    %391 = vmatprep.subr.bf16.mxu0 %v356
    %392 = vmatpush1.bf16.msra.mxu0 %v355
    %393 = vmatprep.subr.bf16.mxu0 %v352
    %394 = vmatpush1.bf16.msra.mxu0 %v351
    %395 = vmatprep.subr.bf16.mxu0 %v348
    %396 = vmatpush1.bf16.msra.mxu0 %v347
    %397 = vmatprep.subr.bf16.mxu0 %v344
    %398 = vmatpush1.bf16.msra.mxu0 %v343
    %399 = vmatprep.subr.bf16.mxu0 %v340
    %400 = vmatpush1.bf16.msra.mxu0 %v339
    %401 = vmatprep.subr.bf16.mxu0 %v336
    %402 = vmatpush1.bf16.msra.mxu0 %v335
    %403 = vmatprep.subr.bf16.mxu0 %v332
    %404 = vmatpush1.bf16.msra.mxu0 %v331
    %405 = vmatprep.subr.bf16.mxu0 %v328
    %406 = vmatpush1.bf16.msra.mxu0 %v327
    %407 = vmatprep.subr.bf16.mxu0 0
    %408 = vmatpush2.bf16.msra.mxu0 0
    %409 = vmatprep.subr.bf16.mxu0 0
    %410 = vmatpush2.bf16.msra.mxu0 0
    %411 = vmatprep.subr.bf16.mxu0 0
    %412 = vmatpush2.bf16.msra.mxu0 0
    %413 = vmatprep.subr.bf16.mxu0 0
    %414 = vmatpush2.bf16.msra.mxu0 0
    %415 = vmatprep.subr.bf16.mxu0 0
    %416 = vmatpush2.bf16.msra.mxu0 0
    %417 = vmatprep.subr.bf16.mxu0 0
    %418 = vmatpush2.bf16.msra.mxu0 0
    %419 = vmatprep.subr.bf16.mxu0 0
    %420 = vmatpush2.bf16.msra.mxu0 0
    %421 = vmatprep.subr.bf16.mxu0 0
    %422 = vmatpush2.bf16.msra.mxu0 0
    %423 = vmatprep.mubr.bf16.mxu0 0
    %424 = vmatmul.mubr.bf16.gmra.mxu0 %v176
    %v425 = vpop.f32.mrf.mxu0
    %v426 = vadd.f32 %v214, %v425
    %v427 = vpop.f32.mrf.mxu0
    %v428 = vadd.f32 %v218, %v427
    %v429 = vpop.f32.mrf.mxu0
    %v430 = vadd.f32 %v214, %v429
    %v431 = vpop.f32.mrf.mxu0
    %v432 = vadd.f32 %v218, %v431
    %433 = vdwg.mxu0
    %434 = vmatprep.subr.bf16.mxu0 %v358
    %435 = vmatpush1.bf16.msra.mxu0 %v357
    %436 = vmatprep.subr.bf16.mxu0 %v354
    %437 = vmatpush1.bf16.msra.mxu0 %v353
    %438 = vmatprep.subr.bf16.mxu0 %v350
    %439 = vmatpush1.bf16.msra.mxu0 %v349
    %440 = vmatprep.subr.bf16.mxu0 %v346
    %441 = vmatpush1.bf16.msra.mxu0 %v345
    %442 = vmatprep.subr.bf16.mxu0 %v342
    %443 = vmatpush1.bf16.msra.mxu0 %v341
    %444 = vmatprep.subr.bf16.mxu0 %v338
    %445 = vmatpush1.bf16.msra.mxu0 %v337
    %446 = vmatprep.subr.bf16.mxu0 %v334
    %447 = vmatpush1.bf16.msra.mxu0 %v333
    %448 = vmatprep.subr.bf16.mxu0 %v330
    %449 = vmatpush1.bf16.msra.mxu0 %v329
    %450 = vmatprep.subr.bf16.mxu0 0
    %451 = vmatpush2.bf16.msra.mxu0 0
    %452 = vmatprep.subr.bf16.mxu0 0
    %453 = vmatpush2.bf16.msra.mxu0 0
    %454 = vmatprep.subr.bf16.mxu0 0
    %455 = vmatpush2.bf16.msra.mxu0 0
    %456 = vmatprep.subr.bf16.mxu0 0
    %457 = vmatpush2.bf16.msra.mxu0 0
    %458 = vmatprep.subr.bf16.mxu0 0
    %459 = vmatpush2.bf16.msra.mxu0 0
    %460 = vmatprep.subr.bf16.mxu0 0
    %461 = vmatpush2.bf16.msra.mxu0 0
    %462 = vmatprep.subr.bf16.mxu0 0
    %463 = vmatpush2.bf16.msra.mxu0 0
    %464 = vmatprep.subr.bf16.mxu0 0
    %465 = vmatpush2.bf16.msra.mxu0 0
    %466 = vmatprep.mubr.bf16.mxu0 0
    %467 = vmatmul.mubr.bf16.gmra.mxu0 %v176
    %v468 = vpop.f32.mrf.mxu0
    %v469 = vadd.f32 %v222, %v468
    %v470 = vpop.f32.mrf.mxu0
    %v471 = vadd.f32 %v226, %v470
    %v472 = vpop.f32.mrf.mxu0
    %v473 = vadd.f32 %v222, %v472
    %v474 = vpop.f32.mrf.mxu0
    %v475 = vadd.f32 %v226, %v474
    %476 = vdwg.mxu0
    %v477 = vmul.f32 %v426, 0.5
    %v478 = vmul.f32 %v428, 0.5
    %v479 = vmul.f32 %v469, 0.5
    %v480 = vmul.f32 %v471, 0.5
    %v481 = vmul.f32 %v430, 0.5
    %v482 = vmul.f32 %v432, 0.5
    %v483 = vmul.f32 %v473, 0.5
    %v484 = vmul.f32 %v475, 0.5
    %v485 = vmul.f32 %v426, 0.70710677
    %v486 = vmul.f32 %v428, 0.70710677
    %v487 = vmul.f32 %v469, 0.70710677
    %v488 = vmul.f32 %v471, 0.70710677
    %v489 = vmul.f32 %v430, 0.70710677
    %v490 = vmul.f32 %v432, 0.70710677
    %v491 = vmul.f32 %v473, 0.70710677
    %v492 = vmul.f32 %v475, 0.70710677
    %v493 = vmax.f32 %v485, -4.0
    %v494 = vmax.f32 %v486, -4.0
    %v495 = vmax.f32 %v487, -4.0
    %v496 = vmax.f32 %v488, -4.0
    %v497 = vmax.f32 %v489, -4.0
    %v498 = vmax.f32 %v490, -4.0
    %v499 = vmax.f32 %v491, -4.0
    %v500 = vmax.f32 %v492, -4.0
    %v501 = vmin.f32 %v493, 4.0
    %v502 = vmin.f32 %v494, 4.0
    %v503 = vmin.f32 %v495, 4.0
    %v504 = vmin.f32 %v496, 4.0
    %v505 = vmin.f32 %v497, 4.0
    %v506 = vmin.f32 %v498, 4.0
    %v507 = vmin.f32 %v499, 4.0
    %v508 = vmin.f32 %v500, 4.0
    %v509 = vmul.f32 %v501, %v501
    %v510 = vmul.f32 %v502, %v502
    %v511 = vmul.f32 %v503, %v503
    %v512 = vmul.f32 %v504, %v504
    %v513 = vmul.f32 %v505, %v505
    %v514 = vmul.f32 %v506, %v506
    %v515 = vmul.f32 %v507, %v507
    %v516 = vmul.f32 %v508, %v508
    %v517 = vmul.f32 %v509, -2.7261424e-10
    %v518 = vmul.f32 %v510, -2.7261424e-10
    %v519 = vmul.f32 %v511, -2.7261424e-10
    %v520 = vmul.f32 %v512, -2.7261424e-10
    %v521 = vmul.f32 %v513, -2.7261424e-10
    %v522 = vmul.f32 %v514, -2.7261424e-10
    %v523 = vmul.f32 %v515, -2.7261424e-10
    %v524 = vmul.f32 %v516, -2.7261424e-10
    %v525 = vadd.f32 %v517, 2.7706815e-08
    %v526 = vadd.f32 %v518, 2.7706815e-08
    %v527 = vadd.f32 %v519, 2.7706815e-08
    %v528 = vadd.f32 %v520, 2.7706815e-08
    %v529 = vadd.f32 %v521, 2.7706815e-08
    %v530 = vadd.f32 %v522, 2.7706815e-08
    %v531 = vadd.f32 %v523, 2.7706815e-08
    %v532 = vadd.f32 %v524, 2.7706815e-08
    %v533 = vmul.f32 %v509, %v525
    %v534 = vmul.f32 %v510, %v526
    %v535 = vmul.f32 %v511, %v527
    %v536 = vmul.f32 %v512, %v528
    %v537 = vmul.f32 %v513, %v529
    %v538 = vmul.f32 %v514, %v530
    %v539 = vmul.f32 %v515, %v531
    %v540 = vmul.f32 %v516, %v532
    %v541 = vadd.f32 %v533, -2.101024e-06
    %v542 = vadd.f32 %v534, -2.101024e-06
    %v543 = vadd.f32 %v535, -2.101024e-06
    %v544 = vadd.f32 %v536, -2.101024e-06
    %v545 = vadd.f32 %v537, -2.101024e-06
    %v546 = vadd.f32 %v538, -2.101024e-06
    %v547 = vadd.f32 %v539, -2.101024e-06
    %v548 = vadd.f32 %v540, -2.101024e-06
    %v549 = vmul.f32 %v509, %v541
    %v550 = vmul.f32 %v510, %v542
    %v551 = vmul.f32 %v511, %v543
    %v552 = vmul.f32 %v512, %v544
    %v553 = vmul.f32 %v513, %v545
    %v554 = vmul.f32 %v514, %v546
    %v555 = vmul.f32 %v515, %v547
    %v556 = vmul.f32 %v516, %v548
    %v557 = vadd.f32 %v549, -5.6925062e-05
    %v558 = vadd.f32 %v550, -5.6925062e-05
    %v559 = vadd.f32 %v551, -5.6925062e-05
    %v560 = vadd.f32 %v552, -5.6925062e-05
    %v561 = vadd.f32 %v553, -5.6925062e-05
    %v562 = vadd.f32 %v554, -5.6925062e-05
    %v563 = vadd.f32 %v555, -5.6925062e-05
    %v564 = vadd.f32 %v556, -5.6925062e-05
    %v565 = vmul.f32 %v509, %v557
    %v566 = vmul.f32 %v510, %v558
    %v567 = vmul.f32 %v511, %v559
    %v568 = vmul.f32 %v512, %v560
    %v569 = vmul.f32 %v513, %v561
    %v570 = vmul.f32 %v514, %v562
    %v571 = vmul.f32 %v515, %v563
    %v572 = vmul.f32 %v516, %v564
    %v573 = vadd.f32 %v565, -0.00073499064
    %v574 = vadd.f32 %v566, -0.00073499064
    %v575 = vadd.f32 %v567, -0.00073499064
    %v576 = vadd.f32 %v568, -0.00073499064
    %v577 = vadd.f32 %v569, -0.00073499064
    %v578 = vadd.f32 %v570, -0.00073499064
    %v579 = vadd.f32 %v571, -0.00073499064
    %v580 = vadd.f32 %v572, -0.00073499064
    %v581 = vmul.f32 %v509, %v573
    %v582 = vmul.f32 %v510, %v574
    %v583 = vmul.f32 %v511, %v575
    %v584 = vmul.f32 %v512, %v576
    %v585 = vmul.f32 %v513, %v577
    %v586 = vmul.f32 %v514, %v578
    %v587 = vmul.f32 %v515, %v579
    %v588 = vmul.f32 %v516, %v580
    %v589 = vadd.f32 %v581, -0.0029546
    %v590 = vadd.f32 %v582, -0.0029546
    %v591 = vadd.f32 %v583, -0.0029546
    %v592 = vadd.f32 %v584, -0.0029546
    %v593 = vadd.f32 %v585, -0.0029546
    %v594 = vadd.f32 %v586, -0.0029546
    %v595 = vadd.f32 %v587, -0.0029546
    %v596 = vadd.f32 %v588, -0.0029546
    %v597 = vmul.f32 %v509, %v589
    %v598 = vmul.f32 %v510, %v590
    %v599 = vmul.f32 %v511, %v591
    %v600 = vmul.f32 %v512, %v592
    %v601 = vmul.f32 %v513, %v593
    %v602 = vmul.f32 %v514, %v594
    %v603 = vmul.f32 %v515, %v595
    %v604 = vmul.f32 %v516, %v596
    %v605 = vadd.f32 %v597, -0.016096033
    %v606 = vadd.f32 %v598, -0.016096033
    %v607 = vadd.f32 %v599, -0.016096033
    %v608 = vadd.f32 %v600, -0.016096033
    %v609 = vadd.f32 %v601, -0.016096033
    %v610 = vadd.f32 %v602, -0.016096033
    %v611 = vadd.f32 %v603, -0.016096033
    %v612 = vadd.f32 %v604, -0.016096033
    %v613 = vmul.f32 %v501, %v605
    %v614 = vmul.f32 %v502, %v606
    %v615 = vmul.f32 %v503, %v607
    %v616 = vmul.f32 %v504, %v608
    %v617 = vmul.f32 %v505, %v609
    %v618 = vmul.f32 %v506, %v610
    %v619 = vmul.f32 %v507, %v611
    %v620 = vmul.f32 %v508, %v612
    %v621 = vmul.f32 %v509, -1.45660715e-05
    %v622 = vmul.f32 %v510, -1.45660715e-05
    %v623 = vmul.f32 %v511, -1.45660715e-05
    %v624 = vmul.f32 %v512, -1.45660715e-05
    %v625 = vmul.f32 %v513, -1.45660715e-05
    %v626 = vmul.f32 %v514, -1.45660715e-05
    %v627 = vmul.f32 %v515, -1.45660715e-05
    %v628 = vmul.f32 %v516, -1.45660715e-05
    %v629 = vadd.f32 %v621, -0.00021337405
    %v630 = vadd.f32 %v622, -0.00021337405
    %v631 = vadd.f32 %v623, -0.00021337405
    %v632 = vadd.f32 %v624, -0.00021337405
    %v633 = vadd.f32 %v625, -0.00021337405
    %v634 = vadd.f32 %v626, -0.00021337405
    %v635 = vadd.f32 %v627, -0.00021337405
    %v636 = vadd.f32 %v628, -0.00021337405
    %v637 = vmul.f32 %v509, %v629
    %v638 = vmul.f32 %v510, %v630
    %v639 = vmul.f32 %v511, %v631
    %v640 = vmul.f32 %v512, %v632
    %v641 = vmul.f32 %v513, %v633
    %v642 = vmul.f32 %v514, %v634
    %v643 = vmul.f32 %v515, %v635
    %v644 = vmul.f32 %v516, %v636
    %v645 = vadd.f32 %v637, -0.001682827
    %v646 = vadd.f32 %v638, -0.001682827
    %v647 = vadd.f32 %v639, -0.001682827
    %v648 = vadd.f32 %v640, -0.001682827
    %v649 = vadd.f32 %v641, -0.001682827
    %v650 = vadd.f32 %v642, -0.001682827
    %v651 = vadd.f32 %v643, -0.001682827
    %v652 = vadd.f32 %v644, -0.001682827
    %v653 = vmul.f32 %v509, %v645
    %v654 = vmul.f32 %v510, %v646
    %v655 = vmul.f32 %v511, %v647
    %v656 = vmul.f32 %v512, %v648
    %v657 = vmul.f32 %v513, %v649
    %v658 = vmul.f32 %v514, %v650
    %v659 = vmul.f32 %v515, %v651
    %v660 = vmul.f32 %v516, %v652
    %v661 = vadd.f32 %v653, -0.0073733293
    %v662 = vadd.f32 %v654, -0.0073733293
    %v663 = vadd.f32 %v655, -0.0073733293
    %v664 = vadd.f32 %v656, -0.0073733293
    %v665 = vadd.f32 %v657, -0.0073733293
    %v666 = vadd.f32 %v658, -0.0073733293
    %v667 = vadd.f32 %v659, -0.0073733293
    %v668 = vadd.f32 %v660, -0.0073733293
    %v669 = vmul.f32 %v509, %v661
    %v670 = vmul.f32 %v510, %v662
    %v671 = vmul.f32 %v511, %v663
    %v672 = vmul.f32 %v512, %v664
    %v673 = vmul.f32 %v513, %v665
    %v674 = vmul.f32 %v514, %v666
    %v675 = vmul.f32 %v515, %v667
    %v676 = vmul.f32 %v516, %v668
    %v677 = vadd.f32 %v669, -0.014264739
    %v678 = vadd.f32 %v670, -0.014264739
    %v679 = vadd.f32 %v671, -0.014264739
    %v680 = vadd.f32 %v672, -0.014264739
    %v681 = vadd.f32 %v673, -0.014264739
    %v682 = vadd.f32 %v674, -0.014264739
    %v683 = vadd.f32 %v675, -0.014264739
    %v684 = vadd.f32 %v676, -0.014264739
    %v685 = vrcp.pop %v677
    %v686 = vrcp.pop %v678
    %v687 = vrcp.pop %v679
    %v688 = vrcp.pop %v680
    %v689 = vrcp.pop %v681
    %v690 = vrcp.pop %v682
    %v691 = vrcp.pop %v683
    %v692 = vrcp.pop %v684
    %v693 = vmul.f32 %v613, %v685
    %v694 = vmul.f32 %v614, %v686
    %v695 = vmul.f32 %v615, %v687
    %v696 = vmul.f32 %v616, %v688
    %v697 = vmul.f32 %v617, %v689
    %v698 = vmul.f32 %v618, %v690
    %v699 = vmul.f32 %v619, %v691
    %v700 = vmul.f32 %v620, %v692
    %v701 = vadd.f32 %v693, 1.0
    %v702 = vadd.f32 %v694, 1.0
    %v703 = vadd.f32 %v695, 1.0
    %v704 = vadd.f32 %v696, 1.0
    %v705 = vadd.f32 %v697, 1.0
    %v706 = vadd.f32 %v698, 1.0
    %v707 = vadd.f32 %v699, 1.0
    %v708 = vadd.f32 %v700, 1.0
    %v709 = vmul.f32 %v477, %v701
    %v710 = vmul.f32 %v478, %v702
    %v711 = vmul.f32 %v479, %v703
    %v712 = vmul.f32 %v480, %v704
    %v713 = vmul.f32 %v481, %v705
    %v714 = vmul.f32 %v482, %v706
    %v715 = vmul.f32 %v483, %v707
    %v716 = vmul.f32 %v484, %v708
    %v717 = vpack.c.bf16 %v713, %v709
    %v718 = vpack.c.bf16 %v714, %v710
    %v719 = vpack.c.bf16 %v715, %v711
    %v720 = vpack.c.bf16 %v716, %v712
    %v721 = vld [vmem:[%s6] sm:$0xf]
    %v722 = vld [vmem:[%s6 + $0x4] sm:$0xf]
    %v723 = vld [vmem:[%s6 + $0x8] sm:$0xf]
    %v724 = vld [vmem:[%s6 + $0xc] sm:$0xf]
    %v725 = vld [vmem:[%s6 + $0x10] sm:$0xf]
    %v726 = vld [vmem:[%s6 + $0x14] sm:$0xf]
    %v727 = vld [vmem:[%s6 + $0x18] sm:$0xf]
    %v728 = vld [vmem:[%s6 + $0x1c] sm:$0xf]
    %v729 = vld [vmem:[%s6 + $0x20] sm:$0xf]
    %v730 = vld [vmem:[%s6 + $0x24] sm:$0xf]
    %v731 = vld [vmem:[%s6 + $0x28] sm:$0xf]
    %v732 = vld [vmem:[%s6 + $0x2c] sm:$0xf]
    %v733 = vld [vmem:[%s6 + $0x30] sm:$0xf]
    %v734 = vld [vmem:[%s6 + $0x34] sm:$0xf]
    %v735 = vld [vmem:[%s6 + $0x38] sm:$0xf]
    %v736 = vld [vmem:[%s6 + $0x3c] sm:$0xf]
    %v737 = vld [vmem:[%s6 + $0x40] sm:$0xf]
    %v738 = vld [vmem:[%s6 + $0x44] sm:$0xf]
    %v739 = vld [vmem:[%s6 + $0x48] sm:$0xf]
    %v740 = vld [vmem:[%s6 + $0x4c] sm:$0xf]
    %v741 = vld [vmem:[%s6 + $0x50] sm:$0xf]
    %v742 = vld [vmem:[%s6 + $0x54] sm:$0xf]
    %v743 = vld [vmem:[%s6 + $0x58] sm:$0xf]
    %v744 = vld [vmem:[%s6 + $0x5c] sm:$0xf]
    %v745 = vld [vmem:[%s6 + $0x60] sm:$0xf]
    %v746 = vld [vmem:[%s6 + $0x64] sm:$0xf]
    %v747 = vld [vmem:[%s6 + $0x68] sm:$0xf]
    %v748 = vld [vmem:[%s6 + $0x6c] sm:$0xf]
    %v749 = vld [vmem:[%s6 + $0x70] sm:$0xf]
    %v750 = vld [vmem:[%s6 + $0x74] sm:$0xf]
    %v751 = vld [vmem:[%s6 + $0x78] sm:$0xf]
    %v752 = vld [vmem:[%s6 + $0x7c] sm:$0xf]
    %v753 = vld [vmem:[%s6 + $0x80] sm:$0xf]
    %v754 = vld [vmem:[%s6 + $0x84] sm:$0xf]
    %v755 = vld [vmem:[%s6 + $0x88] sm:$0xf]
    %v756 = vld [vmem:[%s6 + $0x8c] sm:$0xf]
    %v757 = vld [vmem:[%s6 + $0x90] sm:$0xf]
    %v758 = vld [vmem:[%s6 + $0x94] sm:$0xf]
    %v759 = vld [vmem:[%s6 + $0x98] sm:$0xf]
    %v760 = vld [vmem:[%s6 + $0x9c] sm:$0xf]
    %v761 = vld [vmem:[%s6 + $0xa0] sm:$0xf]
    %v762 = vld [vmem:[%s6 + $0xa4] sm:$0xf]
    %v763 = vld [vmem:[%s6 + $0xa8] sm:$0xf]
    %v764 = vld [vmem:[%s6 + $0xac] sm:$0xf]
    %v765 = vld [vmem:[%s6 + $0xb0] sm:$0xf]
    %v766 = vld [vmem:[%s6 + $0xb4] sm:$0xf]
    %v767 = vld [vmem:[%s6 + $0xb8] sm:$0xf]
    %v768 = vld [vmem:[%s6 + $0xbc] sm:$0xf]
    %v769 = vld [vmem:[%s6 + $0xc0] sm:$0xf]
    %v770 = vld [vmem:[%s6 + $0xc4] sm:$0xf]
    %v771 = vld [vmem:[%s6 + $0xc8] sm:$0xf]
    %v772 = vld [vmem:[%s6 + $0xcc] sm:$0xf]
    %v773 = vld [vmem:[%s6 + $0xd0] sm:$0xf]
    %v774 = vld [vmem:[%s6 + $0xd4] sm:$0xf]
    %v775 = vld [vmem:[%s6 + $0xd8] sm:$0xf]
    %v776 = vld [vmem:[%s6 + $0xdc] sm:$0xf]
    %v777 = vld [vmem:[%s6 + $0xe0] sm:$0xf]
    %v778 = vld [vmem:[%s6 + $0xe4] sm:$0xf]
    %v779 = vld [vmem:[%s6 + $0xe8] sm:$0xf]
    %v780 = vld [vmem:[%s6 + $0xec] sm:$0xf]
    %v781 = vld [vmem:[%s6 + $0xf0] sm:$0xf]
    %v782 = vld [vmem:[%s6 + $0xf4] sm:$0xf]
    %v783 = vld [vmem:[%s6 + $0xf8] sm:$0xf]
    %v784 = vld [vmem:[%s6 + $0xfc] sm:$0xf]
    %v785 = vlaneseq
    %v786 = vshrl.u32 %v785, 7
    %v787 = vsub.s32 3, %v786
    %v788 = vrot.slane %v163, %v787
    %v853 = vunpack.c.l.b16 %v721
    %v854 = vunpack.c.l.b16 %v722
    %v855 = vunpack.c.l.b16 %v723
    %v856 = vunpack.c.l.b16 %v724
    %v857 = vunpack.c.l.b16 %v725
    %v858 = vunpack.c.l.b16 %v726
    %v859 = vunpack.c.l.b16 %v727
    %v860 = vunpack.c.l.b16 %v728
    %v861 = vunpack.c.l.b16 %v729
    %v862 = vunpack.c.l.b16 %v730
    %v863 = vunpack.c.l.b16 %v731
    %v864 = vunpack.c.l.b16 %v732
    %v865 = vunpack.c.l.b16 %v733
    %v866 = vunpack.c.l.b16 %v734
    %v867 = vunpack.c.l.b16 %v735
    %v868 = vunpack.c.l.b16 %v736
    %v869 = vunpack.c.l.b16 %v737
    %v870 = vunpack.c.l.b16 %v738
    %v871 = vunpack.c.l.b16 %v739
    %v872 = vunpack.c.l.b16 %v740
    %v873 = vunpack.c.l.b16 %v741
    %v874 = vunpack.c.l.b16 %v742
    %v875 = vunpack.c.l.b16 %v743
    %v876 = vunpack.c.l.b16 %v744
    %v877 = vunpack.c.l.b16 %v745
    %v878 = vunpack.c.l.b16 %v746
    %v879 = vunpack.c.l.b16 %v747
    %v880 = vunpack.c.l.b16 %v748
    %v881 = vunpack.c.l.b16 %v749
    %v882 = vunpack.c.l.b16 %v750
    %v883 = vunpack.c.l.b16 %v751
    %v884 = vunpack.c.l.b16 %v752
    %v885 = vunpack.c.l.b16 %v753
    %v886 = vunpack.c.l.b16 %v754
    %v887 = vunpack.c.l.b16 %v755
    %v888 = vunpack.c.l.b16 %v756
    %v889 = vunpack.c.l.b16 %v757
    %v890 = vunpack.c.l.b16 %v758
    %v891 = vunpack.c.l.b16 %v759
    %v892 = vunpack.c.l.b16 %v760
    %v893 = vunpack.c.l.b16 %v761
    %v894 = vunpack.c.l.b16 %v762
    %v895 = vunpack.c.l.b16 %v763
    %v896 = vunpack.c.l.b16 %v764
    %v897 = vunpack.c.l.b16 %v765
    %v898 = vunpack.c.l.b16 %v766
    %v899 = vunpack.c.l.b16 %v767
    %v900 = vunpack.c.l.b16 %v768
    %v901 = vunpack.c.l.b16 %v769
    %v902 = vunpack.c.l.b16 %v770
    %v903 = vunpack.c.l.b16 %v771
    %v904 = vunpack.c.l.b16 %v772
    %v905 = vunpack.c.l.b16 %v773
    %v906 = vunpack.c.l.b16 %v774
    %v907 = vunpack.c.l.b16 %v775
    %v908 = vunpack.c.l.b16 %v776
    %v909 = vunpack.c.l.b16 %v777
    %v910 = vunpack.c.l.b16 %v778
    %v911 = vunpack.c.l.b16 %v779
    %v912 = vunpack.c.l.b16 %v780
    %v913 = vunpack.c.l.b16 %v781
    %v914 = vunpack.c.l.b16 %v782
    %v915 = vunpack.c.l.b16 %v783
    %v916 = vunpack.c.l.b16 %v784
    %v917 = vpack.c.b16 %v854, %v853
    %v918 = vpack.c.b16 %v856, %v855
    %v919 = vpack.c.b16 %v858, %v857
    %v920 = vpack.c.b16 %v860, %v859
    %v921 = vpack.c.b16 %v862, %v861
    %v922 = vpack.c.b16 %v864, %v863
    %v923 = vpack.c.b16 %v866, %v865
    %v924 = vpack.c.b16 %v868, %v867
    %v925 = vpack.c.b16 %v870, %v869
    %v926 = vpack.c.b16 %v872, %v871
    %v927 = vpack.c.b16 %v874, %v873
    %v928 = vpack.c.b16 %v876, %v875
    %v929 = vpack.c.b16 %v878, %v877
    %v930 = vpack.c.b16 %v880, %v879
    %v931 = vpack.c.b16 %v882, %v881
    %v932 = vpack.c.b16 %v884, %v883
    %v933 = vpack.c.b16 %v886, %v885
    %v934 = vpack.c.b16 %v888, %v887
    %v935 = vpack.c.b16 %v890, %v889
    %v936 = vpack.c.b16 %v892, %v891
    %v937 = vpack.c.b16 %v894, %v893
    %v938 = vpack.c.b16 %v896, %v895
    %v939 = vpack.c.b16 %v898, %v897
    %v940 = vpack.c.b16 %v900, %v899
    %v941 = vpack.c.b16 %v902, %v901
    %v942 = vpack.c.b16 %v904, %v903
    %v943 = vpack.c.b16 %v906, %v905
    %v944 = vpack.c.b16 %v908, %v907
    %v945 = vpack.c.b16 %v910, %v909
    %v946 = vpack.c.b16 %v912, %v911
    %v947 = vpack.c.b16 %v914, %v913
    %v948 = vpack.c.b16 %v916, %v915
    %981 = vmatprep.subr.bf16.mxu0 0
    %982 = vmatpush1.bf16.msra.mxu0 %v924
    %983 = vmatprep.subr.bf16.mxu0 0
    %984 = vmatpush1.bf16.msra.mxu0 %v923
    %985 = vmatprep.subr.bf16.mxu0 0
    %986 = vmatpush1.bf16.msra.mxu0 %v922
    %987 = vmatprep.subr.bf16.mxu0 0
    %988 = vmatpush1.bf16.msra.mxu0 %v921
    %989 = vmatprep.subr.bf16.mxu0 0
    %990 = vmatpush1.bf16.msra.mxu0 %v920
    %991 = vmatprep.subr.bf16.mxu0 0
    %992 = vmatpush1.bf16.msra.mxu0 %v919
    %993 = vmatprep.subr.bf16.mxu0 0
    %994 = vmatpush1.bf16.msra.mxu0 %v918
    %995 = vmatprep.subr.bf16.mxu0 0
    %996 = vmatpush1.bf16.msra.mxu0 %v917
    %997 = vmatprep.subr.bf16.mxu0 0
    %998 = vmatpush2.bf16.msra.mxu0 %v932
    %999 = vmatprep.subr.bf16.mxu0 0
    %1000 = vmatpush2.bf16.msra.mxu0 %v931
    %1001 = vmatprep.subr.bf16.mxu0 0
    %1002 = vmatpush2.bf16.msra.mxu0 %v930
    %1003 = vmatprep.subr.bf16.mxu0 0
    %1004 = vmatpush2.bf16.msra.mxu0 %v929
    %1005 = vmatprep.subr.bf16.mxu0 0
    %1006 = vmatpush2.bf16.msra.mxu0 %v928
    %1007 = vmatprep.subr.bf16.mxu0 0
    %1008 = vmatpush2.bf16.msra.mxu0 %v927
    %1009 = vmatprep.subr.bf16.mxu0 0
    %1010 = vmatpush2.bf16.msra.mxu0 %v926
    %1011 = vmatprep.subr.bf16.mxu0 0
    %1012 = vmatpush2.bf16.msra.mxu0 %v925
    %1013 = vmatprep.mubr.bf16.mxu0 %v718
    %1014 = vmatmul.mubr.bf16.gmra.mxu0 %v717
    %v1015 = vpop.f32.mrf.mxu0
    %v1016 = vadd.f32 %v788, %v1015
    %v1017 = vpop.f32.mrf.mxu0
    %v1018 = vpop.f32.mrf.mxu0
    %v1019 = vadd.f32 %v788, %v1018
    %v1020 = vpop.f32.mrf.mxu0
    %1021 = vdwg.mxu0
    %1022 = vmatprep.subr.bf16.mxu0 0
    %1023 = vmatpush1.bf16.msra.mxu0 %v940
    %1024 = vmatprep.subr.bf16.mxu0 0
    %1025 = vmatpush1.bf16.msra.mxu0 %v939
    %1026 = vmatprep.subr.bf16.mxu0 0
    %1027 = vmatpush1.bf16.msra.mxu0 %v938
    %1028 = vmatprep.subr.bf16.mxu0 0
    %1029 = vmatpush1.bf16.msra.mxu0 %v937
    %1030 = vmatprep.subr.bf16.mxu0 0
    %1031 = vmatpush1.bf16.msra.mxu0 %v936
    %1032 = vmatprep.subr.bf16.mxu0 0
    %1033 = vmatpush1.bf16.msra.mxu0 %v935
    %1034 = vmatprep.subr.bf16.mxu0 0
    %1035 = vmatpush1.bf16.msra.mxu0 %v934
    %1036 = vmatprep.subr.bf16.mxu0 0
    %1037 = vmatpush1.bf16.msra.mxu0 %v933
    %1038 = vmatprep.subr.bf16.mxu0 0
    %1039 = vmatpush2.bf16.msra.mxu0 %v948
    %1040 = vmatprep.subr.bf16.mxu0 0
    %1041 = vmatpush2.bf16.msra.mxu0 %v947
    %1042 = vmatprep.subr.bf16.mxu0 0
    %1043 = vmatpush2.bf16.msra.mxu0 %v946
    %1044 = vmatprep.subr.bf16.mxu0 0
    %1045 = vmatpush2.bf16.msra.mxu0 %v945
    %1046 = vmatprep.subr.bf16.mxu0 0
    %1047 = vmatpush2.bf16.msra.mxu0 %v944
    %1048 = vmatprep.subr.bf16.mxu0 0
    %1049 = vmatpush2.bf16.msra.mxu0 %v943
    %1050 = vmatprep.subr.bf16.mxu0 0
    %1051 = vmatpush2.bf16.msra.mxu0 %v942
    %1052 = vmatprep.subr.bf16.mxu0 0
    %1053 = vmatpush2.bf16.msra.mxu0 %v941
    %1054 = vmatprep.mubr.bf16.mxu0 %v720
    %1055 = vmatmul.mubr.bf16.gmra.mxu0 %v719
    %v1056 = vpop.f32.mrf.mxu0
    %v1057 = vadd.f32 %v1016, %v1056
    %v1058 = vpop.f32.mrf.mxu0
    %v1059 = vpop.f32.mrf.mxu0
    %v1060 = vadd.f32 %v1019, %v1059
    %v1061 = vpop.f32.mrf.mxu0
    %1062 = vdwg.mxu0
    %v1063 = vlaneseq
    %v1064 = vshrl.u32 %v1063, 7
    %v1065 = vsub.s32 2, %v1064
    %v1066 = vrot.slane %v163, %v1065
    %v1067 = vmul.f32 %v1057, %v1066
    %v1068 = vmul.f32 %v1060, %v1066
    %v1069 = vadd.f32 %v1067, %v157
    %v1070 = vadd.f32 %v1068, %v160
    %s1071 = scalar_lea.vmem %s3, 4
    %v1072 = vld [vmem:[%s1071] sm:$0xf]
    %v1073 = vlaneseq
    %v1074 = vshrl.u32 %v1073, 7
    %v1075 = vsub.s32 0, %v1074
    %v1076 = vrot.slane %v1072, %v1075
    %v1077 = vmul.f32 %v1069, %v1076
    %v1078 = vmul.f32 %v1070, %v1076
    %v1079 = vlaneseq
    %v1080 = vshrl.u32 %v1079, 7
    %v1081 = vsub.s32 1, %v1080
    %v1082 = vrot.slane %v1072, %v1081
    %v1083 = vadd.f32 %v1077, %v1082
    %v1084 = vadd.f32 %v1078, %v1082
    %v1085 = vpack.c.bf16 %v1084, %v1083
    %s1086 = scalar_lea.vmem %s5, 256
    %v1087 = vld [vmem:[%s1086] sm:$0xff]
    %v1088 = vld [vmem:[%s1086 + $0x8] sm:$0xff]
    %v1089 = vld [vmem:[%s1086 + $0x10] sm:$0xff]
    %v1090 = vld [vmem:[%s1086 + $0x18] sm:$0xff]
    %v1091 = vld [vmem:[%s1086 + $0x20] sm:$0xff]
    %v1092 = vld [vmem:[%s1086 + $0x28] sm:$0xff]
    %v1093 = vld [vmem:[%s1086 + $0x30] sm:$0xff]
    %v1094 = vld [vmem:[%s1086 + $0x38] sm:$0xff]
    %v1095 = vld [vmem:[%s1086 + $0x40] sm:$0xff]
    %v1096 = vld [vmem:[%s1086 + $0x48] sm:$0xff]
    %v1097 = vld [vmem:[%s1086 + $0x50] sm:$0xff]
    %v1098 = vld [vmem:[%s1086 + $0x58] sm:$0xff]
    %v1099 = vld [vmem:[%s1086 + $0x60] sm:$0xff]
    %v1100 = vld [vmem:[%s1086 + $0x68] sm:$0xff]
    %v1101 = vld [vmem:[%s1086 + $0x70] sm:$0xff]
    %v1102 = vld [vmem:[%s1086 + $0x78] sm:$0xff]
    %v1103 = vld [vmem:[%s1086 + $0x80] sm:$0xff]
    %v1104 = vld [vmem:[%s1086 + $0x88] sm:$0xff]
    %v1105 = vld [vmem:[%s1086 + $0x90] sm:$0xff]
    %v1106 = vld [vmem:[%s1086 + $0x98] sm:$0xff]
    %v1107 = vld [vmem:[%s1086 + $0xa0] sm:$0xff]
    %v1108 = vld [vmem:[%s1086 + $0xa8] sm:$0xff]
    %v1109 = vld [vmem:[%s1086 + $0xb0] sm:$0xff]
    %v1110 = vld [vmem:[%s1086 + $0xb8] sm:$0xff]
    %v1111 = vld [vmem:[%s1086 + $0xc0] sm:$0xff]
    %v1112 = vld [vmem:[%s1086 + $0xc8] sm:$0xff]
    %v1113 = vld [vmem:[%s1086 + $0xd0] sm:$0xff]
    %v1114 = vld [vmem:[%s1086 + $0xd8] sm:$0xff]
    %v1115 = vld [vmem:[%s1086 + $0xe0] sm:$0xff]
    %v1116 = vld [vmem:[%s1086 + $0xe8] sm:$0xff]
    %v1117 = vld [vmem:[%s1086 + $0xf0] sm:$0xff]
    %v1118 = vld [vmem:[%s1086 + $0xf8] sm:$0xff]
    %s1119 = scalar_lea.vmem %s4, 4
    %v1120 = vld [vmem:[%s1119] sm:$0xf]
    %v1122 = vlaneseq
    %v1123 = vshrl.u32 %v1122, 7
    %v1124 = vsub.s32 0, %v1123
    %v1125 = vrot.slane %v1120, %v1124
    %v1126 = vlaneseq
    %v1127 = vshrl.u32 %v1126, 7
    %v1128 = vsub.s32 1, %v1127
    %v1129 = vrot.slane %v1120, %v1128
    %v1130 = vlaneseq
    %v1131 = vshrl.u32 %v1130, 7
    %v1132 = vsub.s32 2, %v1131
    %v1133 = vrot.slane %v1120, %v1132
    %v1134 = vlaneseq
    %v1135 = vshrl.u32 %v1134, 7
    %v1136 = vsub.s32 3, %v1135
    %v1137 = vrot.slane %v1120, %v1136
    %v1174 = vunpack.c.l.b16 %v1087
    %v1175 = vunpack.c.h.b16 %v1087
    %v1176 = vunpack.c.l.b16 %v1088
    %v1177 = vunpack.c.h.b16 %v1088
    %v1178 = vunpack.c.l.b16 %v1089
    %v1179 = vunpack.c.h.b16 %v1089
    %v1180 = vunpack.c.l.b16 %v1090
    %v1181 = vunpack.c.h.b16 %v1090
    %v1182 = vunpack.c.l.b16 %v1091
    %v1183 = vunpack.c.h.b16 %v1091
    %v1184 = vunpack.c.l.b16 %v1092
    %v1185 = vunpack.c.h.b16 %v1092
    %v1186 = vunpack.c.l.b16 %v1093
    %v1187 = vunpack.c.h.b16 %v1093
    %v1188 = vunpack.c.l.b16 %v1094
    %v1189 = vunpack.c.h.b16 %v1094
    %v1190 = vunpack.c.l.b16 %v1095
    %v1191 = vunpack.c.h.b16 %v1095
    %v1192 = vunpack.c.l.b16 %v1096
    %v1193 = vunpack.c.h.b16 %v1096
    %v1194 = vunpack.c.l.b16 %v1097
    %v1195 = vunpack.c.h.b16 %v1097
    %v1196 = vunpack.c.l.b16 %v1098
    %v1197 = vunpack.c.h.b16 %v1098
    %v1198 = vunpack.c.l.b16 %v1099
    %v1199 = vunpack.c.h.b16 %v1099
    %v1200 = vunpack.c.l.b16 %v1100
    %v1201 = vunpack.c.h.b16 %v1100
    %v1202 = vunpack.c.l.b16 %v1101
    %v1203 = vunpack.c.h.b16 %v1101
    %v1204 = vunpack.c.l.b16 %v1102
    %v1205 = vunpack.c.h.b16 %v1102
    %v1206 = vunpack.c.l.b16 %v1103
    %v1207 = vunpack.c.h.b16 %v1103
    %v1208 = vunpack.c.l.b16 %v1104
    %v1209 = vunpack.c.h.b16 %v1104
    %v1210 = vunpack.c.l.b16 %v1105
    %v1211 = vunpack.c.h.b16 %v1105
    %v1212 = vunpack.c.l.b16 %v1106
    %v1213 = vunpack.c.h.b16 %v1106
    %v1214 = vunpack.c.l.b16 %v1107
    %v1215 = vunpack.c.h.b16 %v1107
    %v1216 = vunpack.c.l.b16 %v1108
    %v1217 = vunpack.c.h.b16 %v1108
    %v1218 = vunpack.c.l.b16 %v1109
    %v1219 = vunpack.c.h.b16 %v1109
    %v1220 = vunpack.c.l.b16 %v1110
    %v1221 = vunpack.c.h.b16 %v1110
    %v1222 = vunpack.c.l.b16 %v1111
    %v1223 = vunpack.c.h.b16 %v1111
    %v1224 = vunpack.c.l.b16 %v1112
    %v1225 = vunpack.c.h.b16 %v1112
    %v1226 = vunpack.c.l.b16 %v1113
    %v1227 = vunpack.c.h.b16 %v1113
    %v1228 = vunpack.c.l.b16 %v1114
    %v1229 = vunpack.c.h.b16 %v1114
    %v1230 = vunpack.c.l.b16 %v1115
    %v1231 = vunpack.c.h.b16 %v1115
    %v1232 = vunpack.c.l.b16 %v1116
    %v1233 = vunpack.c.h.b16 %v1116
    %v1234 = vunpack.c.l.b16 %v1117
    %v1235 = vunpack.c.h.b16 %v1117
    %v1236 = vunpack.c.l.b16 %v1118
    %v1237 = vunpack.c.h.b16 %v1118
    %v1238 = vpack.c.b16 %v1178, %v1174
    %v1239 = vpack.c.b16 %v1179, %v1175
    %v1240 = vpack.c.b16 %v1180, %v1176
    %v1241 = vpack.c.b16 %v1181, %v1177
    %v1242 = vpack.c.b16 %v1186, %v1182
    %v1243 = vpack.c.b16 %v1187, %v1183
    %v1244 = vpack.c.b16 %v1188, %v1184
    %v1245 = vpack.c.b16 %v1189, %v1185
    %v1246 = vpack.c.b16 %v1194, %v1190
    %v1247 = vpack.c.b16 %v1195, %v1191
    %v1248 = vpack.c.b16 %v1196, %v1192
    %v1249 = vpack.c.b16 %v1197, %v1193
    %v1250 = vpack.c.b16 %v1202, %v1198
    %v1251 = vpack.c.b16 %v1203, %v1199
    %v1252 = vpack.c.b16 %v1204, %v1200
    %v1253 = vpack.c.b16 %v1205, %v1201
    %v1254 = vpack.c.b16 %v1210, %v1206
    %v1255 = vpack.c.b16 %v1211, %v1207
    %v1256 = vpack.c.b16 %v1212, %v1208
    %v1257 = vpack.c.b16 %v1213, %v1209
    %v1258 = vpack.c.b16 %v1218, %v1214
    %v1259 = vpack.c.b16 %v1219, %v1215
    %v1260 = vpack.c.b16 %v1220, %v1216
    %v1261 = vpack.c.b16 %v1221, %v1217
    %v1262 = vpack.c.b16 %v1226, %v1222
    %v1263 = vpack.c.b16 %v1227, %v1223
    %v1264 = vpack.c.b16 %v1228, %v1224
    %v1265 = vpack.c.b16 %v1229, %v1225
    %v1266 = vpack.c.b16 %v1234, %v1230
    %v1267 = vpack.c.b16 %v1235, %v1231
    %v1268 = vpack.c.b16 %v1236, %v1232
    %v1269 = vpack.c.b16 %v1237, %v1233
    %1302 = vmatprep.subr.bf16.mxu0 %v1267
    %1303 = vmatpush1.bf16.msra.mxu0 %v1266
    %1304 = vmatprep.subr.bf16.mxu0 %v1263
    %1305 = vmatpush1.bf16.msra.mxu0 %v1262
    %1306 = vmatprep.subr.bf16.mxu0 %v1259
    %1307 = vmatpush1.bf16.msra.mxu0 %v1258
    %1308 = vmatprep.subr.bf16.mxu0 %v1255
    %1309 = vmatpush1.bf16.msra.mxu0 %v1254
    %1310 = vmatprep.subr.bf16.mxu0 %v1251
    %1311 = vmatpush1.bf16.msra.mxu0 %v1250
    %1312 = vmatprep.subr.bf16.mxu0 %v1247
    %1313 = vmatpush1.bf16.msra.mxu0 %v1246
    %1314 = vmatprep.subr.bf16.mxu0 %v1243
    %1315 = vmatpush1.bf16.msra.mxu0 %v1242
    %1316 = vmatprep.subr.bf16.mxu0 %v1239
    %1317 = vmatpush1.bf16.msra.mxu0 %v1238
    %1318 = vmatprep.subr.bf16.mxu0 0
    %1319 = vmatpush2.bf16.msra.mxu0 0
    %1320 = vmatprep.subr.bf16.mxu0 0
    %1321 = vmatpush2.bf16.msra.mxu0 0
    %1322 = vmatprep.subr.bf16.mxu0 0
    %1323 = vmatpush2.bf16.msra.mxu0 0
    %1324 = vmatprep.subr.bf16.mxu0 0
    %1325 = vmatpush2.bf16.msra.mxu0 0
    %1326 = vmatprep.subr.bf16.mxu0 0
    %1327 = vmatpush2.bf16.msra.mxu0 0
    %1328 = vmatprep.subr.bf16.mxu0 0
    %1329 = vmatpush2.bf16.msra.mxu0 0
    %1330 = vmatprep.subr.bf16.mxu0 0
    %1331 = vmatpush2.bf16.msra.mxu0 0
    %1332 = vmatprep.subr.bf16.mxu0 0
    %1333 = vmatpush2.bf16.msra.mxu0 0
    %1334 = vmatprep.mubr.bf16.mxu0 0
    %1335 = vmatmul.mubr.bf16.gmra.mxu0 %v1085
    %v1336 = vpop.f32.mrf.mxu0
    %v1337 = vadd.f32 %v1125, %v1336
    %v1338 = vpop.f32.mrf.mxu0
    %v1339 = vadd.f32 %v1129, %v1338
    %v1340 = vpop.f32.mrf.mxu0
    %v1341 = vadd.f32 %v1125, %v1340
    %v1342 = vpop.f32.mrf.mxu0
    %v1343 = vadd.f32 %v1129, %v1342
    %1344 = vdwg.mxu0
    %1345 = vmatprep.subr.bf16.mxu0 %v1269
    %1346 = vmatpush1.bf16.msra.mxu0 %v1268
    %1347 = vmatprep.subr.bf16.mxu0 %v1265
    %1348 = vmatpush1.bf16.msra.mxu0 %v1264
    %1349 = vmatprep.subr.bf16.mxu0 %v1261
    %1350 = vmatpush1.bf16.msra.mxu0 %v1260
    %1351 = vmatprep.subr.bf16.mxu0 %v1257
    %1352 = vmatpush1.bf16.msra.mxu0 %v1256
    %1353 = vmatprep.subr.bf16.mxu0 %v1253
    %1354 = vmatpush1.bf16.msra.mxu0 %v1252
    %1355 = vmatprep.subr.bf16.mxu0 %v1249
    %1356 = vmatpush1.bf16.msra.mxu0 %v1248
    %1357 = vmatprep.subr.bf16.mxu0 %v1245
    %1358 = vmatpush1.bf16.msra.mxu0 %v1244
    %1359 = vmatprep.subr.bf16.mxu0 %v1241
    %1360 = vmatpush1.bf16.msra.mxu0 %v1240
    %1361 = vmatprep.subr.bf16.mxu0 0
    %1362 = vmatpush2.bf16.msra.mxu0 0
    %1363 = vmatprep.subr.bf16.mxu0 0
    %1364 = vmatpush2.bf16.msra.mxu0 0
    %1365 = vmatprep.subr.bf16.mxu0 0
    %1366 = vmatpush2.bf16.msra.mxu0 0
    %1367 = vmatprep.subr.bf16.mxu0 0
    %1368 = vmatpush2.bf16.msra.mxu0 0
    %1369 = vmatprep.subr.bf16.mxu0 0
    %1370 = vmatpush2.bf16.msra.mxu0 0
    %1371 = vmatprep.subr.bf16.mxu0 0
    %1372 = vmatpush2.bf16.msra.mxu0 0
    %1373 = vmatprep.subr.bf16.mxu0 0
    %1374 = vmatpush2.bf16.msra.mxu0 0
    %1375 = vmatprep.subr.bf16.mxu0 0
    %1376 = vmatpush2.bf16.msra.mxu0 0
    %1377 = vmatprep.mubr.bf16.mxu0 0
    %1378 = vmatmul.mubr.bf16.gmra.mxu0 %v1085
    %v1379 = vpop.f32.mrf.mxu0
    %v1380 = vadd.f32 %v1133, %v1379
    %v1381 = vpop.f32.mrf.mxu0
    %v1382 = vadd.f32 %v1137, %v1381
    %v1383 = vpop.f32.mrf.mxu0
    %v1384 = vadd.f32 %v1133, %v1383
    %v1385 = vpop.f32.mrf.mxu0
    %v1386 = vadd.f32 %v1137, %v1385
    %1387 = vdwg.mxu0
    %v1388 = vmul.f32 %v1337, 0.5
    %v1389 = vmul.f32 %v1339, 0.5
    %v1390 = vmul.f32 %v1380, 0.5
    %v1391 = vmul.f32 %v1382, 0.5
    %v1392 = vmul.f32 %v1341, 0.5
    %v1393 = vmul.f32 %v1343, 0.5
    %v1394 = vmul.f32 %v1384, 0.5
    %v1395 = vmul.f32 %v1386, 0.5
    %v1396 = vmul.f32 %v1337, 0.70710677
    %v1397 = vmul.f32 %v1339, 0.70710677
    %v1398 = vmul.f32 %v1380, 0.70710677
    %v1399 = vmul.f32 %v1382, 0.70710677
    %v1400 = vmul.f32 %v1341, 0.70710677
    %v1401 = vmul.f32 %v1343, 0.70710677
    %v1402 = vmul.f32 %v1384, 0.70710677
    %v1403 = vmul.f32 %v1386, 0.70710677
    %v1404 = vmax.f32 %v1396, -4.0
    %v1405 = vmax.f32 %v1397, -4.0
    %v1406 = vmax.f32 %v1398, -4.0
    %v1407 = vmax.f32 %v1399, -4.0
    %v1408 = vmax.f32 %v1400, -4.0
    %v1409 = vmax.f32 %v1401, -4.0
    %v1410 = vmax.f32 %v1402, -4.0
    %v1411 = vmax.f32 %v1403, -4.0
    %v1412 = vmin.f32 %v1404, 4.0
    %v1413 = vmin.f32 %v1405, 4.0
    %v1414 = vmin.f32 %v1406, 4.0
    %v1415 = vmin.f32 %v1407, 4.0
    %v1416 = vmin.f32 %v1408, 4.0
    %v1417 = vmin.f32 %v1409, 4.0
    %v1418 = vmin.f32 %v1410, 4.0
    %v1419 = vmin.f32 %v1411, 4.0
    %v1420 = vmul.f32 %v1412, %v1412
    %v1421 = vmul.f32 %v1413, %v1413
    %v1422 = vmul.f32 %v1414, %v1414
    %v1423 = vmul.f32 %v1415, %v1415
    %v1424 = vmul.f32 %v1416, %v1416
    %v1425 = vmul.f32 %v1417, %v1417
    %v1426 = vmul.f32 %v1418, %v1418
    %v1427 = vmul.f32 %v1419, %v1419
    %v1428 = vmul.f32 %v1420, -2.7261424e-10
    %v1429 = vmul.f32 %v1421, -2.7261424e-10
    %v1430 = vmul.f32 %v1422, -2.7261424e-10
    %v1431 = vmul.f32 %v1423, -2.7261424e-10
    %v1432 = vmul.f32 %v1424, -2.7261424e-10
    %v1433 = vmul.f32 %v1425, -2.7261424e-10
    %v1434 = vmul.f32 %v1426, -2.7261424e-10
    %v1435 = vmul.f32 %v1427, -2.7261424e-10
    %v1436 = vadd.f32 %v1428, 2.7706815e-08
    %v1437 = vadd.f32 %v1429, 2.7706815e-08
    %v1438 = vadd.f32 %v1430, 2.7706815e-08
    %v1439 = vadd.f32 %v1431, 2.7706815e-08
    %v1440 = vadd.f32 %v1432, 2.7706815e-08
    %v1441 = vadd.f32 %v1433, 2.7706815e-08
    %v1442 = vadd.f32 %v1434, 2.7706815e-08
    %v1443 = vadd.f32 %v1435, 2.7706815e-08
    %v1444 = vmul.f32 %v1420, %v1436
    %v1445 = vmul.f32 %v1421, %v1437
    %v1446 = vmul.f32 %v1422, %v1438
    %v1447 = vmul.f32 %v1423, %v1439
    %v1448 = vmul.f32 %v1424, %v1440
    %v1449 = vmul.f32 %v1425, %v1441
    %v1450 = vmul.f32 %v1426, %v1442
    %v1451 = vmul.f32 %v1427, %v1443
    %v1452 = vadd.f32 %v1444, -2.101024e-06
    %v1453 = vadd.f32 %v1445, -2.101024e-06
    %v1454 = vadd.f32 %v1446, -2.101024e-06
    %v1455 = vadd.f32 %v1447, -2.101024e-06
    %v1456 = vadd.f32 %v1448, -2.101024e-06
    %v1457 = vadd.f32 %v1449, -2.101024e-06
    %v1458 = vadd.f32 %v1450, -2.101024e-06
    %v1459 = vadd.f32 %v1451, -2.101024e-06
    %v1460 = vmul.f32 %v1420, %v1452
    %v1461 = vmul.f32 %v1421, %v1453
    %v1462 = vmul.f32 %v1422, %v1454
    %v1463 = vmul.f32 %v1423, %v1455
    %v1464 = vmul.f32 %v1424, %v1456
    %v1465 = vmul.f32 %v1425, %v1457
    %v1466 = vmul.f32 %v1426, %v1458
    %v1467 = vmul.f32 %v1427, %v1459
    %v1468 = vadd.f32 %v1460, -5.6925062e-05
    %v1469 = vadd.f32 %v1461, -5.6925062e-05
    %v1470 = vadd.f32 %v1462, -5.6925062e-05
    %v1471 = vadd.f32 %v1463, -5.6925062e-05
    %v1472 = vadd.f32 %v1464, -5.6925062e-05
    %v1473 = vadd.f32 %v1465, -5.6925062e-05
    %v1474 = vadd.f32 %v1466, -5.6925062e-05
    %v1475 = vadd.f32 %v1467, -5.6925062e-05
    %v1476 = vmul.f32 %v1420, %v1468
    %v1477 = vmul.f32 %v1421, %v1469
    %v1478 = vmul.f32 %v1422, %v1470
    %v1479 = vmul.f32 %v1423, %v1471
    %v1480 = vmul.f32 %v1424, %v1472
    %v1481 = vmul.f32 %v1425, %v1473
    %v1482 = vmul.f32 %v1426, %v1474
    %v1483 = vmul.f32 %v1427, %v1475
    %v1484 = vadd.f32 %v1476, -0.00073499064
    %v1485 = vadd.f32 %v1477, -0.00073499064
    %v1486 = vadd.f32 %v1478, -0.00073499064
    %v1487 = vadd.f32 %v1479, -0.00073499064
    %v1488 = vadd.f32 %v1480, -0.00073499064
    %v1489 = vadd.f32 %v1481, -0.00073499064
    %v1490 = vadd.f32 %v1482, -0.00073499064
    %v1491 = vadd.f32 %v1483, -0.00073499064
    %v1492 = vmul.f32 %v1420, %v1484
    %v1493 = vmul.f32 %v1421, %v1485
    %v1494 = vmul.f32 %v1422, %v1486
    %v1495 = vmul.f32 %v1423, %v1487
    %v1496 = vmul.f32 %v1424, %v1488
    %v1497 = vmul.f32 %v1425, %v1489
    %v1498 = vmul.f32 %v1426, %v1490
    %v1499 = vmul.f32 %v1427, %v1491
    %v1500 = vadd.f32 %v1492, -0.0029546
    %v1501 = vadd.f32 %v1493, -0.0029546
    %v1502 = vadd.f32 %v1494, -0.0029546
    %v1503 = vadd.f32 %v1495, -0.0029546
    %v1504 = vadd.f32 %v1496, -0.0029546
    %v1505 = vadd.f32 %v1497, -0.0029546
    %v1506 = vadd.f32 %v1498, -0.0029546
    %v1507 = vadd.f32 %v1499, -0.0029546
    %v1508 = vmul.f32 %v1420, %v1500
    %v1509 = vmul.f32 %v1421, %v1501
    %v1510 = vmul.f32 %v1422, %v1502
    %v1511 = vmul.f32 %v1423, %v1503
    %v1512 = vmul.f32 %v1424, %v1504
    %v1513 = vmul.f32 %v1425, %v1505
    %v1514 = vmul.f32 %v1426, %v1506
    %v1515 = vmul.f32 %v1427, %v1507
    %v1516 = vadd.f32 %v1508, -0.016096033
    %v1517 = vadd.f32 %v1509, -0.016096033
    %v1518 = vadd.f32 %v1510, -0.016096033
    %v1519 = vadd.f32 %v1511, -0.016096033
    %v1520 = vadd.f32 %v1512, -0.016096033
    %v1521 = vadd.f32 %v1513, -0.016096033
    %v1522 = vadd.f32 %v1514, -0.016096033
    %v1523 = vadd.f32 %v1515, -0.016096033
    %v1524 = vmul.f32 %v1412, %v1516
    %v1525 = vmul.f32 %v1413, %v1517
    %v1526 = vmul.f32 %v1414, %v1518
    %v1527 = vmul.f32 %v1415, %v1519
    %v1528 = vmul.f32 %v1416, %v1520
    %v1529 = vmul.f32 %v1417, %v1521
    %v1530 = vmul.f32 %v1418, %v1522
    %v1531 = vmul.f32 %v1419, %v1523
    %v1532 = vmul.f32 %v1420, -1.45660715e-05
    %v1533 = vmul.f32 %v1421, -1.45660715e-05
    %v1534 = vmul.f32 %v1422, -1.45660715e-05
    %v1535 = vmul.f32 %v1423, -1.45660715e-05
    %v1536 = vmul.f32 %v1424, -1.45660715e-05
    %v1537 = vmul.f32 %v1425, -1.45660715e-05
    %v1538 = vmul.f32 %v1426, -1.45660715e-05
    %v1539 = vmul.f32 %v1427, -1.45660715e-05
    %v1540 = vadd.f32 %v1532, -0.00021337405
    %v1541 = vadd.f32 %v1533, -0.00021337405
    %v1542 = vadd.f32 %v1534, -0.00021337405
    %v1543 = vadd.f32 %v1535, -0.00021337405
    %v1544 = vadd.f32 %v1536, -0.00021337405
    %v1545 = vadd.f32 %v1537, -0.00021337405
    %v1546 = vadd.f32 %v1538, -0.00021337405
    %v1547 = vadd.f32 %v1539, -0.00021337405
    %v1548 = vmul.f32 %v1420, %v1540
    %v1549 = vmul.f32 %v1421, %v1541
    %v1550 = vmul.f32 %v1422, %v1542
    %v1551 = vmul.f32 %v1423, %v1543
    %v1552 = vmul.f32 %v1424, %v1544
    %v1553 = vmul.f32 %v1425, %v1545
    %v1554 = vmul.f32 %v1426, %v1546
    %v1555 = vmul.f32 %v1427, %v1547
    %v1556 = vadd.f32 %v1548, -0.001682827
    %v1557 = vadd.f32 %v1549, -0.001682827
    %v1558 = vadd.f32 %v1550, -0.001682827
    %v1559 = vadd.f32 %v1551, -0.001682827
    %v1560 = vadd.f32 %v1552, -0.001682827
    %v1561 = vadd.f32 %v1553, -0.001682827
    %v1562 = vadd.f32 %v1554, -0.001682827
    %v1563 = vadd.f32 %v1555, -0.001682827
    %v1564 = vmul.f32 %v1420, %v1556
    %v1565 = vmul.f32 %v1421, %v1557
    %v1566 = vmul.f32 %v1422, %v1558
    %v1567 = vmul.f32 %v1423, %v1559
    %v1568 = vmul.f32 %v1424, %v1560
    %v1569 = vmul.f32 %v1425, %v1561
    %v1570 = vmul.f32 %v1426, %v1562
    %v1571 = vmul.f32 %v1427, %v1563
    %v1572 = vadd.f32 %v1564, -0.0073733293
    %v1573 = vadd.f32 %v1565, -0.0073733293
    %v1574 = vadd.f32 %v1566, -0.0073733293
    %v1575 = vadd.f32 %v1567, -0.0073733293
    %v1576 = vadd.f32 %v1568, -0.0073733293
    %v1577 = vadd.f32 %v1569, -0.0073733293
    %v1578 = vadd.f32 %v1570, -0.0073733293
    %v1579 = vadd.f32 %v1571, -0.0073733293
    %v1580 = vmul.f32 %v1420, %v1572
    %v1581 = vmul.f32 %v1421, %v1573
    %v1582 = vmul.f32 %v1422, %v1574
    %v1583 = vmul.f32 %v1423, %v1575
    %v1584 = vmul.f32 %v1424, %v1576
    %v1585 = vmul.f32 %v1425, %v1577
    %v1586 = vmul.f32 %v1426, %v1578
    %v1587 = vmul.f32 %v1427, %v1579
    %v1588 = vadd.f32 %v1580, -0.014264739
    %v1589 = vadd.f32 %v1581, -0.014264739
    %v1590 = vadd.f32 %v1582, -0.014264739
    %v1591 = vadd.f32 %v1583, -0.014264739
    %v1592 = vadd.f32 %v1584, -0.014264739
    %v1593 = vadd.f32 %v1585, -0.014264739
    %v1594 = vadd.f32 %v1586, -0.014264739
    %v1595 = vadd.f32 %v1587, -0.014264739
    %v1596 = vrcp.pop %v1588
    %v1597 = vrcp.pop %v1589
    %v1598 = vrcp.pop %v1590
    %v1599 = vrcp.pop %v1591
    %v1600 = vrcp.pop %v1592
    %v1601 = vrcp.pop %v1593
    %v1602 = vrcp.pop %v1594
    %v1603 = vrcp.pop %v1595
    %v1604 = vmul.f32 %v1524, %v1596
    %v1605 = vmul.f32 %v1525, %v1597
    %v1606 = vmul.f32 %v1526, %v1598
    %v1607 = vmul.f32 %v1527, %v1599
    %v1608 = vmul.f32 %v1528, %v1600
    %v1609 = vmul.f32 %v1529, %v1601
    %v1610 = vmul.f32 %v1530, %v1602
    %v1611 = vmul.f32 %v1531, %v1603
    %v1612 = vadd.f32 %v1604, 1.0
    %v1613 = vadd.f32 %v1605, 1.0
    %v1614 = vadd.f32 %v1606, 1.0
    %v1615 = vadd.f32 %v1607, 1.0
    %v1616 = vadd.f32 %v1608, 1.0
    %v1617 = vadd.f32 %v1609, 1.0
    %v1618 = vadd.f32 %v1610, 1.0
    %v1619 = vadd.f32 %v1611, 1.0
    %v1620 = vmul.f32 %v1388, %v1612
    %v1621 = vmul.f32 %v1389, %v1613
    %v1622 = vmul.f32 %v1390, %v1614
    %v1623 = vmul.f32 %v1391, %v1615
    %v1624 = vmul.f32 %v1392, %v1616
    %v1625 = vmul.f32 %v1393, %v1617
    %v1626 = vmul.f32 %v1394, %v1618
    %v1627 = vmul.f32 %v1395, %v1619
    %v1628 = vpack.c.bf16 %v1624, %v1620
    %v1629 = vpack.c.bf16 %v1625, %v1621
    %v1630 = vpack.c.bf16 %v1626, %v1622
    %v1631 = vpack.c.bf16 %v1627, %v1623
    %s1632 = scalar_lea.vmem %s6, 256
    %v1633 = vld [vmem:[%s1632] sm:$0xf]
    %v1634 = vld [vmem:[%s1632 + $0x4] sm:$0xf]
    %v1635 = vld [vmem:[%s1632 + $0x8] sm:$0xf]
    %v1636 = vld [vmem:[%s1632 + $0xc] sm:$0xf]
    %v1637 = vld [vmem:[%s1632 + $0x10] sm:$0xf]
    %v1638 = vld [vmem:[%s1632 + $0x14] sm:$0xf]
    %v1639 = vld [vmem:[%s1632 + $0x18] sm:$0xf]
    %v1640 = vld [vmem:[%s1632 + $0x1c] sm:$0xf]
    %v1641 = vld [vmem:[%s1632 + $0x20] sm:$0xf]
    %v1642 = vld [vmem:[%s1632 + $0x24] sm:$0xf]
    %v1643 = vld [vmem:[%s1632 + $0x28] sm:$0xf]
    %v1644 = vld [vmem:[%s1632 + $0x2c] sm:$0xf]
    %v1645 = vld [vmem:[%s1632 + $0x30] sm:$0xf]
    %v1646 = vld [vmem:[%s1632 + $0x34] sm:$0xf]
    %v1647 = vld [vmem:[%s1632 + $0x38] sm:$0xf]
    %v1648 = vld [vmem:[%s1632 + $0x3c] sm:$0xf]
    %v1649 = vld [vmem:[%s1632 + $0x40] sm:$0xf]
    %v1650 = vld [vmem:[%s1632 + $0x44] sm:$0xf]
    %v1651 = vld [vmem:[%s1632 + $0x48] sm:$0xf]
    %v1652 = vld [vmem:[%s1632 + $0x4c] sm:$0xf]
    %v1653 = vld [vmem:[%s1632 + $0x50] sm:$0xf]
    %v1654 = vld [vmem:[%s1632 + $0x54] sm:$0xf]
    %v1655 = vld [vmem:[%s1632 + $0x58] sm:$0xf]
    %v1656 = vld [vmem:[%s1632 + $0x5c] sm:$0xf]
    %v1657 = vld [vmem:[%s1632 + $0x60] sm:$0xf]
    %v1658 = vld [vmem:[%s1632 + $0x64] sm:$0xf]
    %v1659 = vld [vmem:[%s1632 + $0x68] sm:$0xf]
    %v1660 = vld [vmem:[%s1632 + $0x6c] sm:$0xf]
    %v1661 = vld [vmem:[%s1632 + $0x70] sm:$0xf]
    %v1662 = vld [vmem:[%s1632 + $0x74] sm:$0xf]
    %v1663 = vld [vmem:[%s1632 + $0x78] sm:$0xf]
    %v1664 = vld [vmem:[%s1632 + $0x7c] sm:$0xf]
    %v1665 = vld [vmem:[%s1632 + $0x80] sm:$0xf]
    %v1666 = vld [vmem:[%s1632 + $0x84] sm:$0xf]
    %v1667 = vld [vmem:[%s1632 + $0x88] sm:$0xf]
    %v1668 = vld [vmem:[%s1632 + $0x8c] sm:$0xf]
    %v1669 = vld [vmem:[%s1632 + $0x90] sm:$0xf]
    %v1670 = vld [vmem:[%s1632 + $0x94] sm:$0xf]
    %v1671 = vld [vmem:[%s1632 + $0x98] sm:$0xf]
    %v1672 = vld [vmem:[%s1632 + $0x9c] sm:$0xf]
    %v1673 = vld [vmem:[%s1632 + $0xa0] sm:$0xf]
    %v1674 = vld [vmem:[%s1632 + $0xa4] sm:$0xf]
    %v1675 = vld [vmem:[%s1632 + $0xa8] sm:$0xf]
    %v1676 = vld [vmem:[%s1632 + $0xac] sm:$0xf]
    %v1677 = vld [vmem:[%s1632 + $0xb0] sm:$0xf]
    %v1678 = vld [vmem:[%s1632 + $0xb4] sm:$0xf]
    %v1679 = vld [vmem:[%s1632 + $0xb8] sm:$0xf]
    %v1680 = vld [vmem:[%s1632 + $0xbc] sm:$0xf]
    %v1681 = vld [vmem:[%s1632 + $0xc0] sm:$0xf]
    %v1682 = vld [vmem:[%s1632 + $0xc4] sm:$0xf]
    %v1683 = vld [vmem:[%s1632 + $0xc8] sm:$0xf]
    %v1684 = vld [vmem:[%s1632 + $0xcc] sm:$0xf]
    %v1685 = vld [vmem:[%s1632 + $0xd0] sm:$0xf]
    %v1686 = vld [vmem:[%s1632 + $0xd4] sm:$0xf]
    %v1687 = vld [vmem:[%s1632 + $0xd8] sm:$0xf]
    %v1688 = vld [vmem:[%s1632 + $0xdc] sm:$0xf]
    %v1689 = vld [vmem:[%s1632 + $0xe0] sm:$0xf]
    %v1690 = vld [vmem:[%s1632 + $0xe4] sm:$0xf]
    %v1691 = vld [vmem:[%s1632 + $0xe8] sm:$0xf]
    %v1692 = vld [vmem:[%s1632 + $0xec] sm:$0xf]
    %v1693 = vld [vmem:[%s1632 + $0xf0] sm:$0xf]
    %v1694 = vld [vmem:[%s1632 + $0xf4] sm:$0xf]
    %v1695 = vld [vmem:[%s1632 + $0xf8] sm:$0xf]
    %v1696 = vld [vmem:[%s1632 + $0xfc] sm:$0xf]
    %v1697 = vlaneseq
    %v1698 = vshrl.u32 %v1697, 7
    %v1699 = vsub.s32 3, %v1698
    %v1700 = vrot.slane %v1072, %v1699
    %v1765 = vunpack.c.l.b16 %v1633
    %v1766 = vunpack.c.l.b16 %v1634
    %v1767 = vunpack.c.l.b16 %v1635
    %v1768 = vunpack.c.l.b16 %v1636
    %v1769 = vunpack.c.l.b16 %v1637
    %v1770 = vunpack.c.l.b16 %v1638
    %v1771 = vunpack.c.l.b16 %v1639
    %v1772 = vunpack.c.l.b16 %v1640
    %v1773 = vunpack.c.l.b16 %v1641
    %v1774 = vunpack.c.l.b16 %v1642
    %v1775 = vunpack.c.l.b16 %v1643
    %v1776 = vunpack.c.l.b16 %v1644
    %v1777 = vunpack.c.l.b16 %v1645
    %v1778 = vunpack.c.l.b16 %v1646
    %v1779 = vunpack.c.l.b16 %v1647
    %v1780 = vunpack.c.l.b16 %v1648
    %v1781 = vunpack.c.l.b16 %v1649
    %v1782 = vunpack.c.l.b16 %v1650
    %v1783 = vunpack.c.l.b16 %v1651
    %v1784 = vunpack.c.l.b16 %v1652
    %v1785 = vunpack.c.l.b16 %v1653
    %v1786 = vunpack.c.l.b16 %v1654
    %v1787 = vunpack.c.l.b16 %v1655
    %v1788 = vunpack.c.l.b16 %v1656
    %v1789 = vunpack.c.l.b16 %v1657
    %v1790 = vunpack.c.l.b16 %v1658
    %v1791 = vunpack.c.l.b16 %v1659
    %v1792 = vunpack.c.l.b16 %v1660
    %v1793 = vunpack.c.l.b16 %v1661
    %v1794 = vunpack.c.l.b16 %v1662
    %v1795 = vunpack.c.l.b16 %v1663
    %v1796 = vunpack.c.l.b16 %v1664
    %v1797 = vunpack.c.l.b16 %v1665
    %v1798 = vunpack.c.l.b16 %v1666
    %v1799 = vunpack.c.l.b16 %v1667
    %v1800 = vunpack.c.l.b16 %v1668
    %v1801 = vunpack.c.l.b16 %v1669
    %v1802 = vunpack.c.l.b16 %v1670
    %v1803 = vunpack.c.l.b16 %v1671
    %v1804 = vunpack.c.l.b16 %v1672
    %v1805 = vunpack.c.l.b16 %v1673
    %v1806 = vunpack.c.l.b16 %v1674
    %v1807 = vunpack.c.l.b16 %v1675
    %v1808 = vunpack.c.l.b16 %v1676
    %v1809 = vunpack.c.l.b16 %v1677
    %v1810 = vunpack.c.l.b16 %v1678
    %v1811 = vunpack.c.l.b16 %v1679
    %v1812 = vunpack.c.l.b16 %v1680
    %v1813 = vunpack.c.l.b16 %v1681
    %v1814 = vunpack.c.l.b16 %v1682
    %v1815 = vunpack.c.l.b16 %v1683
    %v1816 = vunpack.c.l.b16 %v1684
    %v1817 = vunpack.c.l.b16 %v1685
    %v1818 = vunpack.c.l.b16 %v1686
    %v1819 = vunpack.c.l.b16 %v1687
    %v1820 = vunpack.c.l.b16 %v1688
    %v1821 = vunpack.c.l.b16 %v1689
    %v1822 = vunpack.c.l.b16 %v1690
    %v1823 = vunpack.c.l.b16 %v1691
    %v1824 = vunpack.c.l.b16 %v1692
    %v1825 = vunpack.c.l.b16 %v1693
    %v1826 = vunpack.c.l.b16 %v1694
    %v1827 = vunpack.c.l.b16 %v1695
    %v1828 = vunpack.c.l.b16 %v1696
    %v1829 = vpack.c.b16 %v1766, %v1765
    %v1830 = vpack.c.b16 %v1768, %v1767
    %v1831 = vpack.c.b16 %v1770, %v1769
    %v1832 = vpack.c.b16 %v1772, %v1771
    %v1833 = vpack.c.b16 %v1774, %v1773
    %v1834 = vpack.c.b16 %v1776, %v1775
    %v1835 = vpack.c.b16 %v1778, %v1777
    %v1836 = vpack.c.b16 %v1780, %v1779
    %v1837 = vpack.c.b16 %v1782, %v1781
    %v1838 = vpack.c.b16 %v1784, %v1783
    %v1839 = vpack.c.b16 %v1786, %v1785
    %v1840 = vpack.c.b16 %v1788, %v1787
    %v1841 = vpack.c.b16 %v1790, %v1789
    %v1842 = vpack.c.b16 %v1792, %v1791
    %v1843 = vpack.c.b16 %v1794, %v1793
    %v1844 = vpack.c.b16 %v1796, %v1795
    %v1845 = vpack.c.b16 %v1798, %v1797
    %v1846 = vpack.c.b16 %v1800, %v1799
    %v1847 = vpack.c.b16 %v1802, %v1801
    %v1848 = vpack.c.b16 %v1804, %v1803
    %v1849 = vpack.c.b16 %v1806, %v1805
    %v1850 = vpack.c.b16 %v1808, %v1807
    %v1851 = vpack.c.b16 %v1810, %v1809
    %v1852 = vpack.c.b16 %v1812, %v1811
    %v1853 = vpack.c.b16 %v1814, %v1813
    %v1854 = vpack.c.b16 %v1816, %v1815
    %v1855 = vpack.c.b16 %v1818, %v1817
    %v1856 = vpack.c.b16 %v1820, %v1819
    %v1857 = vpack.c.b16 %v1822, %v1821
    %v1858 = vpack.c.b16 %v1824, %v1823
    %v1859 = vpack.c.b16 %v1826, %v1825
    %v1860 = vpack.c.b16 %v1828, %v1827
    %1893 = vmatprep.subr.bf16.mxu0 0
    %1894 = vmatpush1.bf16.msra.mxu0 %v1836
    %1895 = vmatprep.subr.bf16.mxu0 0
    %1896 = vmatpush1.bf16.msra.mxu0 %v1835
    %1897 = vmatprep.subr.bf16.mxu0 0
    %1898 = vmatpush1.bf16.msra.mxu0 %v1834
    %1899 = vmatprep.subr.bf16.mxu0 0
    %1900 = vmatpush1.bf16.msra.mxu0 %v1833
    %1901 = vmatprep.subr.bf16.mxu0 0
    %1902 = vmatpush1.bf16.msra.mxu0 %v1832
    %1903 = vmatprep.subr.bf16.mxu0 0
    %1904 = vmatpush1.bf16.msra.mxu0 %v1831
    %1905 = vmatprep.subr.bf16.mxu0 0
    %1906 = vmatpush1.bf16.msra.mxu0 %v1830
    %1907 = vmatprep.subr.bf16.mxu0 0
    %1908 = vmatpush1.bf16.msra.mxu0 %v1829
    %1909 = vmatprep.subr.bf16.mxu0 0
    %1910 = vmatpush2.bf16.msra.mxu0 %v1844
    %1911 = vmatprep.subr.bf16.mxu0 0
    %1912 = vmatpush2.bf16.msra.mxu0 %v1843
    %1913 = vmatprep.subr.bf16.mxu0 0
    %1914 = vmatpush2.bf16.msra.mxu0 %v1842
    %1915 = vmatprep.subr.bf16.mxu0 0
    %1916 = vmatpush2.bf16.msra.mxu0 %v1841
    %1917 = vmatprep.subr.bf16.mxu0 0
    %1918 = vmatpush2.bf16.msra.mxu0 %v1840
    %1919 = vmatprep.subr.bf16.mxu0 0
    %1920 = vmatpush2.bf16.msra.mxu0 %v1839
    %1921 = vmatprep.subr.bf16.mxu0 0
    %1922 = vmatpush2.bf16.msra.mxu0 %v1838
    %1923 = vmatprep.subr.bf16.mxu0 0
    %1924 = vmatpush2.bf16.msra.mxu0 %v1837
    %1925 = vmatprep.mubr.bf16.mxu0 %v1629
    %1926 = vmatmul.mubr.bf16.gmra.mxu0 %v1628
    %v1927 = vpop.f32.mrf.mxu0
    %v1928 = vadd.f32 %v1700, %v1927
    %v1929 = vpop.f32.mrf.mxu0
    %v1930 = vpop.f32.mrf.mxu0
    %v1931 = vadd.f32 %v1700, %v1930
    %v1932 = vpop.f32.mrf.mxu0
    %1933 = vdwg.mxu0
    %1934 = vmatprep.subr.bf16.mxu0 0
    %1935 = vmatpush1.bf16.msra.mxu0 %v1852
    %1936 = vmatprep.subr.bf16.mxu0 0
    %1937 = vmatpush1.bf16.msra.mxu0 %v1851
    %1938 = vmatprep.subr.bf16.mxu0 0
    %1939 = vmatpush1.bf16.msra.mxu0 %v1850
    %1940 = vmatprep.subr.bf16.mxu0 0
    %1941 = vmatpush1.bf16.msra.mxu0 %v1849
    %1942 = vmatprep.subr.bf16.mxu0 0
    %1943 = vmatpush1.bf16.msra.mxu0 %v1848
    %1944 = vmatprep.subr.bf16.mxu0 0
    %1945 = vmatpush1.bf16.msra.mxu0 %v1847
    %1946 = vmatprep.subr.bf16.mxu0 0
    %1947 = vmatpush1.bf16.msra.mxu0 %v1846
    %1948 = vmatprep.subr.bf16.mxu0 0
    %1949 = vmatpush1.bf16.msra.mxu0 %v1845
    %1950 = vmatprep.subr.bf16.mxu0 0
    %1951 = vmatpush2.bf16.msra.mxu0 %v1860
    %1952 = vmatprep.subr.bf16.mxu0 0
    %1953 = vmatpush2.bf16.msra.mxu0 %v1859
    %1954 = vmatprep.subr.bf16.mxu0 0
    %1955 = vmatpush2.bf16.msra.mxu0 %v1858
    %1956 = vmatprep.subr.bf16.mxu0 0
    %1957 = vmatpush2.bf16.msra.mxu0 %v1857
    %1958 = vmatprep.subr.bf16.mxu0 0
    %1959 = vmatpush2.bf16.msra.mxu0 %v1856
    %1960 = vmatprep.subr.bf16.mxu0 0
    %1961 = vmatpush2.bf16.msra.mxu0 %v1855
    %1962 = vmatprep.subr.bf16.mxu0 0
    %1963 = vmatpush2.bf16.msra.mxu0 %v1854
    %1964 = vmatprep.subr.bf16.mxu0 0
    %1965 = vmatpush2.bf16.msra.mxu0 %v1853
    %1966 = vmatprep.mubr.bf16.mxu0 %v1631
    %1967 = vmatmul.mubr.bf16.gmra.mxu0 %v1630
    %v1968 = vpop.f32.mrf.mxu0
    %v1969 = vadd.f32 %v1928, %v1968
    %v1970 = vpop.f32.mrf.mxu0
    %v1971 = vpop.f32.mrf.mxu0
    %v1972 = vadd.f32 %v1931, %v1971
    %v1973 = vpop.f32.mrf.mxu0
    %1974 = vdwg.mxu0
    %v1975 = vlaneseq
    %v1976 = vshrl.u32 %v1975, 7
    %v1977 = vsub.s32 2, %v1976
    %v1978 = vrot.slane %v1072, %v1977
    %v1979 = vmul.f32 %v1969, %v1978
    %v1980 = vmul.f32 %v1972, %v1978
    %v1981 = vadd.f32 %v1979, %v1069
    %v1982 = vadd.f32 %v1980, %v1070
    %s1983 = scalar_lea.vmem %s3, 8
    %v1984 = vld [vmem:[%s1983] sm:$0xf]
    %v1985 = vlaneseq
    %v1986 = vshrl.u32 %v1985, 7
    %v1987 = vsub.s32 0, %v1986
    %v1988 = vrot.slane %v1984, %v1987
    %v1989 = vmul.f32 %v1981, %v1988
    %v1990 = vmul.f32 %v1982, %v1988
    %v1991 = vlaneseq
    %v1992 = vshrl.u32 %v1991, 7
    %v1993 = vsub.s32 1, %v1992
    %v1994 = vrot.slane %v1984, %v1993
    %v1995 = vadd.f32 %v1989, %v1994
    %v1996 = vadd.f32 %v1990, %v1994
    %v1997 = vpack.c.bf16 %v1996, %v1995
    %s1998 = scalar_lea.vmem %s5, 512
    %v1999 = vld [vmem:[%s1998] sm:$0xff]
    %v2000 = vld [vmem:[%s1998 + $0x8] sm:$0xff]
    %v2001 = vld [vmem:[%s1998 + $0x10] sm:$0xff]
    %v2002 = vld [vmem:[%s1998 + $0x18] sm:$0xff]
    %v2003 = vld [vmem:[%s1998 + $0x20] sm:$0xff]
    %v2004 = vld [vmem:[%s1998 + $0x28] sm:$0xff]
    %v2005 = vld [vmem:[%s1998 + $0x30] sm:$0xff]
    %v2006 = vld [vmem:[%s1998 + $0x38] sm:$0xff]
    %v2007 = vld [vmem:[%s1998 + $0x40] sm:$0xff]
    %v2008 = vld [vmem:[%s1998 + $0x48] sm:$0xff]
    %v2009 = vld [vmem:[%s1998 + $0x50] sm:$0xff]
    %v2010 = vld [vmem:[%s1998 + $0x58] sm:$0xff]
    %v2011 = vld [vmem:[%s1998 + $0x60] sm:$0xff]
    %v2012 = vld [vmem:[%s1998 + $0x68] sm:$0xff]
    %v2013 = vld [vmem:[%s1998 + $0x70] sm:$0xff]
    %v2014 = vld [vmem:[%s1998 + $0x78] sm:$0xff]
    %v2015 = vld [vmem:[%s1998 + $0x80] sm:$0xff]
    %v2016 = vld [vmem:[%s1998 + $0x88] sm:$0xff]
    %v2017 = vld [vmem:[%s1998 + $0x90] sm:$0xff]
    %v2018 = vld [vmem:[%s1998 + $0x98] sm:$0xff]
    %v2019 = vld [vmem:[%s1998 + $0xa0] sm:$0xff]
    %v2020 = vld [vmem:[%s1998 + $0xa8] sm:$0xff]
    %v2021 = vld [vmem:[%s1998 + $0xb0] sm:$0xff]
    %v2022 = vld [vmem:[%s1998 + $0xb8] sm:$0xff]
    %v2023 = vld [vmem:[%s1998 + $0xc0] sm:$0xff]
    %v2024 = vld [vmem:[%s1998 + $0xc8] sm:$0xff]
    %v2025 = vld [vmem:[%s1998 + $0xd0] sm:$0xff]
    %v2026 = vld [vmem:[%s1998 + $0xd8] sm:$0xff]
    %v2027 = vld [vmem:[%s1998 + $0xe0] sm:$0xff]
    %v2028 = vld [vmem:[%s1998 + $0xe8] sm:$0xff]
    %v2029 = vld [vmem:[%s1998 + $0xf0] sm:$0xff]
    %v2030 = vld [vmem:[%s1998 + $0xf8] sm:$0xff]
    %s2031 = scalar_lea.vmem %s4, 8
    %v2032 = vld [vmem:[%s2031] sm:$0xf]
    %v2034 = vlaneseq
    %v2035 = vshrl.u32 %v2034, 7
    %v2036 = vsub.s32 0, %v2035
    %v2037 = vrot.slane %v2032, %v2036
    %v2038 = vlaneseq
    %v2039 = vshrl.u32 %v2038, 7
    %v2040 = vsub.s32 1, %v2039
    %v2041 = vrot.slane %v2032, %v2040
    %v2042 = vlaneseq
    %v2043 = vshrl.u32 %v2042, 7
    %v2044 = vsub.s32 2, %v2043
    %v2045 = vrot.slane %v2032, %v2044
    %v2046 = vlaneseq
    %v2047 = vshrl.u32 %v2046, 7
    %v2048 = vsub.s32 3, %v2047
    %v2049 = vrot.slane %v2032, %v2048
    %v2086 = vunpack.c.l.b16 %v1999
    %v2087 = vunpack.c.h.b16 %v1999
    %v2088 = vunpack.c.l.b16 %v2000
    %v2089 = vunpack.c.h.b16 %v2000
    %v2090 = vunpack.c.l.b16 %v2001
    %v2091 = vunpack.c.h.b16 %v2001
    %v2092 = vunpack.c.l.b16 %v2002
    %v2093 = vunpack.c.h.b16 %v2002
    %v2094 = vunpack.c.l.b16 %v2003
    %v2095 = vunpack.c.h.b16 %v2003
    %v2096 = vunpack.c.l.b16 %v2004
    %v2097 = vunpack.c.h.b16 %v2004
    %v2098 = vunpack.c.l.b16 %v2005
    %v2099 = vunpack.c.h.b16 %v2005
    %v2100 = vunpack.c.l.b16 %v2006
    %v2101 = vunpack.c.h.b16 %v2006
    %v2102 = vunpack.c.l.b16 %v2007
    %v2103 = vunpack.c.h.b16 %v2007
    %v2104 = vunpack.c.l.b16 %v2008
    %v2105 = vunpack.c.h.b16 %v2008
    %v2106 = vunpack.c.l.b16 %v2009
    %v2107 = vunpack.c.h.b16 %v2009
    %v2108 = vunpack.c.l.b16 %v2010
    %v2109 = vunpack.c.h.b16 %v2010
    %v2110 = vunpack.c.l.b16 %v2011
    %v2111 = vunpack.c.h.b16 %v2011
    %v2112 = vunpack.c.l.b16 %v2012
    %v2113 = vunpack.c.h.b16 %v2012
    %v2114 = vunpack.c.l.b16 %v2013
    %v2115 = vunpack.c.h.b16 %v2013
    %v2116 = vunpack.c.l.b16 %v2014
    %v2117 = vunpack.c.h.b16 %v2014
    %v2118 = vunpack.c.l.b16 %v2015
    %v2119 = vunpack.c.h.b16 %v2015
    %v2120 = vunpack.c.l.b16 %v2016
    %v2121 = vunpack.c.h.b16 %v2016
    %v2122 = vunpack.c.l.b16 %v2017
    %v2123 = vunpack.c.h.b16 %v2017
    %v2124 = vunpack.c.l.b16 %v2018
    %v2125 = vunpack.c.h.b16 %v2018
    %v2126 = vunpack.c.l.b16 %v2019
    %v2127 = vunpack.c.h.b16 %v2019
    %v2128 = vunpack.c.l.b16 %v2020
    %v2129 = vunpack.c.h.b16 %v2020
    %v2130 = vunpack.c.l.b16 %v2021
    %v2131 = vunpack.c.h.b16 %v2021
    %v2132 = vunpack.c.l.b16 %v2022
    %v2133 = vunpack.c.h.b16 %v2022
    %v2134 = vunpack.c.l.b16 %v2023
    %v2135 = vunpack.c.h.b16 %v2023
    %v2136 = vunpack.c.l.b16 %v2024
    %v2137 = vunpack.c.h.b16 %v2024
    %v2138 = vunpack.c.l.b16 %v2025
    %v2139 = vunpack.c.h.b16 %v2025
    %v2140 = vunpack.c.l.b16 %v2026
    %v2141 = vunpack.c.h.b16 %v2026
    %v2142 = vunpack.c.l.b16 %v2027
    %v2143 = vunpack.c.h.b16 %v2027
    %v2144 = vunpack.c.l.b16 %v2028
    %v2145 = vunpack.c.h.b16 %v2028
    %v2146 = vunpack.c.l.b16 %v2029
    %v2147 = vunpack.c.h.b16 %v2029
    %v2148 = vunpack.c.l.b16 %v2030
    %v2149 = vunpack.c.h.b16 %v2030
    %v2150 = vpack.c.b16 %v2090, %v2086
    %v2151 = vpack.c.b16 %v2091, %v2087
    %v2152 = vpack.c.b16 %v2092, %v2088
    %v2153 = vpack.c.b16 %v2093, %v2089
    %v2154 = vpack.c.b16 %v2098, %v2094
    %v2155 = vpack.c.b16 %v2099, %v2095
    %v2156 = vpack.c.b16 %v2100, %v2096
    %v2157 = vpack.c.b16 %v2101, %v2097
    %v2158 = vpack.c.b16 %v2106, %v2102
    %v2159 = vpack.c.b16 %v2107, %v2103
    %v2160 = vpack.c.b16 %v2108, %v2104
    %v2161 = vpack.c.b16 %v2109, %v2105
    %v2162 = vpack.c.b16 %v2114, %v2110
    %v2163 = vpack.c.b16 %v2115, %v2111
    %v2164 = vpack.c.b16 %v2116, %v2112
    %v2165 = vpack.c.b16 %v2117, %v2113
    %v2166 = vpack.c.b16 %v2122, %v2118
    %v2167 = vpack.c.b16 %v2123, %v2119
    %v2168 = vpack.c.b16 %v2124, %v2120
    %v2169 = vpack.c.b16 %v2125, %v2121
    %v2170 = vpack.c.b16 %v2130, %v2126
    %v2171 = vpack.c.b16 %v2131, %v2127
    %v2172 = vpack.c.b16 %v2132, %v2128
    %v2173 = vpack.c.b16 %v2133, %v2129
    %v2174 = vpack.c.b16 %v2138, %v2134
    %v2175 = vpack.c.b16 %v2139, %v2135
    %v2176 = vpack.c.b16 %v2140, %v2136
    %v2177 = vpack.c.b16 %v2141, %v2137
    %v2178 = vpack.c.b16 %v2146, %v2142
    %v2179 = vpack.c.b16 %v2147, %v2143
    %v2180 = vpack.c.b16 %v2148, %v2144
    %v2181 = vpack.c.b16 %v2149, %v2145
    %2214 = vmatprep.subr.bf16.mxu0 %v2179
    %2215 = vmatpush1.bf16.msra.mxu0 %v2178
    %2216 = vmatprep.subr.bf16.mxu0 %v2175
    %2217 = vmatpush1.bf16.msra.mxu0 %v2174
    %2218 = vmatprep.subr.bf16.mxu0 %v2171
    %2219 = vmatpush1.bf16.msra.mxu0 %v2170
    %2220 = vmatprep.subr.bf16.mxu0 %v2167
    %2221 = vmatpush1.bf16.msra.mxu0 %v2166
    %2222 = vmatprep.subr.bf16.mxu0 %v2163
    %2223 = vmatpush1.bf16.msra.mxu0 %v2162
    %2224 = vmatprep.subr.bf16.mxu0 %v2159
    %2225 = vmatpush1.bf16.msra.mxu0 %v2158
    %2226 = vmatprep.subr.bf16.mxu0 %v2155
    %2227 = vmatpush1.bf16.msra.mxu0 %v2154
    %2228 = vmatprep.subr.bf16.mxu0 %v2151
    %2229 = vmatpush1.bf16.msra.mxu0 %v2150
    %2230 = vmatprep.subr.bf16.mxu0 0
    %2231 = vmatpush2.bf16.msra.mxu0 0
    %2232 = vmatprep.subr.bf16.mxu0 0
    %2233 = vmatpush2.bf16.msra.mxu0 0
    %2234 = vmatprep.subr.bf16.mxu0 0
    %2235 = vmatpush2.bf16.msra.mxu0 0
    %2236 = vmatprep.subr.bf16.mxu0 0
    %2237 = vmatpush2.bf16.msra.mxu0 0
    %2238 = vmatprep.subr.bf16.mxu0 0
    %2239 = vmatpush2.bf16.msra.mxu0 0
    %2240 = vmatprep.subr.bf16.mxu0 0
    %2241 = vmatpush2.bf16.msra.mxu0 0
    %2242 = vmatprep.subr.bf16.mxu0 0
    %2243 = vmatpush2.bf16.msra.mxu0 0
    %2244 = vmatprep.subr.bf16.mxu0 0
    %2245 = vmatpush2.bf16.msra.mxu0 0
    %2246 = vmatprep.mubr.bf16.mxu0 0
    %2247 = vmatmul.mubr.bf16.gmra.mxu0 %v1997
    %v2248 = vpop.f32.mrf.mxu0
    %v2249 = vadd.f32 %v2037, %v2248
    %v2250 = vpop.f32.mrf.mxu0
    %v2251 = vadd.f32 %v2041, %v2250
    %v2252 = vpop.f32.mrf.mxu0
    %v2253 = vadd.f32 %v2037, %v2252
    %v2254 = vpop.f32.mrf.mxu0
    %v2255 = vadd.f32 %v2041, %v2254
    %2256 = vdwg.mxu0
    %2257 = vmatprep.subr.bf16.mxu0 %v2181
    %2258 = vmatpush1.bf16.msra.mxu0 %v2180
    %2259 = vmatprep.subr.bf16.mxu0 %v2177
    %2260 = vmatpush1.bf16.msra.mxu0 %v2176
    %2261 = vmatprep.subr.bf16.mxu0 %v2173
    %2262 = vmatpush1.bf16.msra.mxu0 %v2172
    %2263 = vmatprep.subr.bf16.mxu0 %v2169
    %2264 = vmatpush1.bf16.msra.mxu0 %v2168
    %2265 = vmatprep.subr.bf16.mxu0 %v2165
    %2266 = vmatpush1.bf16.msra.mxu0 %v2164
    %2267 = vmatprep.subr.bf16.mxu0 %v2161
    %2268 = vmatpush1.bf16.msra.mxu0 %v2160
    %2269 = vmatprep.subr.bf16.mxu0 %v2157
    %2270 = vmatpush1.bf16.msra.mxu0 %v2156
    %2271 = vmatprep.subr.bf16.mxu0 %v2153
    %2272 = vmatpush1.bf16.msra.mxu0 %v2152
    %2273 = vmatprep.subr.bf16.mxu0 0
    %2274 = vmatpush2.bf16.msra.mxu0 0
    %2275 = vmatprep.subr.bf16.mxu0 0
    %2276 = vmatpush2.bf16.msra.mxu0 0
    %2277 = vmatprep.subr.bf16.mxu0 0
    %2278 = vmatpush2.bf16.msra.mxu0 0
    %2279 = vmatprep.subr.bf16.mxu0 0
    %2280 = vmatpush2.bf16.msra.mxu0 0
    %2281 = vmatprep.subr.bf16.mxu0 0
    %2282 = vmatpush2.bf16.msra.mxu0 0
    %2283 = vmatprep.subr.bf16.mxu0 0
    %2284 = vmatpush2.bf16.msra.mxu0 0
    %2285 = vmatprep.subr.bf16.mxu0 0
    %2286 = vmatpush2.bf16.msra.mxu0 0
    %2287 = vmatprep.subr.bf16.mxu0 0
    %2288 = vmatpush2.bf16.msra.mxu0 0
    %2289 = vmatprep.mubr.bf16.mxu0 0
    %2290 = vmatmul.mubr.bf16.gmra.mxu0 %v1997
    %v2291 = vpop.f32.mrf.mxu0
    %v2292 = vadd.f32 %v2045, %v2291
    %v2293 = vpop.f32.mrf.mxu0
    %v2294 = vadd.f32 %v2049, %v2293
    %v2295 = vpop.f32.mrf.mxu0
    %v2296 = vadd.f32 %v2045, %v2295
    %v2297 = vpop.f32.mrf.mxu0
    %v2298 = vadd.f32 %v2049, %v2297
    %2299 = vdwg.mxu0
    %v2300 = vmul.f32 %v2249, 0.5
    %v2301 = vmul.f32 %v2251, 0.5
    %v2302 = vmul.f32 %v2292, 0.5
    %v2303 = vmul.f32 %v2294, 0.5
    %v2304 = vmul.f32 %v2253, 0.5
    %v2305 = vmul.f32 %v2255, 0.5
    %v2306 = vmul.f32 %v2296, 0.5
    %v2307 = vmul.f32 %v2298, 0.5
    %v2308 = vmul.f32 %v2249, 0.70710677
    %v2309 = vmul.f32 %v2251, 0.70710677
    %v2310 = vmul.f32 %v2292, 0.70710677
    %v2311 = vmul.f32 %v2294, 0.70710677
    %v2312 = vmul.f32 %v2253, 0.70710677
    %v2313 = vmul.f32 %v2255, 0.70710677
    %v2314 = vmul.f32 %v2296, 0.70710677
    %v2315 = vmul.f32 %v2298, 0.70710677
    %v2316 = vmax.f32 %v2308, -4.0
    %v2317 = vmax.f32 %v2309, -4.0
    %v2318 = vmax.f32 %v2310, -4.0
    %v2319 = vmax.f32 %v2311, -4.0
    %v2320 = vmax.f32 %v2312, -4.0
    %v2321 = vmax.f32 %v2313, -4.0
    %v2322 = vmax.f32 %v2314, -4.0
    %v2323 = vmax.f32 %v2315, -4.0
    %v2324 = vmin.f32 %v2316, 4.0
    %v2325 = vmin.f32 %v2317, 4.0
    %v2326 = vmin.f32 %v2318, 4.0
    %v2327 = vmin.f32 %v2319, 4.0
    %v2328 = vmin.f32 %v2320, 4.0
    %v2329 = vmin.f32 %v2321, 4.0
    %v2330 = vmin.f32 %v2322, 4.0
    %v2331 = vmin.f32 %v2323, 4.0
    %v2332 = vmul.f32 %v2324, %v2324
    %v2333 = vmul.f32 %v2325, %v2325
    %v2334 = vmul.f32 %v2326, %v2326
    %v2335 = vmul.f32 %v2327, %v2327
    %v2336 = vmul.f32 %v2328, %v2328
    %v2337 = vmul.f32 %v2329, %v2329
    %v2338 = vmul.f32 %v2330, %v2330
    %v2339 = vmul.f32 %v2331, %v2331
    %v2340 = vmul.f32 %v2332, -2.7261424e-10
    %v2341 = vmul.f32 %v2333, -2.7261424e-10
    %v2342 = vmul.f32 %v2334, -2.7261424e-10
    %v2343 = vmul.f32 %v2335, -2.7261424e-10
    %v2344 = vmul.f32 %v2336, -2.7261424e-10
    %v2345 = vmul.f32 %v2337, -2.7261424e-10
    %v2346 = vmul.f32 %v2338, -2.7261424e-10
    %v2347 = vmul.f32 %v2339, -2.7261424e-10
    %v2348 = vadd.f32 %v2340, 2.7706815e-08
    %v2349 = vadd.f32 %v2341, 2.7706815e-08
    %v2350 = vadd.f32 %v2342, 2.7706815e-08
    %v2351 = vadd.f32 %v2343, 2.7706815e-08
    %v2352 = vadd.f32 %v2344, 2.7706815e-08
    %v2353 = vadd.f32 %v2345, 2.7706815e-08
    %v2354 = vadd.f32 %v2346, 2.7706815e-08
    %v2355 = vadd.f32 %v2347, 2.7706815e-08
    %v2356 = vmul.f32 %v2332, %v2348
    %v2357 = vmul.f32 %v2333, %v2349
    %v2358 = vmul.f32 %v2334, %v2350
    %v2359 = vmul.f32 %v2335, %v2351
    %v2360 = vmul.f32 %v2336, %v2352
    %v2361 = vmul.f32 %v2337, %v2353
    %v2362 = vmul.f32 %v2338, %v2354
    %v2363 = vmul.f32 %v2339, %v2355
    %v2364 = vadd.f32 %v2356, -2.101024e-06
    %v2365 = vadd.f32 %v2357, -2.101024e-06
    %v2366 = vadd.f32 %v2358, -2.101024e-06
    %v2367 = vadd.f32 %v2359, -2.101024e-06
    %v2368 = vadd.f32 %v2360, -2.101024e-06
    %v2369 = vadd.f32 %v2361, -2.101024e-06
    %v2370 = vadd.f32 %v2362, -2.101024e-06
    %v2371 = vadd.f32 %v2363, -2.101024e-06
    %v2372 = vmul.f32 %v2332, %v2364
    %v2373 = vmul.f32 %v2333, %v2365
    %v2374 = vmul.f32 %v2334, %v2366
    %v2375 = vmul.f32 %v2335, %v2367
    %v2376 = vmul.f32 %v2336, %v2368
    %v2377 = vmul.f32 %v2337, %v2369
    %v2378 = vmul.f32 %v2338, %v2370
    %v2379 = vmul.f32 %v2339, %v2371
    %v2380 = vadd.f32 %v2372, -5.6925062e-05
    %v2381 = vadd.f32 %v2373, -5.6925062e-05
    %v2382 = vadd.f32 %v2374, -5.6925062e-05
    %v2383 = vadd.f32 %v2375, -5.6925062e-05
    %v2384 = vadd.f32 %v2376, -5.6925062e-05
    %v2385 = vadd.f32 %v2377, -5.6925062e-05
    %v2386 = vadd.f32 %v2378, -5.6925062e-05
    %v2387 = vadd.f32 %v2379, -5.6925062e-05
    %v2388 = vmul.f32 %v2332, %v2380
    %v2389 = vmul.f32 %v2333, %v2381
    %v2390 = vmul.f32 %v2334, %v2382
    %v2391 = vmul.f32 %v2335, %v2383
    %v2392 = vmul.f32 %v2336, %v2384
    %v2393 = vmul.f32 %v2337, %v2385
    %v2394 = vmul.f32 %v2338, %v2386
    %v2395 = vmul.f32 %v2339, %v2387
    %v2396 = vadd.f32 %v2388, -0.00073499064
    %v2397 = vadd.f32 %v2389, -0.00073499064
    %v2398 = vadd.f32 %v2390, -0.00073499064
    %v2399 = vadd.f32 %v2391, -0.00073499064
    %v2400 = vadd.f32 %v2392, -0.00073499064
    %v2401 = vadd.f32 %v2393, -0.00073499064
    %v2402 = vadd.f32 %v2394, -0.00073499064
    %v2403 = vadd.f32 %v2395, -0.00073499064
    %v2404 = vmul.f32 %v2332, %v2396
    %v2405 = vmul.f32 %v2333, %v2397
    %v2406 = vmul.f32 %v2334, %v2398
    %v2407 = vmul.f32 %v2335, %v2399
    %v2408 = vmul.f32 %v2336, %v2400
    %v2409 = vmul.f32 %v2337, %v2401
    %v2410 = vmul.f32 %v2338, %v2402
    %v2411 = vmul.f32 %v2339, %v2403
    %v2412 = vadd.f32 %v2404, -0.0029546
    %v2413 = vadd.f32 %v2405, -0.0029546
    %v2414 = vadd.f32 %v2406, -0.0029546
    %v2415 = vadd.f32 %v2407, -0.0029546
    %v2416 = vadd.f32 %v2408, -0.0029546
    %v2417 = vadd.f32 %v2409, -0.0029546
    %v2418 = vadd.f32 %v2410, -0.0029546
    %v2419 = vadd.f32 %v2411, -0.0029546
    %v2420 = vmul.f32 %v2332, %v2412
    %v2421 = vmul.f32 %v2333, %v2413
    %v2422 = vmul.f32 %v2334, %v2414
    %v2423 = vmul.f32 %v2335, %v2415
    %v2424 = vmul.f32 %v2336, %v2416
    %v2425 = vmul.f32 %v2337, %v2417
    %v2426 = vmul.f32 %v2338, %v2418
    %v2427 = vmul.f32 %v2339, %v2419
    %v2428 = vadd.f32 %v2420, -0.016096033
    %v2429 = vadd.f32 %v2421, -0.016096033
    %v2430 = vadd.f32 %v2422, -0.016096033
    %v2431 = vadd.f32 %v2423, -0.016096033
    %v2432 = vadd.f32 %v2424, -0.016096033
    %v2433 = vadd.f32 %v2425, -0.016096033
    %v2434 = vadd.f32 %v2426, -0.016096033
    %v2435 = vadd.f32 %v2427, -0.016096033
    %v2436 = vmul.f32 %v2324, %v2428
    %v2437 = vmul.f32 %v2325, %v2429
    %v2438 = vmul.f32 %v2326, %v2430
    %v2439 = vmul.f32 %v2327, %v2431
    %v2440 = vmul.f32 %v2328, %v2432
    %v2441 = vmul.f32 %v2329, %v2433
    %v2442 = vmul.f32 %v2330, %v2434
    %v2443 = vmul.f32 %v2331, %v2435
    %v2444 = vmul.f32 %v2332, -1.45660715e-05
    %v2445 = vmul.f32 %v2333, -1.45660715e-05
    %v2446 = vmul.f32 %v2334, -1.45660715e-05
    %v2447 = vmul.f32 %v2335, -1.45660715e-05
    %v2448 = vmul.f32 %v2336, -1.45660715e-05
    %v2449 = vmul.f32 %v2337, -1.45660715e-05
    %v2450 = vmul.f32 %v2338, -1.45660715e-05
    %v2451 = vmul.f32 %v2339, -1.45660715e-05
    %v2452 = vadd.f32 %v2444, -0.00021337405
    %v2453 = vadd.f32 %v2445, -0.00021337405
    %v2454 = vadd.f32 %v2446, -0.00021337405
    %v2455 = vadd.f32 %v2447, -0.00021337405
    %v2456 = vadd.f32 %v2448, -0.00021337405
    %v2457 = vadd.f32 %v2449, -0.00021337405
    %v2458 = vadd.f32 %v2450, -0.00021337405
    %v2459 = vadd.f32 %v2451, -0.00021337405
    %v2460 = vmul.f32 %v2332, %v2452
    %v2461 = vmul.f32 %v2333, %v2453
    %v2462 = vmul.f32 %v2334, %v2454
    %v2463 = vmul.f32 %v2335, %v2455
    %v2464 = vmul.f32 %v2336, %v2456
    %v2465 = vmul.f32 %v2337, %v2457
    %v2466 = vmul.f32 %v2338, %v2458
    %v2467 = vmul.f32 %v2339, %v2459
    %v2468 = vadd.f32 %v2460, -0.001682827
    %v2469 = vadd.f32 %v2461, -0.001682827
    %v2470 = vadd.f32 %v2462, -0.001682827
    %v2471 = vadd.f32 %v2463, -0.001682827
    %v2472 = vadd.f32 %v2464, -0.001682827
    %v2473 = vadd.f32 %v2465, -0.001682827
    %v2474 = vadd.f32 %v2466, -0.001682827
    %v2475 = vadd.f32 %v2467, -0.001682827
    %v2476 = vmul.f32 %v2332, %v2468
    %v2477 = vmul.f32 %v2333, %v2469
    %v2478 = vmul.f32 %v2334, %v2470
    %v2479 = vmul.f32 %v2335, %v2471
    %v2480 = vmul.f32 %v2336, %v2472
    %v2481 = vmul.f32 %v2337, %v2473
    %v2482 = vmul.f32 %v2338, %v2474
    %v2483 = vmul.f32 %v2339, %v2475
    %v2484 = vadd.f32 %v2476, -0.0073733293
    %v2485 = vadd.f32 %v2477, -0.0073733293
    %v2486 = vadd.f32 %v2478, -0.0073733293
    %v2487 = vadd.f32 %v2479, -0.0073733293
    %v2488 = vadd.f32 %v2480, -0.0073733293
    %v2489 = vadd.f32 %v2481, -0.0073733293
    %v2490 = vadd.f32 %v2482, -0.0073733293
    %v2491 = vadd.f32 %v2483, -0.0073733293
    %v2492 = vmul.f32 %v2332, %v2484
    %v2493 = vmul.f32 %v2333, %v2485
    %v2494 = vmul.f32 %v2334, %v2486
    %v2495 = vmul.f32 %v2335, %v2487
    %v2496 = vmul.f32 %v2336, %v2488
    %v2497 = vmul.f32 %v2337, %v2489
    %v2498 = vmul.f32 %v2338, %v2490
    %v2499 = vmul.f32 %v2339, %v2491
    %v2500 = vadd.f32 %v2492, -0.014264739
    %v2501 = vadd.f32 %v2493, -0.014264739
    %v2502 = vadd.f32 %v2494, -0.014264739
    %v2503 = vadd.f32 %v2495, -0.014264739
    %v2504 = vadd.f32 %v2496, -0.014264739
    %v2505 = vadd.f32 %v2497, -0.014264739
    %v2506 = vadd.f32 %v2498, -0.014264739
    %v2507 = vadd.f32 %v2499, -0.014264739
    %v2508 = vrcp.pop %v2500
    %v2509 = vrcp.pop %v2501
    %v2510 = vrcp.pop %v2502
    %v2511 = vrcp.pop %v2503
    %v2512 = vrcp.pop %v2504
    %v2513 = vrcp.pop %v2505
    %v2514 = vrcp.pop %v2506
    %v2515 = vrcp.pop %v2507
    %v2516 = vmul.f32 %v2436, %v2508
    %v2517 = vmul.f32 %v2437, %v2509
    %v2518 = vmul.f32 %v2438, %v2510
    %v2519 = vmul.f32 %v2439, %v2511
    %v2520 = vmul.f32 %v2440, %v2512
    %v2521 = vmul.f32 %v2441, %v2513
    %v2522 = vmul.f32 %v2442, %v2514
    %v2523 = vmul.f32 %v2443, %v2515
    %v2524 = vadd.f32 %v2516, 1.0
    %v2525 = vadd.f32 %v2517, 1.0
    %v2526 = vadd.f32 %v2518, 1.0
    %v2527 = vadd.f32 %v2519, 1.0
    %v2528 = vadd.f32 %v2520, 1.0
    %v2529 = vadd.f32 %v2521, 1.0
    %v2530 = vadd.f32 %v2522, 1.0
    %v2531 = vadd.f32 %v2523, 1.0
    %v2532 = vmul.f32 %v2300, %v2524
    %v2533 = vmul.f32 %v2301, %v2525
    %v2534 = vmul.f32 %v2302, %v2526
    %v2535 = vmul.f32 %v2303, %v2527
    %v2536 = vmul.f32 %v2304, %v2528
    %v2537 = vmul.f32 %v2305, %v2529
    %v2538 = vmul.f32 %v2306, %v2530
    %v2539 = vmul.f32 %v2307, %v2531
    %v2540 = vpack.c.bf16 %v2536, %v2532
    %v2541 = vpack.c.bf16 %v2537, %v2533
    %v2542 = vpack.c.bf16 %v2538, %v2534
    %v2543 = vpack.c.bf16 %v2539, %v2535
    %s2544 = scalar_lea.vmem %s6, 512
    %v2545 = vld [vmem:[%s2544] sm:$0xf]
    %v2546 = vld [vmem:[%s2544 + $0x4] sm:$0xf]
    %v2547 = vld [vmem:[%s2544 + $0x8] sm:$0xf]
    %v2548 = vld [vmem:[%s2544 + $0xc] sm:$0xf]
    %v2549 = vld [vmem:[%s2544 + $0x10] sm:$0xf]
    %v2550 = vld [vmem:[%s2544 + $0x14] sm:$0xf]
    %v2551 = vld [vmem:[%s2544 + $0x18] sm:$0xf]
    %v2552 = vld [vmem:[%s2544 + $0x1c] sm:$0xf]
    %v2553 = vld [vmem:[%s2544 + $0x20] sm:$0xf]
    %v2554 = vld [vmem:[%s2544 + $0x24] sm:$0xf]
    %v2555 = vld [vmem:[%s2544 + $0x28] sm:$0xf]
    %v2556 = vld [vmem:[%s2544 + $0x2c] sm:$0xf]
    %v2557 = vld [vmem:[%s2544 + $0x30] sm:$0xf]
    %v2558 = vld [vmem:[%s2544 + $0x34] sm:$0xf]
    %v2559 = vld [vmem:[%s2544 + $0x38] sm:$0xf]
    %v2560 = vld [vmem:[%s2544 + $0x3c] sm:$0xf]
    %v2561 = vld [vmem:[%s2544 + $0x40] sm:$0xf]
    %v2562 = vld [vmem:[%s2544 + $0x44] sm:$0xf]
    %v2563 = vld [vmem:[%s2544 + $0x48] sm:$0xf]
    %v2564 = vld [vmem:[%s2544 + $0x4c] sm:$0xf]
    %v2565 = vld [vmem:[%s2544 + $0x50] sm:$0xf]
    %v2566 = vld [vmem:[%s2544 + $0x54] sm:$0xf]
    %v2567 = vld [vmem:[%s2544 + $0x58] sm:$0xf]
    %v2568 = vld [vmem:[%s2544 + $0x5c] sm:$0xf]
    %v2569 = vld [vmem:[%s2544 + $0x60] sm:$0xf]
    %v2570 = vld [vmem:[%s2544 + $0x64] sm:$0xf]
    %v2571 = vld [vmem:[%s2544 + $0x68] sm:$0xf]
    %v2572 = vld [vmem:[%s2544 + $0x6c] sm:$0xf]
    %v2573 = vld [vmem:[%s2544 + $0x70] sm:$0xf]
    %v2574 = vld [vmem:[%s2544 + $0x74] sm:$0xf]
    %v2575 = vld [vmem:[%s2544 + $0x78] sm:$0xf]
    %v2576 = vld [vmem:[%s2544 + $0x7c] sm:$0xf]
    %v2577 = vld [vmem:[%s2544 + $0x80] sm:$0xf]
    %v2578 = vld [vmem:[%s2544 + $0x84] sm:$0xf]
    %v2579 = vld [vmem:[%s2544 + $0x88] sm:$0xf]
    %v2580 = vld [vmem:[%s2544 + $0x8c] sm:$0xf]
    %v2581 = vld [vmem:[%s2544 + $0x90] sm:$0xf]
    %v2582 = vld [vmem:[%s2544 + $0x94] sm:$0xf]
    %v2583 = vld [vmem:[%s2544 + $0x98] sm:$0xf]
    %v2584 = vld [vmem:[%s2544 + $0x9c] sm:$0xf]
    %v2585 = vld [vmem:[%s2544 + $0xa0] sm:$0xf]
    %v2586 = vld [vmem:[%s2544 + $0xa4] sm:$0xf]
    %v2587 = vld [vmem:[%s2544 + $0xa8] sm:$0xf]
    %v2588 = vld [vmem:[%s2544 + $0xac] sm:$0xf]
    %v2589 = vld [vmem:[%s2544 + $0xb0] sm:$0xf]
    %v2590 = vld [vmem:[%s2544 + $0xb4] sm:$0xf]
    %v2591 = vld [vmem:[%s2544 + $0xb8] sm:$0xf]
    %v2592 = vld [vmem:[%s2544 + $0xbc] sm:$0xf]
    %v2593 = vld [vmem:[%s2544 + $0xc0] sm:$0xf]
    %v2594 = vld [vmem:[%s2544 + $0xc4] sm:$0xf]
    %v2595 = vld [vmem:[%s2544 + $0xc8] sm:$0xf]
    %v2596 = vld [vmem:[%s2544 + $0xcc] sm:$0xf]
    %v2597 = vld [vmem:[%s2544 + $0xd0] sm:$0xf]
    %v2598 = vld [vmem:[%s2544 + $0xd4] sm:$0xf]
    %v2599 = vld [vmem:[%s2544 + $0xd8] sm:$0xf]
    %v2600 = vld [vmem:[%s2544 + $0xdc] sm:$0xf]
    %v2601 = vld [vmem:[%s2544 + $0xe0] sm:$0xf]
    %v2602 = vld [vmem:[%s2544 + $0xe4] sm:$0xf]
    %v2603 = vld [vmem:[%s2544 + $0xe8] sm:$0xf]
    %v2604 = vld [vmem:[%s2544 + $0xec] sm:$0xf]
    %v2605 = vld [vmem:[%s2544 + $0xf0] sm:$0xf]
    %v2606 = vld [vmem:[%s2544 + $0xf4] sm:$0xf]
    %v2607 = vld [vmem:[%s2544 + $0xf8] sm:$0xf]
    %v2608 = vld [vmem:[%s2544 + $0xfc] sm:$0xf]
    %v2609 = vlaneseq
    %v2610 = vshrl.u32 %v2609, 7
    %v2611 = vsub.s32 3, %v2610
    %v2612 = vrot.slane %v1984, %v2611
    %v2677 = vunpack.c.l.b16 %v2545
    %v2678 = vunpack.c.l.b16 %v2546
    %v2679 = vunpack.c.l.b16 %v2547
    %v2680 = vunpack.c.l.b16 %v2548
    %v2681 = vunpack.c.l.b16 %v2549
    %v2682 = vunpack.c.l.b16 %v2550
    %v2683 = vunpack.c.l.b16 %v2551
    %v2684 = vunpack.c.l.b16 %v2552
    %v2685 = vunpack.c.l.b16 %v2553
    %v2686 = vunpack.c.l.b16 %v2554
    %v2687 = vunpack.c.l.b16 %v2555
    %v2688 = vunpack.c.l.b16 %v2556
    %v2689 = vunpack.c.l.b16 %v2557
    %v2690 = vunpack.c.l.b16 %v2558
    %v2691 = vunpack.c.l.b16 %v2559
    %v2692 = vunpack.c.l.b16 %v2560
    %v2693 = vunpack.c.l.b16 %v2561
    %v2694 = vunpack.c.l.b16 %v2562
    %v2695 = vunpack.c.l.b16 %v2563
    %v2696 = vunpack.c.l.b16 %v2564
    %v2697 = vunpack.c.l.b16 %v2565
    %v2698 = vunpack.c.l.b16 %v2566
    %v2699 = vunpack.c.l.b16 %v2567
    %v2700 = vunpack.c.l.b16 %v2568
    %v2701 = vunpack.c.l.b16 %v2569
    %v2702 = vunpack.c.l.b16 %v2570
    %v2703 = vunpack.c.l.b16 %v2571
    %v2704 = vunpack.c.l.b16 %v2572
    %v2705 = vunpack.c.l.b16 %v2573
    %v2706 = vunpack.c.l.b16 %v2574
    %v2707 = vunpack.c.l.b16 %v2575
    %v2708 = vunpack.c.l.b16 %v2576
    %v2709 = vunpack.c.l.b16 %v2577
    %v2710 = vunpack.c.l.b16 %v2578
    %v2711 = vunpack.c.l.b16 %v2579
    %v2712 = vunpack.c.l.b16 %v2580
    %v2713 = vunpack.c.l.b16 %v2581
    %v2714 = vunpack.c.l.b16 %v2582
    %v2715 = vunpack.c.l.b16 %v2583
    %v2716 = vunpack.c.l.b16 %v2584
    %v2717 = vunpack.c.l.b16 %v2585
    %v2718 = vunpack.c.l.b16 %v2586
    %v2719 = vunpack.c.l.b16 %v2587
    %v2720 = vunpack.c.l.b16 %v2588
    %v2721 = vunpack.c.l.b16 %v2589
    %v2722 = vunpack.c.l.b16 %v2590
    %v2723 = vunpack.c.l.b16 %v2591
    %v2724 = vunpack.c.l.b16 %v2592
    %v2725 = vunpack.c.l.b16 %v2593
    %v2726 = vunpack.c.l.b16 %v2594
    %v2727 = vunpack.c.l.b16 %v2595
    %v2728 = vunpack.c.l.b16 %v2596
    %v2729 = vunpack.c.l.b16 %v2597
    %v2730 = vunpack.c.l.b16 %v2598
    %v2731 = vunpack.c.l.b16 %v2599
    %v2732 = vunpack.c.l.b16 %v2600
    %v2733 = vunpack.c.l.b16 %v2601
    %v2734 = vunpack.c.l.b16 %v2602
    %v2735 = vunpack.c.l.b16 %v2603
    %v2736 = vunpack.c.l.b16 %v2604
    %v2737 = vunpack.c.l.b16 %v2605
    %v2738 = vunpack.c.l.b16 %v2606
    %v2739 = vunpack.c.l.b16 %v2607
    %v2740 = vunpack.c.l.b16 %v2608
    %v2741 = vpack.c.b16 %v2678, %v2677
    %v2742 = vpack.c.b16 %v2680, %v2679
    %v2743 = vpack.c.b16 %v2682, %v2681
    %v2744 = vpack.c.b16 %v2684, %v2683
    %v2745 = vpack.c.b16 %v2686, %v2685
    %v2746 = vpack.c.b16 %v2688, %v2687
    %v2747 = vpack.c.b16 %v2690, %v2689
    %v2748 = vpack.c.b16 %v2692, %v2691
    %v2749 = vpack.c.b16 %v2694, %v2693
    %v2750 = vpack.c.b16 %v2696, %v2695
    %v2751 = vpack.c.b16 %v2698, %v2697
    %v2752 = vpack.c.b16 %v2700, %v2699
    %v2753 = vpack.c.b16 %v2702, %v2701
    %v2754 = vpack.c.b16 %v2704, %v2703
    %v2755 = vpack.c.b16 %v2706, %v2705
    %v2756 = vpack.c.b16 %v2708, %v2707
    %v2757 = vpack.c.b16 %v2710, %v2709
    %v2758 = vpack.c.b16 %v2712, %v2711
    %v2759 = vpack.c.b16 %v2714, %v2713
    %v2760 = vpack.c.b16 %v2716, %v2715
    %v2761 = vpack.c.b16 %v2718, %v2717
    %v2762 = vpack.c.b16 %v2720, %v2719
    %v2763 = vpack.c.b16 %v2722, %v2721
    %v2764 = vpack.c.b16 %v2724, %v2723
    %v2765 = vpack.c.b16 %v2726, %v2725
    %v2766 = vpack.c.b16 %v2728, %v2727
    %v2767 = vpack.c.b16 %v2730, %v2729
    %v2768 = vpack.c.b16 %v2732, %v2731
    %v2769 = vpack.c.b16 %v2734, %v2733
    %v2770 = vpack.c.b16 %v2736, %v2735
    %v2771 = vpack.c.b16 %v2738, %v2737
    %v2772 = vpack.c.b16 %v2740, %v2739
    %2805 = vmatprep.subr.bf16.mxu0 0
    %2806 = vmatpush1.bf16.msra.mxu0 %v2748
    %2807 = vmatprep.subr.bf16.mxu0 0
    %2808 = vmatpush1.bf16.msra.mxu0 %v2747
    %2809 = vmatprep.subr.bf16.mxu0 0
    %2810 = vmatpush1.bf16.msra.mxu0 %v2746
    %2811 = vmatprep.subr.bf16.mxu0 0
    %2812 = vmatpush1.bf16.msra.mxu0 %v2745
    %2813 = vmatprep.subr.bf16.mxu0 0
    %2814 = vmatpush1.bf16.msra.mxu0 %v2744
    %2815 = vmatprep.subr.bf16.mxu0 0
    %2816 = vmatpush1.bf16.msra.mxu0 %v2743
    %2817 = vmatprep.subr.bf16.mxu0 0
    %2818 = vmatpush1.bf16.msra.mxu0 %v2742
    %2819 = vmatprep.subr.bf16.mxu0 0
    %2820 = vmatpush1.bf16.msra.mxu0 %v2741
    %2821 = vmatprep.subr.bf16.mxu0 0
    %2822 = vmatpush2.bf16.msra.mxu0 %v2756
    %2823 = vmatprep.subr.bf16.mxu0 0
    %2824 = vmatpush2.bf16.msra.mxu0 %v2755
    %2825 = vmatprep.subr.bf16.mxu0 0
    %2826 = vmatpush2.bf16.msra.mxu0 %v2754
    %2827 = vmatprep.subr.bf16.mxu0 0
    %2828 = vmatpush2.bf16.msra.mxu0 %v2753
    %2829 = vmatprep.subr.bf16.mxu0 0
    %2830 = vmatpush2.bf16.msra.mxu0 %v2752
    %2831 = vmatprep.subr.bf16.mxu0 0
    %2832 = vmatpush2.bf16.msra.mxu0 %v2751
    %2833 = vmatprep.subr.bf16.mxu0 0
    %2834 = vmatpush2.bf16.msra.mxu0 %v2750
    %2835 = vmatprep.subr.bf16.mxu0 0
    %2836 = vmatpush2.bf16.msra.mxu0 %v2749
    %2837 = vmatprep.mubr.bf16.mxu0 %v2541
    %2838 = vmatmul.mubr.bf16.gmra.mxu0 %v2540
    %v2839 = vpop.f32.mrf.mxu0
    %v2840 = vadd.f32 %v2612, %v2839
    %v2841 = vpop.f32.mrf.mxu0
    %v2842 = vpop.f32.mrf.mxu0
    %v2843 = vadd.f32 %v2612, %v2842
    %v2844 = vpop.f32.mrf.mxu0
    %2845 = vdwg.mxu0
    %2846 = vmatprep.subr.bf16.mxu0 0
    %2847 = vmatpush1.bf16.msra.mxu0 %v2764
    %2848 = vmatprep.subr.bf16.mxu0 0
    %2849 = vmatpush1.bf16.msra.mxu0 %v2763
    %2850 = vmatprep.subr.bf16.mxu0 0
    %2851 = vmatpush1.bf16.msra.mxu0 %v2762
    %2852 = vmatprep.subr.bf16.mxu0 0
    %2853 = vmatpush1.bf16.msra.mxu0 %v2761
    %2854 = vmatprep.subr.bf16.mxu0 0
    %2855 = vmatpush1.bf16.msra.mxu0 %v2760
    %2856 = vmatprep.subr.bf16.mxu0 0
    %2857 = vmatpush1.bf16.msra.mxu0 %v2759
    %2858 = vmatprep.subr.bf16.mxu0 0
    %2859 = vmatpush1.bf16.msra.mxu0 %v2758
    %2860 = vmatprep.subr.bf16.mxu0 0
    %2861 = vmatpush1.bf16.msra.mxu0 %v2757
    %2862 = vmatprep.subr.bf16.mxu0 0
    %2863 = vmatpush2.bf16.msra.mxu0 %v2772
    %2864 = vmatprep.subr.bf16.mxu0 0
    %2865 = vmatpush2.bf16.msra.mxu0 %v2771
    %2866 = vmatprep.subr.bf16.mxu0 0
    %2867 = vmatpush2.bf16.msra.mxu0 %v2770
    %2868 = vmatprep.subr.bf16.mxu0 0
    %2869 = vmatpush2.bf16.msra.mxu0 %v2769
    %2870 = vmatprep.subr.bf16.mxu0 0
    %2871 = vmatpush2.bf16.msra.mxu0 %v2768
    %2872 = vmatprep.subr.bf16.mxu0 0
    %2873 = vmatpush2.bf16.msra.mxu0 %v2767
    %2874 = vmatprep.subr.bf16.mxu0 0
    %2875 = vmatpush2.bf16.msra.mxu0 %v2766
    %2876 = vmatprep.subr.bf16.mxu0 0
    %2877 = vmatpush2.bf16.msra.mxu0 %v2765
    %2878 = vmatprep.mubr.bf16.mxu0 %v2543
    %2879 = vmatmul.mubr.bf16.gmra.mxu0 %v2542
    %v2880 = vpop.f32.mrf.mxu0
    %v2881 = vadd.f32 %v2840, %v2880
    %v2882 = vpop.f32.mrf.mxu0
    %v2883 = vpop.f32.mrf.mxu0
    %v2884 = vadd.f32 %v2843, %v2883
    %v2885 = vpop.f32.mrf.mxu0
    %2886 = vdwg.mxu0
    %v2887 = vlaneseq
    %v2888 = vshrl.u32 %v2887, 7
    %v2889 = vsub.s32 2, %v2888
    %v2890 = vrot.slane %v1984, %v2889
    %v2891 = vmul.f32 %v2881, %v2890
    %v2892 = vmul.f32 %v2884, %v2890
    %v2893 = vadd.f32 %v2891, %v1981
    %v2894 = vadd.f32 %v2892, %v1982
    %v2895 = vld [vmem:[%s7] sm:$0x1]
    %v2897 = vlaneseq
    %v2898 = vshrl.u32 %v2897, 7
    %v2899 = vsub.s32 0, %v2898
    %v2900 = vrot.slane %v2895, %v2899
    %v2902 = vmul.f32 %v2893, %v2900
    %v2903 = vmul.f32 %v2894, %v2900
    %v2904 = vld [vmem:[%s8] sm:$0x1]
    %v2906 = vlaneseq
    %v2907 = vshrl.u32 %v2906, 7
    %v2908 = vsub.s32 0, %v2907
    %v2909 = vrot.slane %v2904, %v2908
    %v2911 = vadd.f32 %v2902, %v2909
    %v2912 = vadd.f32 %v2903, %v2909
    %v2913 = vpack.c.bf16 %v2912, %v2911
    %v2914 = vld [vmem:[%s9] sm:$0x1]
    %vm2915 = vcmask 130048
    %v2917 = vsel %vm2915, %v2914, 0
    %2919 = vmatprep.subr.bf16.mxu0 0
    %2920 = vmatpush1.bf16.msra.mxu0 0
    %2921 = vmatprep.subr.bf16.mxu0 0
    %2922 = vmatpush1.bf16.msra.mxu0 0
    %2923 = vmatprep.subr.bf16.mxu0 0
    %2924 = vmatpush1.bf16.msra.mxu0 0
    %2925 = vmatprep.subr.bf16.mxu0 0
    %2926 = vmatpush1.bf16.msra.mxu0 0
    %2927 = vmatprep.subr.bf16.mxu0 0
    %2928 = vmatpush1.bf16.msra.mxu0 0
    %2929 = vmatprep.subr.bf16.mxu0 0
    %2930 = vmatpush1.bf16.msra.mxu0 0
    %2931 = vmatprep.subr.bf16.mxu0 0
    %2932 = vmatpush1.bf16.msra.mxu0 0
    %2933 = vmatprep.subr.bf16.mxu0 0
    %2934 = vmatpush1.bf16.msra.mxu0 %v2913
    %2935 = vmatprep.subr.bf16.mxu0 0
    %2936 = vmatpush2.bf16.msra.mxu0 0
    %2937 = vmatprep.subr.bf16.mxu0 0
    %2938 = vmatpush2.bf16.msra.mxu0 0
    %2939 = vmatprep.subr.bf16.mxu0 0
    %2940 = vmatpush2.bf16.msra.mxu0 0
    %2941 = vmatprep.subr.bf16.mxu0 0
    %2942 = vmatpush2.bf16.msra.mxu0 0
    %2943 = vmatprep.subr.bf16.mxu0 0
    %2944 = vmatpush2.bf16.msra.mxu0 0
    %2945 = vmatprep.subr.bf16.mxu0 0
    %2946 = vmatpush2.bf16.msra.mxu0 0
    %2947 = vmatprep.subr.bf16.mxu0 0
    %2948 = vmatpush2.bf16.msra.mxu0 0
    %2949 = vmatprep.subr.bf16.mxu0 0
    %2950 = vmatpush2.bf16.msra.mxu0 0
    %2951 = vmatprep.mubr.bf16.mxu0 0
    %2952 = vmatmul.mubr.bf16.gmra.mxu0 %v2917
    %v2953 = vpop.f32.mrf.mxu0
    %v2954 = vadd.f32 0.0, %v2953
    %v2955 = vpop.f32.mrf.mxu0
    %v2956 = vpop.f32.mrf.mxu0
    %v2957 = vpop.f32.mrf.mxu0
    %2958 = vdwg.mxu0
    %v2959 = vmul.f32 %v2954, 0.125
    %v2960 = vpack.c.bf16 %v2959, %v2959
    %v2961 = vld [vmem:[%s10] sm:$0xf]
    %v2962 = vld [vmem:[%s10 + $0x4] sm:$0xf]
    %v2963 = vld [vmem:[%s10 + $0x8] sm:$0xf]
    %v2964 = vld [vmem:[%s10 + $0xc] sm:$0xf]
    %v2965 = vld [vmem:[%s10 + $0x10] sm:$0xf]
    %v2966 = vld [vmem:[%s10 + $0x14] sm:$0xf]
    %v2967 = vld [vmem:[%s10 + $0x18] sm:$0xf]
    %v2968 = vld [vmem:[%s10 + $0x1c] sm:$0xf]
    %v2969 = vld [vmem:[%s10 + $0x20] sm:$0xf]
    %v2970 = vld [vmem:[%s10 + $0x24] sm:$0xf]
    %v2971 = vld [vmem:[%s10 + $0x28] sm:$0xf]
    %v2972 = vld [vmem:[%s10 + $0x2c] sm:$0xf]
    %v2973 = vld [vmem:[%s10 + $0x30] sm:$0xf]
    %v2974 = vld [vmem:[%s10 + $0x34] sm:$0xf]
    %v2975 = vld [vmem:[%s10 + $0x38] sm:$0xf]
    %v2976 = vld [vmem:[%s10 + $0x3c] sm:$0xf]
    %v2977 = vld [vmem:[%s11] sm:$0x1]
    %v2979 = vlaneseq
    %v2980 = vshrl.u32 %v2979, 7
    %v2981 = vsub.s32 0, %v2980
    %v2982 = vrot.slane %v2977, %v2981
    %v3000 = vunpack.c.l.b16 %v2961
    %v3001 = vunpack.c.l.b16 %v2962
    %v3002 = vunpack.c.l.b16 %v2963
    %v3003 = vunpack.c.l.b16 %v2964
    %v3004 = vunpack.c.l.b16 %v2965
    %v3005 = vunpack.c.l.b16 %v2966
    %v3006 = vunpack.c.l.b16 %v2967
    %v3007 = vunpack.c.l.b16 %v2968
    %v3008 = vunpack.c.l.b16 %v2969
    %v3009 = vunpack.c.l.b16 %v2970
    %v3010 = vunpack.c.l.b16 %v2971
    %v3011 = vunpack.c.l.b16 %v2972
    %v3012 = vunpack.c.l.b16 %v2973
    %v3013 = vunpack.c.l.b16 %v2974
    %v3014 = vunpack.c.l.b16 %v2975
    %v3015 = vunpack.c.l.b16 %v2976
    %v3016 = vpack.c.b16 %v3001, %v3000
    %v3017 = vpack.c.b16 %v3003, %v3002
    %v3018 = vpack.c.b16 %v3005, %v3004
    %v3019 = vpack.c.b16 %v3007, %v3006
    %v3020 = vpack.c.b16 %v3009, %v3008
    %v3021 = vpack.c.b16 %v3011, %v3010
    %v3022 = vpack.c.b16 %v3013, %v3012
    %v3023 = vpack.c.b16 %v3015, %v3014
    %3032 = vmatprep.subr.bf16.mxu0 0
    %3033 = vmatpush1.bf16.msra.mxu0 %v3023
    %3034 = vmatprep.subr.bf16.mxu0 0
    %3035 = vmatpush1.bf16.msra.mxu0 %v3022
    %3036 = vmatprep.subr.bf16.mxu0 0
    %3037 = vmatpush1.bf16.msra.mxu0 %v3021
    %3038 = vmatprep.subr.bf16.mxu0 0
    %3039 = vmatpush1.bf16.msra.mxu0 %v3020
    %3040 = vmatprep.subr.bf16.mxu0 0
    %3041 = vmatpush1.bf16.msra.mxu0 %v3019
    %3042 = vmatprep.subr.bf16.mxu0 0
    %3043 = vmatpush1.bf16.msra.mxu0 %v3018
    %3044 = vmatprep.subr.bf16.mxu0 0
    %3045 = vmatpush1.bf16.msra.mxu0 %v3017
    %3046 = vmatprep.subr.bf16.mxu0 0
    %3047 = vmatpush1.bf16.msra.mxu0 %v3016
    %3048 = vmatprep.subr.bf16.mxu0 0
    %3049 = vmatpush2.bf16.msra.mxu0 0
    %3050 = vmatprep.subr.bf16.mxu0 0
    %3051 = vmatpush2.bf16.msra.mxu0 0
    %3052 = vmatprep.subr.bf16.mxu0 0
    %3053 = vmatpush2.bf16.msra.mxu0 0
    %3054 = vmatprep.subr.bf16.mxu0 0
    %3055 = vmatpush2.bf16.msra.mxu0 0
    %3056 = vmatprep.subr.bf16.mxu0 0
    %3057 = vmatpush2.bf16.msra.mxu0 0
    %3058 = vmatprep.subr.bf16.mxu0 0
    %3059 = vmatpush2.bf16.msra.mxu0 0
    %3060 = vmatprep.subr.bf16.mxu0 0
    %3061 = vmatpush2.bf16.msra.mxu0 0
    %3062 = vmatprep.subr.bf16.mxu0 0
    %3063 = vmatpush2.bf16.msra.mxu0 0
    %3064 = vmatprep.mubr.bf16.mxu0 0
    %3065 = vmatmul.mubr.bf16.gmra.mxu0 %v2960
    %v3066 = vpop.f32.mrf.mxu0
    %v3067 = vadd.f32 %v2982, %v3066
    %v3068 = vpop.f32.mrf.mxu0
    %v3069 = vpop.f32.mrf.mxu0
    %v3070 = vpop.f32.mrf.mxu0
    %3071 = vdwg.mxu0
    %3072 = vst [vmem:[#allocation2] sm:$0x3] %v3067
    // Predicated region
    $region50: #{resmlp_forward.1} parent=1 // pred_check
      _
    $region51: #{resmlp_forward.1} parent=1 // pred_check_branch
      %3074 = sbr.rel (0) target = $region53
    $region52: #{resmlp_forward.1} parent=1 // pred_region
      %s3076 = ssub.s32 32, 32
      %3077 = vsyncadd [#allocation3], %s3076
      %s3079 = sshll.u32 [#allocation2], 4
      %s3080 = int_to_ptr.vmem [resolvable:$true] %s3079
      %3082 = dma.vmem_to_hbm [thread:$0]  %s3080, 32, %s12, [#allocation3]
    $region53: #{resmlp_forward.1} parent=1 // pred_fallthru
      _
    // Predicated region
    $region54: #{resmlp_forward.1} parent=1 // pred_check
      _
    $region55: #{resmlp_forward.1} parent=1 // pred_check_branch
      %3084 = sbr.rel (0) target = $region57
    $region56: #{resmlp_forward.1} parent=1 // pred_region
      %3085 = dma.done [#allocation3], 32
    $region57: #{resmlp_forward.1} parent=1 // pred_fallthru
      _
    %3086 = vsyncpa [#allocation3], 1

</llo_original>
